<compile_context>
chip_gen: v6e
topology: v6e:2x2x1
jax: 0.10.0
libtpu: 0.0.40
codegen_flags: <defaults>
</compile_context>

<pallas_src>
import jax
import jax.numpy as jnp
from jax import lax
from jax.experimental import pallas as pl
from jax.experimental.pallas import tpu as pltpu

# Sizes fixed by the PyTorch module.
INPUT_SIZE = 40 * 40      # flatten(start_dim=2) of (N, T, 40, 40)
HIDDEN = 64               # nn.LSTM hidden_size
PROJ = 32                 # nn.LSTM proj_size
SEQ = 59                  # fixed by Linear(59 * 32, 35)
NUM_CLASSES = 35
NGATES = 4 * HIDDEN       # 256, PyTorch gate order: i, f, g, o

# Kernel-2 tiling.
TB = 8                            # time steps per grid step
T_BLOCKS = (SEQ + TB - 1) // TB   # 8
T_PAD = T_BLOCKS * TB             # 64 (W_head zero-padded to this length)
NC_PAD = 128                      # classes padded 35 -> 128 for full-lane stores
BN_MAX = 128                      # batch rows per batch block


def _sigmoid(x):
    # One tanh on the EUP instead of exp + divide.
    return 0.5 * (jnp.tanh(0.5 * x) + 1.0)


# ---------------------------------------------------------------------------
# Kernel 1: input projection for all time steps at once.
#   gates = X (M, K) @ W_ih^T (K, 256) + (b_ih + b_hh)     -> bf16 output
# ---------------------------------------------------------------------------
def _input_proj_kernel(x_ref, w_ref, b_ref, o_ref):
    acc = jnp.dot(x_ref[...], w_ref[...], preferred_element_type=jnp.float32)
    o_ref[...] = (acc + b_ref[...]).astype(o_ref.dtype)


def input_projection(x2d, w_ih_t, b_gates):
    """x2d: (M, K) bf16, w_ih_t: (K, 256) bf16, b_gates: (1, 256) f32 -> (M, 256) bf16."""
    M, K = x2d.shape
    G = w_ih_t.shape[1]
    tm = M if M <= 512 else 512          # full dim (always legal) or 8-aligned tile
    grid = (pl.cdiv(M, tm),)
    return pl.pallas_call(
        _input_proj_kernel,
        out_shape=jax.ShapeDtypeStruct((M, G), jnp.bfloat16),
        grid_spec=pltpu.PrefetchScalarGridSpec(
            num_scalar_prefetch=0,
            grid=grid,
            in_specs=[
                pl.BlockSpec((tm, K), lambda i: (i, 0)),   # stream X row blocks
                pl.BlockSpec((K, G), lambda i: (0, 0)),    # W_ih^T resident (0.8 MB bf16)
                pl.BlockSpec((1, G), lambda i: (0, 0)),    # bias resident
            ],
            out_specs=pl.BlockSpec((tm, G), lambda i: (i, 0)),
        ),
        compiler_params=pltpu.CompilerParams(
            dimension_semantics=("parallel",)),
    )(x2d, w_ih_t, b_gates)


# ---------------------------------------------------------------------------
# Kernel 2: fused LSTM recurrence (projection folded into the weights) + head.
# Grid = (batch_blocks ["parallel"], time_blocks ["arbitrary"]).
# ---------------------------------------------------------------------------
def _lstm_head_kernel(gates_ref, wcomb_ref, whead_ref, blin_ref, out_ref,
                      s_ref, c_ref, acc_ref):
    tb = pl.program_id(1)

    @pl.when(tb == 0)
    def _():
        s_ref[...] = jnp.zeros_like(s_ref)     # h0 = 0 (pre-projection state)
        c_ref[...] = jnp.zeros_like(c_ref)     # c0 = 0
        acc_ref[...] = jnp.broadcast_to(blin_ref[...], acc_ref.shape)

    wcomb = wcomb_ref[...]                     # (64, 256) bf16, resident
    s = s_ref[...]                             # (BN, 64) f32
    c = c_ref[...]                             # (BN, 64) f32
    acc = acc_ref[...]                         # (BN, 128) f32
    t0 = tb * TB

    for j in range(TB):                        # static unroll over the time block
        # Gate pre-activations: precomputed x-part + folded recurrent part.
        g = gates_ref[:, j, :].astype(jnp.float32) + jnp.dot(
            s.astype(jnp.bfloat16), wcomb, preferred_element_type=jnp.float32)
        i_g = _sigmoid(g[:, 0 * HIDDEN:1 * HIDDEN])
        f_g = _sigmoid(g[:, 1 * HIDDEN:2 * HIDDEN])
        g_g = jnp.tanh(g[:, 2 * HIDDEN:3 * HIDDEN])
        o_g = _sigmoid(g[:, 3 * HIDDEN:4 * HIDDEN])
        c = f_g * c + i_g * g_g
        s = o_g * jnp.tanh(c)
        # Head contribution: h_t @ W_lin[t]^T == s_t @ W_head[t]  (folded).
        contrib = jnp.dot(s.astype(jnp.bfloat16), whead_ref[j],
                          preferred_element_type=jnp.float32)
        # Mask padded steps (t >= 59); robust even if the padded gate rows are
        # garbage from the partial edge block (where is a select, not a mul).
        acc = acc + jnp.where(t0 + j < SEQ, contrib, 0.0)

    s_ref[...] = s
    c_ref[...] = c
    acc_ref[...] = acc

    @pl.when(tb == pl.num_programs(1) - 1)
    def _():
        out_ref[...] = acc


def lstm_recurrence_head(gates, w_comb, w_head, b_lin):
    """gates: (N, T, 256) bf16 -> logits (N, 35) f32."""
    N = gates.shape[0]
    bn = N if N <= BN_MAX else BN_MAX
    nb = pl.cdiv(N, bn)
    out = pl.pallas_call(
        _lstm_head_kernel,
        out_shape=jax.ShapeDtypeStruct((N, NC_PAD), jnp.float32),
        grid_spec=pltpu.PrefetchScalarGridSpec(
            num_scalar_prefetch=0,
            grid=(nb, T_BLOCKS),
            in_specs=[
                pl.BlockSpec((bn, TB, NGATES), lambda b, t: (b, t, 0)),   # gate slab
                pl.BlockSpec((HIDDEN, NGATES), lambda b, t: (0, 0)),      # W_comb resident
                pl.BlockSpec((TB, HIDDEN, NC_PAD), lambda b, t: (t, 0, 0)),  # W_head slab
                pl.BlockSpec((1, NC_PAD), lambda b, t: (0, 0)),           # b_lin resident
            ],
            out_specs=pl.BlockSpec((bn, NC_PAD), lambda b, t: (b, 0)),
            scratch_shapes=[
                pltpu.VMEM((bn, HIDDEN), jnp.float32),   # s_{t-1} = o*tanh(c)
                pltpu.VMEM((bn, HIDDEN), jnp.float32),   # c_{t-1}
                pltpu.VMEM((bn, NC_PAD), jnp.float32),   # logits accumulator
            ],
        ),
        compiler_params=pltpu.CompilerParams(
            dimension_semantics=("parallel", "arbitrary")),
    )(gates, w_comb, w_head, b_lin)
    return out[:, :NUM_CLASSES]


# ---------------------------------------------------------------------------
# Forward pass (matches the PyTorch module's forward).
# ---------------------------------------------------------------------------
def lstm_forward(x, p):
    """x: (N, T, 40, 40) float32 -> logits (N, 35)."""
    N, T = x.shape[0], x.shape[1]
    xf = x.reshape(N * T, INPUT_SIZE).astype(jnp.bfloat16)   # torch.flatten(x, 2)
    gates = input_projection(xf, p["w_ih_t"], p["b_gates"])  # (N*T, 256) bf16
    gates = gates.reshape(N, T, NGATES)                      # free view, NO transpose
    return lstm_recurrence_head(gates, p["w_comb"], p["w_head"], p["b_lin"])


# ---------------------------------------------------------------------------
# Parameters: PyTorch layout, packed/folded once at init time.
# ---------------------------------------------------------------------------
def init_torch_params(key):
    ks = jax.random.split(key, 7)
    s_lstm = 1.0 / jnp.sqrt(jnp.float32(HIDDEN))
    s_lin = 1.0 / jnp.sqrt(jnp.float32(SEQ * PROJ))
    u = lambda k, shape, s: jax.random.uniform(k, shape, jnp.float32, -s, s)
    return {
        "weight_ih": u(ks[0], (NGATES, INPUT_SIZE), s_lstm),   # (256, 1600)
        "weight_hh": u(ks[1], (NGATES, PROJ), s_lstm),         # (256, 32)
        "weight_hr": u(ks[2], (PROJ, HIDDEN), s_lstm),         # (32, 64)
        "bias_ih": u(ks[3], (NGATES,), s_lstm),
        "bias_hh": u(ks[4], (NGATES,), s_lstm),
        "lin_w": u(ks[5], (NUM_CLASSES, SEQ * PROJ), s_lin),   # (35, 1888)
        "lin_b": u(ks[6], (NUM_CLASSES,), s_lin),
    }


def pack_params(tp):
    """One-time transpose / fold / pad / cast of the PyTorch weights."""
    w_hr_t = tp["weight_hr"].T                                  # (64, 32)
    # Fold the 64->32 projection into the recurrent and head weights (exact).
    w_comb = jnp.dot(w_hr_t, tp["weight_hh"].T)                 # (64, 256)
    w_lin_t = tp["lin_w"].reshape(NUM_CLASSES, SEQ, PROJ).transpose(1, 2, 0)  # (59,32,35)
    w_head = jnp.einsum("hp,tpc->thc", w_hr_t, w_lin_t)         # (59, 64, 35)
    w_head = jnp.pad(
        w_head, ((0, T_PAD - SEQ), (0, 0), (0, NC_PAD - NUM_CLASSES)))  # (64,64,128)
    b_lin = jnp.pad(tp["lin_b"], (0, NC_PAD - NUM_CLASSES)).reshape(1, NC_PAD)
    return {
        "w_ih_t": tp["weight_ih"].T.astype(jnp.bfloat16),               # (1600, 256)
        "b_gates": (tp["bias_ih"] + tp["bias_hh"]).reshape(1, NGATES),  # (1, 256) f32
        "w_comb": w_comb.astype(jnp.bfloat16),                          # (64, 256)
        "w_head": w_head.astype(jnp.bfloat16),                          # (64, 64, 128)
        "b_lin": b_lin,                                                 # (1, 128) f32
    }


# ---------------------------------------------------------------------------
# Pure-JAX reference (f32 recurrence, unfolded) for validation.
# ---------------------------------------------------------------------------
def lstm_ref(x, tp):
    N = x.shape[0]
    xf = x.reshape(N * SEQ, INPUT_SIZE).astype(jnp.bfloat16)
    w_ih_t = tp["weight_ih"].T.astype(jnp.bfloat16)
    g_in = jnp.dot(xf, w_ih_t, preferred_element_type=jnp.float32)
    g_in = g_in.reshape(N, SEQ, NGATES) + (tp["bias_ih"] + tp["bias_hh"])
    whh_t = tp["weight_hh"].T
    whr_t = tp["weight_hr"].T

    def step(carry, g_t):
        h, c = carry
        g = g_t + jnp.dot(h, whh_t, preferred_element_type=jnp.float32)
        i = 1.0 / (1.0 + jnp.exp(-g[:, 0 * HIDDEN:1 * HIDDEN]))
        f = 1.0 / (1.0 + jnp.exp(-g[:, 1 * HIDDEN:2 * HIDDEN]))
        gg = jnp.tanh(g[:, 2 * HIDDEN:3 * HIDDEN])
        o = 1.0 / (1.0 + jnp.exp(-g[:, 3 * HIDDEN:4 * HIDDEN]))
        c = f * c + i * gg
        h = jnp.dot(o * jnp.tanh(c), whr_t, preferred_element_type=jnp.float32)
        return (h, c), h

    h0 = jnp.zeros((N, PROJ), jnp.float32)
    c0 = jnp.zeros((N, HIDDEN), jnp.float32)
    _, hseq = lax.scan(step, (h0, c0), jnp.swapaxes(g_in, 0, 1))   # (T, N, 32)
    flat = jnp.transpose(hseq, (1, 0, 2)).reshape(N, SEQ * PROJ)   # torch.flatten(x, 1)
    return jnp.dot(flat, tp["lin_w"].T,
                   preferred_element_type=jnp.float32) + tp["lin_b"]


if __name__ == "__main__":
    key = jax.random.PRNGKey(0)
    k_x, k_p = jax.random.split(key)

    # Shapes implied by the module: seq=59, per-step input 40*40=1600; small batch.
    N = 2
    x = jax.random.normal(k_x, (N, SEQ, 40, 40), jnp.float32)

    torch_params = init_torch_params(k_p)
    params = pack_params(torch_params)

    out = jax.block_until_ready(jax.jit(lstm_forward)(x, params))
    ref = jax.block_until_ready(jax.jit(lstm_ref)(x, torch_params))

    assert out.shape == (N, NUM_CLASSES)
    assert bool(jnp.all(jnp.isfinite(out)))
    max_err = float(jnp.max(jnp.abs(out - ref)))
    assert max_err < 1e-1, f"mismatch vs reference: max|diff|={max_err}"
    print("KERNEL_OK")
</pallas_src>

<mosaic_0001>
module attributes {stable_mosaic.version = 11 : i64} {
  func.func @_input_proj_kernel(%arg0: i32, %arg1: memref<118x1600xbf16, #tpu.memory_space<vmem>>, %arg2: memref<1600x256xbf16, #tpu.memory_space<vmem>>, %arg3: memref<1x256xf32, #tpu.memory_space<vmem>>, %arg4: memref<118x256xbf16, #tpu.memory_space<vmem>>) attributes {dimension_semantics = [#tpu.dimension_semantics<parallel>], iteration_bounds = array<i64: 1>, scalar_prefetch = 0 : i64, scratch_operands = 0 : i64, tpu.core_type = #tpu.core_type<tc>, window_params = [{transform_indices = @transform_0, window_bounds = array<i64: 118, 1600>}, {pipeline_mode = #tpu.pipeline_mode<synchronous>, transform_indices = @transform_1, window_bounds = array<i64: 1600, 256>}, {pipeline_mode = #tpu.pipeline_mode<synchronous>, transform_indices = @transform_2, window_bounds = array<i64: 1, 256>}, {transform_indices = @transform_3, window_bounds = array<i64: 118, 256>}]} {
    %c0 = arith.constant 0 : index
    %c0_0 = arith.constant 0 : index
    %0 = vector.load %arg1[%c0, %c0_0] : memref<118x1600xbf16, #tpu.memory_space<vmem>>, vector<118x1600xbf16>
    %c0_1 = arith.constant 0 : index
    %c0_2 = arith.constant 0 : index
    %1 = vector.load %arg2[%c0_1, %c0_2] : memref<1600x256xbf16, #tpu.memory_space<vmem>>, vector<1600x256xbf16>
    %cst = arith.constant dense<0.000000e+00> : vector<118x256xf32>
    %2 = tpu.matmul %0, %1, %cst {dimension_numbers = #tpu.dot_dimension_numbers<[1], [0], [0], [1], [0, 0, 1, 1], [], []>} : vector<118x1600xbf16>, vector<1600x256xbf16>, vector<118x256xf32> -> vector<118x256xf32>
    %c0_3 = arith.constant 0 : index
    %c0_4 = arith.constant 0 : index
    %3 = vector.load %arg3[%c0_3, %c0_4] : memref<1x256xf32, #tpu.memory_space<vmem>>, vector<1x256xf32>
    %4 = vector.broadcast %3 : vector<1x256xf32> to vector<118x256xf32>
    %5 = arith.addf %2, %4 : vector<118x256xf32>
    %6 = arith.truncf %5 : vector<118x256xf32> to vector<118x256xbf16>
    %c0_5 = arith.constant 0 : index
    %c0_6 = arith.constant 0 : index
    %7 = vector.load %arg4[%c0_5, %c0_6] : memref<118x256xbf16, #tpu.memory_space<vmem>>, vector<118x256xbf16>
    tpu.vector_store %arg4[%c0_5, %c0_6], %6 {strides = array<i32>} : memref<118x256xbf16, #tpu.memory_space<vmem>>, vector<118x256xbf16>,
    return
  }
  func.func @transform_0(%arg0: i32) -> (i32, i32) {
    %c0_i32 = arith.constant 0 : i32
    %c0_i32_0 = arith.constant 0 : i32
    return %arg0, %c0_i32 : i32, i32
  }
  func.func @transform_1(%arg0: i32) -> (i32, i32) {
    %c0_i32 = arith.constant 0 : i32
    %c0_i32_0 = arith.constant 0 : i32
    %c0_i32_1 = arith.constant 0 : i32
    return %c0_i32, %c0_i32_0 : i32, i32
  }
  func.func @transform_2(%arg0: i32) -> (i32, i32) {
    %c0_i32 = arith.constant 0 : i32
    %c0_i32_0 = arith.constant 0 : i32
    %c0_i32_1 = arith.constant 0 : i32
    return %c0_i32, %c0_i32_0 : i32, i32
  }
  func.func @transform_3(%arg0: i32) -> (i32, i32) {
    %c0_i32 = arith.constant 0 : i32
    %c0_i32_0 = arith.constant 0 : i32
    return %arg0, %c0_i32 : i32, i32
  }
}

module attributes {stable_mosaic.version = 11 : i64} {
  func.func @_lstm_head_kernel(%arg0: i32, %arg1: i32, %arg2: memref<2x8x256xbf16, #tpu.memory_space<vmem>>, %arg3: memref<64x256xbf16, #tpu.memory_space<vmem>>, %arg4: memref<8x64x128xbf16, #tpu.memory_space<vmem>>, %arg5: memref<1x128xf32, #tpu.memory_space<vmem>>, %arg6: memref<2x128xf32, #tpu.memory_space<vmem>>, %arg7: memref<2x64xf32, #tpu.memory_space<vmem>>, %arg8: memref<2x64xf32, #tpu.memory_space<vmem>>, %arg9: memref<2x128xf32, #tpu.memory_space<vmem>>) attributes {dimension_semantics = [#tpu.dimension_semantics<parallel>, #tpu.dimension_semantics<arbitrary>], iteration_bounds = array<i64: 1, 8>, scalar_prefetch = 0 : i64, scratch_operands = 3 : i64, tpu.core_type = #tpu.core_type<tc>, window_params = [{transform_indices = @transform_0, window_bounds = array<i64: 2, 8, 256>}, {pipeline_mode = #tpu.pipeline_mode<synchronous>, transform_indices = @transform_1, window_bounds = array<i64: 64, 256>}, {transform_indices = @transform_2, window_bounds = array<i64: 8, 64, 128>}, {pipeline_mode = #tpu.pipeline_mode<synchronous>, transform_indices = @transform_3, window_bounds = array<i64: 1, 128>}, {transform_indices = @transform_4, window_bounds = array<i64: 2, 128>}]} {
    %c0_i32 = arith.constant 0 : i32
    %0 = arith.cmpi eq, %arg1, %c0_i32 : i32
    %1 = arith.extui %0 : i1 to i32
    %c0_i32_0 = arith.constant 0 : i32
    %2 = arith.cmpi ne, %1, %c0_i32_0 : i32
    scf.if %2 {
      %cst_160 = arith.constant 0.000000e+00 : f32
      %382 = vector.broadcast %cst_160 : f32 to vector<2x64xf32>
      %c0_161 = arith.constant 0 : index
      %c0_162 = arith.constant 0 : index
      %383 = vector.load %arg7[%c0_161, %c0_162] : memref<2x64xf32, #tpu.memory_space<vmem>>, vector<2x64xf32>
      tpu.vector_store %arg7[%c0_161, %c0_162], %382 {strides = array<i32>} : memref<2x64xf32, #tpu.memory_space<vmem>>, vector<2x64xf32>,
      %cst_163 = arith.constant 0.000000e+00 : f32
      %384 = vector.broadcast %cst_163 : f32 to vector<2x64xf32>
      %c0_164 = arith.constant 0 : index
      %c0_165 = arith.constant 0 : index
      %385 = vector.load %arg8[%c0_164, %c0_165] : memref<2x64xf32, #tpu.memory_space<vmem>>, vector<2x64xf32>
      tpu.vector_store %arg8[%c0_164, %c0_165], %384 {strides = array<i32>} : memref<2x64xf32, #tpu.memory_space<vmem>>, vector<2x64xf32>,
      %c0_166 = arith.constant 0 : index
      %c0_167 = arith.constant 0 : index
      %386 = vector.load %arg5[%c0_166, %c0_167] : memref<1x128xf32, #tpu.memory_space<vmem>>, vector<1x128xf32>
      %387 = vector.shape_cast %386 : vector<1x128xf32> to vector<1x128xf32>
      %388 = vector.broadcast %387 : vector<1x128xf32> to vector<2x128xf32>
      %c0_168 = arith.constant 0 : index
      %c0_169 = arith.constant 0 : index
      %389 = vector.load %arg9[%c0_168, %c0_169] : memref<2x128xf32, #tpu.memory_space<vmem>>, vector<2x128xf32>
      tpu.vector_store %arg9[%c0_168, %c0_169], %388 {strides = array<i32>} : memref<2x128xf32, #tpu.memory_space<vmem>>, vector<2x128xf32>,
    } else {
    }
    %c0 = arith.constant 0 : index
    %c0_1 = arith.constant 0 : index
    %3 = vector.load %arg3[%c0, %c0_1] : memref<64x256xbf16, #tpu.memory_space<vmem>>, vector<64x256xbf16>
    %c0_2 = arith.constant 0 : index
    %c0_3 = arith.constant 0 : index
    %4 = vector.load %arg7[%c0_2, %c0_3] : memref<2x64xf32, #tpu.memory_space<vmem>>, vector<2x64xf32>
    %c0_4 = arith.constant 0 : index
    %c0_5 = arith.constant 0 : index
    %5 = vector.load %arg8[%c0_4, %c0_5] : memref<2x64xf32, #tpu.memory_space<vmem>>, vector<2x64xf32>
    %c0_6 = arith.constant 0 : index
    %c0_7 = arith.constant 0 : index
    %6 = vector.load %arg9[%c0_6, %c0_7] : memref<2x128xf32, #tpu.memory_space<vmem>>, vector<2x128xf32>
    %c8_i32 = arith.constant 8 : i32
    %7 = arith.muli %arg1, %c8_i32 : i32
    %c0_8 = arith.constant 0 : index
    %c0_9 = arith.constant 0 : index
    %c0_10 = arith.constant 0 : index
    %8 = vector.load %arg2[%c0_8, %c0_9, %c0_10] : memref<2x8x256xbf16, #tpu.memory_space<vmem>>, vector<2x1x256xbf16>
    %9 = vector.shape_cast %8 : vector<2x1x256xbf16> to vector<2x256xbf16>
    %10 = arith.extf %9 : vector<2x256xbf16> to vector<2x256xf32>
    %11 = arith.truncf %4 : vector<2x64xf32> to vector<2x64xbf16>
    %cst = arith.constant dense<0.000000e+00> : vector<2x256xf32>
    %12 = tpu.matmul %11, %3, %cst {dimension_numbers = #tpu.dot_dimension_numbers<[1], [0], [0], [1], [0, 0, 1, 1], [], []>} : vector<2x64xbf16>, vector<64x256xbf16>, vector<2x256xf32> -> vector<2x256xf32>
    %13 = arith.addf %10, %12 : vector<2x256xf32>
    %14 = vector.extract_strided_slice %13 {offsets = [0, 0], sizes = [2, 64], strides = [1, 1]} : vector<2x256xf32> to vector<2x64xf32>
    %cst_11 = arith.constant 5.000000e-01 : f32
    %15 = vector.broadcast %cst_11 : f32 to vector<2x64xf32>
    %16 = arith.mulf %15, %14 : vector<2x64xf32>
    %17 = math.tanh %16 : vector<2x64xf32>
    %cst_12 = arith.constant 1.000000e+00 : f32
    %18 = vector.broadcast %cst_12 : f32 to vector<2x64xf32>
    %19 = arith.addf %17, %18 : vector<2x64xf32>
    %cst_13 = arith.constant 5.000000e-01 : f32
    %20 = vector.broadcast %cst_13 : f32 to vector<2x64xf32>
    %21 = arith.mulf %20, %19 : vector<2x64xf32>
    %22 = vector.extract_strided_slice %13 {offsets = [0, 64], sizes = [2, 64], strides = [1, 1]} : vector<2x256xf32> to vector<2x64xf32>
    %cst_14 = arith.constant 5.000000e-01 : f32
    %23 = vector.broadcast %cst_14 : f32 to vector<2x64xf32>
    %24 = arith.mulf %23, %22 : vector<2x64xf32>
    %25 = math.tanh %24 : vector<2x64xf32>
    %cst_15 = arith.constant 1.000000e+00 : f32
    %26 = vector.broadcast %cst_15 : f32 to vector<2x64xf32>
    %27 = arith.addf %25, %26 : vector<2x64xf32>
    %cst_16 = arith.constant 5.000000e-01 : f32
    %28 = vector.broadcast %cst_16 : f32 to vector<2x64xf32>
    %29 = arith.mulf %28, %27 : vector<2x64xf32>
    %30 = vector.extract_strided_slice %13 {offsets = [0, 128], sizes = [2, 64], strides = [1, 1]} : vector<2x256xf32> to vector<2x64xf32>
    %31 = math.tanh %30 : vector<2x64xf32>
    %32 = vector.extract_strided_slice %13 {offsets = [0, 192], sizes = [2, 64], strides = [1, 1]} : vector<2x256xf32> to vector<2x64xf32>
    %cst_17 = arith.constant 5.000000e-01 : f32
    %33 = vector.broadcast %cst_17 : f32 to vector<2x64xf32>
    %34 = arith.mulf %33, %32 : vector<2x64xf32>
    %35 = math.tanh %34 : vector<2x64xf32>
    %cst_18 = arith.constant 1.000000e+00 : f32
    %36 = vector.broadcast %cst_18 : f32 to vector<2x64xf32>
    %37 = arith.addf %35, %36 : vector<2x64xf32>
    %cst_19 = arith.constant 5.000000e-01 : f32
    %38 = vector.broadcast %cst_19 : f32 to vector<2x64xf32>
    %39 = arith.mulf %38, %37 : vector<2x64xf32>
    %40 = arith.mulf %29, %5 : vector<2x64xf32>
    %41 = arith.mulf %21, %31 : vector<2x64xf32>
    %42 = arith.addf %40, %41 : vector<2x64xf32>
    %43 = math.tanh %42 : vector<2x64xf32>
    %44 = arith.mulf %39, %43 : vector<2x64xf32>
    %45 = arith.truncf %44 : vector<2x64xf32> to vector<2x64xbf16>
    %c0_20 = arith.constant 0 : index
    %c0_21 = arith.constant 0 : index
    %c0_22 = arith.constant 0 : index
    %46 = vector.load %arg4[%c0_20, %c0_21, %c0_22] : memref<8x64x128xbf16, #tpu.memory_space<vmem>>, vector<1x64x128xbf16>
    %47 = vector.shape_cast %46 : vector<1x64x128xbf16> to vector<64x128xbf16>
    %cst_23 = arith.constant dense<0.000000e+00> : vector<2x128xf32>
    %48 = tpu.matmul %45, %47, %cst_23 {dimension_numbers = #tpu.dot_dimension_numbers<[1], [0], [0], [1], [0, 0, 1, 1], [], []>} : vector<2x64xbf16>, vector<64x128xbf16>, vector<2x128xf32> -> vector<2x128xf32>
    %c0_i32_24 = arith.constant 0 : i32
    %49 = arith.addi %7, %c0_i32_24 : i32
    %c59_i32 = arith.constant 59 : i32
    %50 = arith.cmpi slt, %49, %c59_i32 : i32
    %cst_25 = arith.constant 0.000000e+00 : f32
    %51 = vector.broadcast %cst_25 : f32 to vector<2x128xf32>
    %52 = arith.select %50, %48, %51 : vector<2x128xf32>
    %53 = arith.addf %6, %52 : vector<2x128xf32>
    %c0_26 = arith.constant 0 : index
    %c1 = arith.constant 1 : index
    %c0_27 = arith.constant 0 : index
    %54 = vector.load %arg2[%c0_26, %c1, %c0_27] : memref<2x8x256xbf16, #tpu.memory_space<vmem>>, vector<2x1x256xbf16>
    %55 = vector.shape_cast %54 : vector<2x1x256xbf16> to vector<2x256xbf16>
    %56 = arith.extf %55 : vector<2x256xbf16> to vector<2x256xf32>
    %57 = arith.truncf %44 : vector<2x64xf32> to vector<2x64xbf16>
    %cst_28 = arith.constant dense<0.000000e+00> : vector<2x256xf32>
    %58 = tpu.matmul %57, %3, %cst_28 {dimension_numbers = #tpu.dot_dimension_numbers<[1], [0], [0], [1], [0, 0, 1, 1], [], []>} : vector<2x64xbf16>, vector<64x256xbf16>, vector<2x256xf32> -> vector<2x256xf32>
    %59 = arith.addf %56, %58 : vector<2x256xf32>
    %60 = vector.extract_strided_slice %59 {offsets = [0, 0], sizes = [2, 64], strides = [1, 1]} : vector<2x256xf32> to vector<2x64xf32>
    %cst_29 = arith.constant 5.000000e-01 : f32
    %61 = vector.broadcast %cst_29 : f32 to vector<2x64xf32>
    %62 = arith.mulf %61, %60 : vector<2x64xf32>
    %63 = math.tanh %62 : vector<2x64xf32>
    %cst_30 = arith.constant 1.000000e+00 : f32
    %64 = vector.broadcast %cst_30 : f32 to vector<2x64xf32>
    %65 = arith.addf %63, %64 : vector<2x64xf32>
    %cst_31 = arith.constant 5.000000e-01 : f32
    %66 = vector.broadcast %cst_31 : f32 to vector<2x64xf32>
    %67 = arith.mulf %66, %65 : vector<2x64xf32>
    %68 = vector.extract_strided_slice %59 {offsets = [0, 64], sizes = [2, 64], strides = [1, 1]} : vector<2x256xf32> to vector<2x64xf32>
    %cst_32 = arith.constant 5.000000e-01 : f32
    %69 = vector.broadcast %cst_32 : f32 to vector<2x64xf32>
    %70 = arith.mulf %69, %68 : vector<2x64xf32>
    %71 = math.tanh %70 : vector<2x64xf32>
    %cst_33 = arith.constant 1.000000e+00 : f32
    %72 = vector.broadcast %cst_33 : f32 to vector<2x64xf32>
    %73 = arith.addf %71, %72 : vector<2x64xf32>
    %cst_34 = arith.constant 5.000000e-01 : f32
    %74 = vector.broadcast %cst_34 : f32 to vector<2x64xf32>
    %75 = arith.mulf %74, %73 : vector<2x64xf32>
    %76 = vector.extract_strided_slice %59 {offsets = [0, 128], sizes = [2, 64], strides = [1, 1]} : vector<2x256xf32> to vector<2x64xf32>
    %77 = math.tanh %76 : vector<2x64xf32>
    %78 = vector.extract_strided_slice %59 {offsets = [0, 192], sizes = [2, 64], strides = [1, 1]} : vector<2x256xf32> to vector<2x64xf32>
    %cst_35 = arith.constant 5.000000e-01 : f32
    %79 = vector.broadcast %cst_35 : f32 to vector<2x64xf32>
    %80 = arith.mulf %79, %78 : vector<2x64xf32>
    %81 = math.tanh %80 : vector<2x64xf32>
    %cst_36 = arith.constant 1.000000e+00 : f32
    %82 = vector.broadcast %cst_36 : f32 to vector<2x64xf32>
    %83 = arith.addf %81, %82 : vector<2x64xf32>
    %cst_37 = arith.constant 5.000000e-01 : f32
    %84 = vector.broadcast %cst_37 : f32 to vector<2x64xf32>
    %85 = arith.mulf %84, %83 : vector<2x64xf32>
    %86 = arith.mulf %75, %42 : vector<2x64xf32>
    %87 = arith.mulf %67, %77 : vector<2x64xf32>
    %88 = arith.addf %86, %87 : vector<2x64xf32>
    %89 = math.tanh %88 : vector<2x64xf32>
    %90 = arith.mulf %85, %89 : vector<2x64xf32>
    %91 = arith.truncf %90 : vector<2x64xf32> to vector<2x64xbf16>
    %c1_38 = arith.constant 1 : index
    %c0_39 = arith.constant 0 : index
    %c0_40 = arith.constant 0 : index
    %92 = vector.load %arg4[%c1_38, %c0_39, %c0_40] : memref<8x64x128xbf16, #tpu.memory_space<vmem>>, vector<1x64x128xbf16>
    %93 = vector.shape_cast %92 : vector<1x64x128xbf16> to vector<64x128xbf16>
    %cst_41 = arith.constant dense<0.000000e+00> : vector<2x128xf32>
    %94 = tpu.matmul %91, %93, %cst_41 {dimension_numbers = #tpu.dot_dimension_numbers<[1], [0], [0], [1], [0, 0, 1, 1], [], []>} : vector<2x64xbf16>, vector<64x128xbf16>, vector<2x128xf32> -> vector<2x128xf32>
    %c1_i32 = arith.constant 1 : i32
    %95 = arith.addi %7, %c1_i32 : i32
    %c59_i32_42 = arith.constant 59 : i32
    %96 = arith.cmpi slt, %95, %c59_i32_42 : i32
    %cst_43 = arith.constant 0.000000e+00 : f32
    %97 = vector.broadcast %cst_43 : f32 to vector<2x128xf32>
    %98 = arith.select %96, %94, %97 : vector<2x128xf32>
    %99 = arith.addf %53, %98 : vector<2x128xf32>
    %c0_44 = arith.constant 0 : index
    %c2 = arith.constant 2 : index
    %c0_45 = arith.constant 0 : index
    %100 = vector.load %arg2[%c0_44, %c2, %c0_45] : memref<2x8x256xbf16, #tpu.memory_space<vmem>>, vector<2x1x256xbf16>
    %101 = vector.shape_cast %100 : vector<2x1x256xbf16> to vector<2x256xbf16>
    %102 = arith.extf %101 : vector<2x256xbf16> to vector<2x256xf32>
    %103 = arith.truncf %90 : vector<2x64xf32> to vector<2x64xbf16>
    %cst_46 = arith.constant dense<0.000000e+00> : vector<2x256xf32>
    %104 = tpu.matmul %103, %3, %cst_46 {dimension_numbers = #tpu.dot_dimension_numbers<[1], [0], [0], [1], [0, 0, 1, 1], [], []>} : vector<2x64xbf16>, vector<64x256xbf16>, vector<2x256xf32> -> vector<2x256xf32>
    %105 = arith.addf %102, %104 : vector<2x256xf32>
    %106 = vector.extract_strided_slice %105 {offsets = [0, 0], sizes = [2, 64], strides = [1, 1]} : vector<2x256xf32> to vector<2x64xf32>
    %cst_47 = arith.constant 5.000000e-01 : f32
    %107 = vector.broadcast %cst_47 : f32 to vector<2x64xf32>
    %108 = arith.mulf %107, %106 : vector<2x64xf32>
    %109 = math.tanh %108 : vector<2x64xf32>
    %cst_48 = arith.constant 1.000000e+00 : f32
    %110 = vector.broadcast %cst_48 : f32 to vector<2x64xf32>
    %111 = arith.addf %109, %110 : vector<2x64xf32>
    %cst_49 = arith.constant 5.000000e-01 : f32
    %112 = vector.broadcast %cst_49 : f32 to vector<2x64xf32>
    %113 = arith.mulf %112, %111 : vector<2x64xf32>
    %114 = vector.extract_strided_slice %105 {offsets = [0, 64], sizes = [2, 64], strides = [1, 1]} : vector<2x256xf32> to vector<2x64xf32>
    %cst_50 = arith.constant 5.000000e-01 : f32
    %115 = vector.broadcast %cst_50 : f32 to vector<2x64xf32>
    %116 = arith.mulf %115, %114 : vector<2x64xf32>
    %117 = math.tanh %116 : vector<2x64xf32>
    %cst_51 = arith.constant 1.000000e+00 : f32
    %118 = vector.broadcast %cst_51 : f32 to vector<2x64xf32>
    %119 = arith.addf %117, %118 : vector<2x64xf32>
    %cst_52 = arith.constant 5.000000e-01 : f32
    %120 = vector.broadcast %cst_52 : f32 to vector<2x64xf32>
    %121 = arith.mulf %120, %119 : vector<2x64xf32>
    %122 = vector.extract_strided_slice %105 {offsets = [0, 128], sizes = [2, 64], strides = [1, 1]} : vector<2x256xf32> to vector<2x64xf32>
    %123 = math.tanh %122 : vector<2x64xf32>
    %124 = vector.extract_strided_slice %105 {offsets = [0, 192], sizes = [2, 64], strides = [1, 1]} : vector<2x256xf32> to vector<2x64xf32>
    %cst_53 = arith.constant 5.000000e-01 : f32
    %125 = vector.broadcast %cst_53 : f32 to vector<2x64xf32>
    %126 = arith.mulf %125, %124 : vector<2x64xf32>
    %127 = math.tanh %126 : vector<2x64xf32>
    %cst_54 = arith.constant 1.000000e+00 : f32
    %128 = vector.broadcast %cst_54 : f32 to vector<2x64xf32>
    %129 = arith.addf %127, %128 : vector<2x64xf32>
    %cst_55 = arith.constant 5.000000e-01 : f32
    %130 = vector.broadcast %cst_55 : f32 to vector<2x64xf32>
    %131 = arith.mulf %130, %129 : vector<2x64xf32>
    %132 = arith.mulf %121, %88 : vector<2x64xf32>
    %133 = arith.mulf %113, %123 : vector<2x64xf32>
    %134 = arith.addf %132, %133 : vector<2x64xf32>
    %135 = math.tanh %134 : vector<2x64xf32>
    %136 = arith.mulf %131, %135 : vector<2x64xf32>
    %137 = arith.truncf %136 : vector<2x64xf32> to vector<2x64xbf16>
    %c2_56 = arith.constant 2 : index
    %c0_57 = arith.constant 0 : index
    %c0_58 = arith.constant 0 : index
    %138 = vector.load %arg4[%c2_56, %c0_57, %c0_58] : memref<8x64x128xbf16, #tpu.memory_space<vmem>>, vector<1x64x128xbf16>
    %139 = vector.shape_cast %138 : vector<1x64x128xbf16> to vector<64x128xbf16>
    %cst_59 = arith.constant dense<0.000000e+00> : vector<2x128xf32>
    %140 = tpu.matmul %137, %139, %cst_59 {dimension_numbers = #tpu.dot_dimension_numbers<[1], [0], [0], [1], [0, 0, 1, 1], [], []>} : vector<2x64xbf16>, vector<64x128xbf16>, vector<2x128xf32> -> vector<2x128xf32>
    %c2_i32 = arith.constant 2 : i32
    %141 = arith.addi %7, %c2_i32 : i32
    %c59_i32_60 = arith.constant 59 : i32
    %142 = arith.cmpi slt, %141, %c59_i32_60 : i32
    %cst_61 = arith.constant 0.000000e+00 : f32
    %143 = vector.broadcast %cst_61 : f32 to vector<2x128xf32>
    %144 = arith.select %142, %140, %143 : vector<2x128xf32>
    %145 = arith.addf %99, %144 : vector<2x128xf32>
    %c0_62 = arith.constant 0 : index
    %c3 = arith.constant 3 : index
    %c0_63 = arith.constant 0 : index
    %146 = vector.load %arg2[%c0_62, %c3, %c0_63] : memref<2x8x256xbf16, #tpu.memory_space<vmem>>, vector<2x1x256xbf16>
    %147 = vector.shape_cast %146 : vector<2x1x256xbf16> to vector<2x256xbf16>
    %148 = arith.extf %147 : vector<2x256xbf16> to vector<2x256xf32>
    %149 = arith.truncf %136 : vector<2x64xf32> to vector<2x64xbf16>
    %cst_64 = arith.constant dense<0.000000e+00> : vector<2x256xf32>
    %150 = tpu.matmul %149, %3, %cst_64 {dimension_numbers = #tpu.dot_dimension_numbers<[1], [0], [0], [1], [0, 0, 1, 1], [], []>} : vector<2x64xbf16>, vector<64x256xbf16>, vector<2x256xf32> -> vector<2x256xf32>
    %151 = arith.addf %148, %150 : vector<2x256xf32>
    %152 = vector.extract_strided_slice %151 {offsets = [0, 0], sizes = [2, 64], strides = [1, 1]} : vector<2x256xf32> to vector<2x64xf32>
    %cst_65 = arith.constant 5.000000e-01 : f32
    %153 = vector.broadcast %cst_65 : f32 to vector<2x64xf32>
    %154 = arith.mulf %153, %152 : vector<2x64xf32>
    %155 = math.tanh %154 : vector<2x64xf32>
    %cst_66 = arith.constant 1.000000e+00 : f32
    %156 = vector.broadcast %cst_66 : f32 to vector<2x64xf32>
    %157 = arith.addf %155, %156 : vector<2x64xf32>
    %cst_67 = arith.constant 5.000000e-01 : f32
    %158 = vector.broadcast %cst_67 : f32 to vector<2x64xf32>
    %159 = arith.mulf %158, %157 : vector<2x64xf32>
    %160 = vector.extract_strided_slice %151 {offsets = [0, 64], sizes = [2, 64], strides = [1, 1]} : vector<2x256xf32> to vector<2x64xf32>
    %cst_68 = arith.constant 5.000000e-01 : f32
    %161 = vector.broadcast %cst_68 : f32 to vector<2x64xf32>
    %162 = arith.mulf %161, %160 : vector<2x64xf32>
    %163 = math.tanh %162 : vector<2x64xf32>
    %cst_69 = arith.constant 1.000000e+00 : f32
    %164 = vector.broadcast %cst_69 : f32 to vector<2x64xf32>
    %165 = arith.addf %163, %164 : vector<2x64xf32>
    %cst_70 = arith.constant 5.000000e-01 : f32
    %166 = vector.broadcast %cst_70 : f32 to vector<2x64xf32>
    %167 = arith.mulf %166, %165 : vector<2x64xf32>
    %168 = vector.extract_strided_slice %151 {offsets = [0, 128], sizes = [2, 64], strides = [1, 1]} : vector<2x256xf32> to vector<2x64xf32>
    %169 = math.tanh %168 : vector<2x64xf32>
    %170 = vector.extract_strided_slice %151 {offsets = [0, 192], sizes = [2, 64], strides = [1, 1]} : vector<2x256xf32> to vector<2x64xf32>
    %cst_71 = arith.constant 5.000000e-01 : f32
    %171 = vector.broadcast %cst_71 : f32 to vector<2x64xf32>
    %172 = arith.mulf %171, %170 : vector<2x64xf32>
    %173 = math.tanh %172 : vector<2x64xf32>
    %cst_72 = arith.constant 1.000000e+00 : f32
    %174 = vector.broadcast %cst_72 : f32 to vector<2x64xf32>
    %175 = arith.addf %173, %174 : vector<2x64xf32>
    %cst_73 = arith.constant 5.000000e-01 : f32
    %176 = vector.broadcast %cst_73 : f32 to vector<2x64xf32>
    %177 = arith.mulf %176, %175 : vector<2x64xf32>
    %178 = arith.mulf %167, %134 : vector<2x64xf32>
    %179 = arith.mulf %159, %169 : vector<2x64xf32>
    %180 = arith.addf %178, %179 : vector<2x64xf32>
    %181 = math.tanh %180 : vector<2x64xf32>
    %182 = arith.mulf %177, %181 : vector<2x64xf32>
    %183 = arith.truncf %182 : vector<2x64xf32> to vector<2x64xbf16>
    %c3_74 = arith.constant 3 : index
    %c0_75 = arith.constant 0 : index
    %c0_76 = arith.constant 0 : index
    %184 = vector.load %arg4[%c3_74, %c0_75, %c0_76] : memref<8x64x128xbf16, #tpu.memory_space<vmem>>, vector<1x64x128xbf16>
    %185 = vector.shape_cast %184 : vector<1x64x128xbf16> to vector<64x128xbf16>
    %cst_77 = arith.constant dense<0.000000e+00> : vector<2x128xf32>
    %186 = tpu.matmul %183, %185, %cst_77 {dimension_numbers = #tpu.dot_dimension_numbers<[1], [0], [0], [1], [0, 0, 1, 1], [], []>} : vector<2x64xbf16>, vector<64x128xbf16>, vector<2x128xf32> -> vector<2x128xf32>
    %c3_i32 = arith.constant 3 : i32
    %187 = arith.addi %7, %c3_i32 : i32
    %c59_i32_78 = arith.constant 59 : i32
    %188 = arith.cmpi slt, %187, %c59_i32_78 : i32
    %cst_79 = arith.constant 0.000000e+00 : f32
    %189 = vector.broadcast %cst_79 : f32 to vector<2x128xf32>
    %190 = arith.select %188, %186, %189 : vector<2x128xf32>
    %191 = arith.addf %145, %190 : vector<2x128xf32>
    %c0_80 = arith.constant 0 : index
    %c4 = arith.constant 4 : index
    %c0_81 = arith.constant 0 : index
    %192 = vector.load %arg2[%c0_80, %c4, %c0_81] : memref<2x8x256xbf16, #tpu.memory_space<vmem>>, vector<2x1x256xbf16>
    %193 = vector.shape_cast %192 : vector<2x1x256xbf16> to vector<2x256xbf16>
    %194 = arith.extf %193 : vector<2x256xbf16> to vector<2x256xf32>
    %195 = arith.truncf %182 : vector<2x64xf32> to vector<2x64xbf16>
    %cst_82 = arith.constant dense<0.000000e+00> : vector<2x256xf32>
    %196 = tpu.matmul %195, %3, %cst_82 {dimension_numbers = #tpu.dot_dimension_numbers<[1], [0], [0], [1], [0, 0, 1, 1], [], []>} : vector<2x64xbf16>, vector<64x256xbf16>, vector<2x256xf32> -> vector<2x256xf32>
    %197 = arith.addf %194, %196 : vector<2x256xf32>
    %198 = vector.extract_strided_slice %197 {offsets = [0, 0], sizes = [2, 64], strides = [1, 1]} : vector<2x256xf32> to vector<2x64xf32>
    %cst_83 = arith.constant 5.000000e-01 : f32
    %199 = vector.broadcast %cst_83 : f32 to vector<2x64xf32>
    %200 = arith.mulf %199, %198 : vector<2x64xf32>
    %201 = math.tanh %200 : vector<2x64xf32>
    %cst_84 = arith.constant 1.000000e+00 : f32
    %202 = vector.broadcast %cst_84 : f32 to vector<2x64xf32>
    %203 = arith.addf %201, %202 : vector<2x64xf32>
    %cst_85 = arith.constant 5.000000e-01 : f32
    %204 = vector.broadcast %cst_85 : f32 to vector<2x64xf32>
    %205 = arith.mulf %204, %203 : vector<2x64xf32>
    %206 = vector.extract_strided_slice %197 {offsets = [0, 64], sizes = [2, 64], strides = [1, 1]} : vector<2x256xf32> to vector<2x64xf32>
    %cst_86 = arith.constant 5.000000e-01 : f32
    %207 = vector.broadcast %cst_86 : f32 to vector<2x64xf32>
    %208 = arith.mulf %207, %206 : vector<2x64xf32>
    %209 = math.tanh %208 : vector<2x64xf32>
    %cst_87 = arith.constant 1.000000e+00 : f32
    %210 = vector.broadcast %cst_87 : f32 to vector<2x64xf32>
    %211 = arith.addf %209, %210 : vector<2x64xf32>
    %cst_88 = arith.constant 5.000000e-01 : f32
    %212 = vector.broadcast %cst_88 : f32 to vector<2x64xf32>
    %213 = arith.mulf %212, %211 : vector<2x64xf32>
    %214 = vector.extract_strided_slice %197 {offsets = [0, 128], sizes = [2, 64], strides = [1, 1]} : vector<2x256xf32> to vector<2x64xf32>
    %215 = math.tanh %214 : vector<2x64xf32>
    %216 = vector.extract_strided_slice %197 {offsets = [0, 192], sizes = [2, 64], strides = [1, 1]} : vector<2x256xf32> to vector<2x64xf32>
    %cst_89 = arith.constant 5.000000e-01 : f32
    %217 = vector.broadcast %cst_89 : f32 to vector<2x64xf32>
    %218 = arith.mulf %217, %216 : vector<2x64xf32>
    %219 = math.tanh %218 : vector<2x64xf32>
    %cst_90 = arith.constant 1.000000e+00 : f32
    %220 = vector.broadcast %cst_90 : f32 to vector<2x64xf32>
    %221 = arith.addf %219, %220 : vector<2x64xf32>
    %cst_91 = arith.constant 5.000000e-01 : f32
    %222 = vector.broadcast %cst_91 : f32 to vector<2x64xf32>
    %223 = arith.mulf %222, %221 : vector<2x64xf32>
    %224 = arith.mulf %213, %180 : vector<2x64xf32>
    %225 = arith.mulf %205, %215 : vector<2x64xf32>
    %226 = arith.addf %224, %225 : vector<2x64xf32>
    %227 = math.tanh %226 : vector<2x64xf32>
    %228 = arith.mulf %223, %227 : vector<2x64xf32>
    %229 = arith.truncf %228 : vector<2x64xf32> to vector<2x64xbf16>
    %c4_92 = arith.constant 4 : index
    %c0_93 = arith.constant 0 : index
    %c0_94 = arith.constant 0 : index
    %230 = vector.load %arg4[%c4_92, %c0_93, %c0_94] : memref<8x64x128xbf16, #tpu.memory_space<vmem>>, vector<1x64x128xbf16>
    %231 = vector.shape_cast %230 : vector<1x64x128xbf16> to vector<64x128xbf16>
    %cst_95 = arith.constant dense<0.000000e+00> : vector<2x128xf32>
    %232 = tpu.matmul %229, %231, %cst_95 {dimension_numbers = #tpu.dot_dimension_numbers<[1], [0], [0], [1], [0, 0, 1, 1], [], []>} : vector<2x64xbf16>, vector<64x128xbf16>, vector<2x128xf32> -> vector<2x128xf32>
    %c4_i32 = arith.constant 4 : i32
    %233 = arith.addi %7, %c4_i32 : i32
    %c59_i32_96 = arith.constant 59 : i32
    %234 = arith.cmpi slt, %233, %c59_i32_96 : i32
    %cst_97 = arith.constant 0.000000e+00 : f32
    %235 = vector.broadcast %cst_97 : f32 to vector<2x128xf32>
    %236 = arith.select %234, %232, %235 : vector<2x128xf32>
    %237 = arith.addf %191, %236 : vector<2x128xf32>
    %c0_98 = arith.constant 0 : index
    %c5 = arith.constant 5 : index
    %c0_99 = arith.constant 0 : index
    %238 = vector.load %arg2[%c0_98, %c5, %c0_99] : memref<2x8x256xbf16, #tpu.memory_space<vmem>>, vector<2x1x256xbf16>
    %239 = vector.shape_cast %238 : vector<2x1x256xbf16> to vector<2x256xbf16>
    %240 = arith.extf %239 : vector<2x256xbf16> to vector<2x256xf32>
    %241 = arith.truncf %228 : vector<2x64xf32> to vector<2x64xbf16>
    %cst_100 = arith.constant dense<0.000000e+00> : vector<2x256xf32>
    %242 = tpu.matmul %241, %3, %cst_100 {dimension_numbers = #tpu.dot_dimension_numbers<[1], [0], [0], [1], [0, 0, 1, 1], [], []>} : vector<2x64xbf16>, vector<64x256xbf16>, vector<2x256xf32> -> vector<2x256xf32>
    %243 = arith.addf %240, %242 : vector<2x256xf32>
    %244 = vector.extract_strided_slice %243 {offsets = [0, 0], sizes = [2, 64], strides = [1, 1]} : vector<2x256xf32> to vector<2x64xf32>
    %cst_101 = arith.constant 5.000000e-01 : f32
    %245 = vector.broadcast %cst_101 : f32 to vector<2x64xf32>
    %246 = arith.mulf %245, %244 : vector<2x64xf32>
    %247 = math.tanh %246 : vector<2x64xf32>
    %cst_102 = arith.constant 1.000000e+00 : f32
    %248 = vector.broadcast %cst_102 : f32 to vector<2x64xf32>
    %249 = arith.addf %247, %248 : vector<2x64xf32>
    %cst_103 = arith.constant 5.000000e-01 : f32
    %250 = vector.broadcast %cst_103 : f32 to vector<2x64xf32>
    %251 = arith.mulf %250, %249 : vector<2x64xf32>
    %252 = vector.extract_strided_slice %243 {offsets = [0, 64], sizes = [2, 64], strides = [1, 1]} : vector<2x256xf32> to vector<2x64xf32>
    %cst_104 = arith.constant 5.000000e-01 : f32
    %253 = vector.broadcast %cst_104 : f32 to vector<2x64xf32>
    %254 = arith.mulf %253, %252 : vector<2x64xf32>
    %255 = math.tanh %254 : vector<2x64xf32>
    %cst_105 = arith.constant 1.000000e+00 : f32
    %256 = vector.broadcast %cst_105 : f32 to vector<2x64xf32>
    %257 = arith.addf %255, %256 : vector<2x64xf32>
    %cst_106 = arith.constant 5.000000e-01 : f32
    %258 = vector.broadcast %cst_106 : f32 to vector<2x64xf32>
    %259 = arith.mulf %258, %257 : vector<2x64xf32>
    %260 = vector.extract_strided_slice %243 {offsets = [0, 128], sizes = [2, 64], strides = [1, 1]} : vector<2x256xf32> to vector<2x64xf32>
    %261 = math.tanh %260 : vector<2x64xf32>
    %262 = vector.extract_strided_slice %243 {offsets = [0, 192], sizes = [2, 64], strides = [1, 1]} : vector<2x256xf32> to vector<2x64xf32>
    %cst_107 = arith.constant 5.000000e-01 : f32
    %263 = vector.broadcast %cst_107 : f32 to vector<2x64xf32>
    %264 = arith.mulf %263, %262 : vector<2x64xf32>
    %265 = math.tanh %264 : vector<2x64xf32>
    %cst_108 = arith.constant 1.000000e+00 : f32
    %266 = vector.broadcast %cst_108 : f32 to vector<2x64xf32>
    %267 = arith.addf %265, %266 : vector<2x64xf32>
    %cst_109 = arith.constant 5.000000e-01 : f32
    %268 = vector.broadcast %cst_109 : f32 to vector<2x64xf32>
    %269 = arith.mulf %268, %267 : vector<2x64xf32>
    %270 = arith.mulf %259, %226 : vector<2x64xf32>
    %271 = arith.mulf %251, %261 : vector<2x64xf32>
    %272 = arith.addf %270, %271 : vector<2x64xf32>
    %273 = math.tanh %272 : vector<2x64xf32>
    %274 = arith.mulf %269, %273 : vector<2x64xf32>
    %275 = arith.truncf %274 : vector<2x64xf32> to vector<2x64xbf16>
    %c5_110 = arith.constant 5 : index
    %c0_111 = arith.constant 0 : index
    %c0_112 = arith.constant 0 : index
    %276 = vector.load %arg4[%c5_110, %c0_111, %c0_112] : memref<8x64x128xbf16, #tpu.memory_space<vmem>>, vector<1x64x128xbf16>
    %277 = vector.shape_cast %276 : vector<1x64x128xbf16> to vector<64x128xbf16>
    %cst_113 = arith.constant dense<0.000000e+00> : vector<2x128xf32>
    %278 = tpu.matmul %275, %277, %cst_113 {dimension_numbers = #tpu.dot_dimension_numbers<[1], [0], [0], [1], [0, 0, 1, 1], [], []>} : vector<2x64xbf16>, vector<64x128xbf16>, vector<2x128xf32> -> vector<2x128xf32>
    %c5_i32 = arith.constant 5 : i32
    %279 = arith.addi %7, %c5_i32 : i32
    %c59_i32_114 = arith.constant 59 : i32
    %280 = arith.cmpi slt, %279, %c59_i32_114 : i32
    %cst_115 = arith.constant 0.000000e+00 : f32
    %281 = vector.broadcast %cst_115 : f32 to vector<2x128xf32>
    %282 = arith.select %280, %278, %281 : vector<2x128xf32>
    %283 = arith.addf %237, %282 : vector<2x128xf32>
    %c0_116 = arith.constant 0 : index
    %c6 = arith.constant 6 : index
    %c0_117 = arith.constant 0 : index
    %284 = vector.load %arg2[%c0_116, %c6, %c0_117] : memref<2x8x256xbf16, #tpu.memory_space<vmem>>, vector<2x1x256xbf16>
    %285 = vector.shape_cast %284 : vector<2x1x256xbf16> to vector<2x256xbf16>
    %286 = arith.extf %285 : vector<2x256xbf16> to vector<2x256xf32>
    %287 = arith.truncf %274 : vector<2x64xf32> to vector<2x64xbf16>
    %cst_118 = arith.constant dense<0.000000e+00> : vector<2x256xf32>
    %288 = tpu.matmul %287, %3, %cst_118 {dimension_numbers = #tpu.dot_dimension_numbers<[1], [0], [0], [1], [0, 0, 1, 1], [], []>} : vector<2x64xbf16>, vector<64x256xbf16>, vector<2x256xf32> -> vector<2x256xf32>
    %289 = arith.addf %286, %288 : vector<2x256xf32>
    %290 = vector.extract_strided_slice %289 {offsets = [0, 0], sizes = [2, 64], strides = [1, 1]} : vector<2x256xf32> to vector<2x64xf32>
    %cst_119 = arith.constant 5.000000e-01 : f32
    %291 = vector.broadcast %cst_119 : f32 to vector<2x64xf32>
    %292 = arith.mulf %291, %290 : vector<2x64xf32>
    %293 = math.tanh %292 : vector<2x64xf32>
    %cst_120 = arith.constant 1.000000e+00 : f32
    %294 = vector.broadcast %cst_120 : f32 to vector<2x64xf32>
    %295 = arith.addf %293, %294 : vector<2x64xf32>
    %cst_121 = arith.constant 5.000000e-01 : f32
    %296 = vector.broadcast %cst_121 : f32 to vector<2x64xf32>
    %297 = arith.mulf %296, %295 : vector<2x64xf32>
    %298 = vector.extract_strided_slice %289 {offsets = [0, 64], sizes = [2, 64], strides = [1, 1]} : vector<2x256xf32> to vector<2x64xf32>
    %cst_122 = arith.constant 5.000000e-01 : f32
    %299 = vector.broadcast %cst_122 : f32 to vector<2x64xf32>
    %300 = arith.mulf %299, %298 : vector<2x64xf32>
    %301 = math.tanh %300 : vector<2x64xf32>
    %cst_123 = arith.constant 1.000000e+00 : f32
    %302 = vector.broadcast %cst_123 : f32 to vector<2x64xf32>
    %303 = arith.addf %301, %302 : vector<2x64xf32>
    %cst_124 = arith.constant 5.000000e-01 : f32
    %304 = vector.broadcast %cst_124 : f32 to vector<2x64xf32>
    %305 = arith.mulf %304, %303 : vector<2x64xf32>
    %306 = vector.extract_strided_slice %289 {offsets = [0, 128], sizes = [2, 64], strides = [1, 1]} : vector<2x256xf32> to vector<2x64xf32>
    %307 = math.tanh %306 : vector<2x64xf32>
    %308 = vector.extract_strided_slice %289 {offsets = [0, 192], sizes = [2, 64], strides = [1, 1]} : vector<2x256xf32> to vector<2x64xf32>
    %cst_125 = arith.constant 5.000000e-01 : f32
    %309 = vector.broadcast %cst_125 : f32 to vector<2x64xf32>
    %310 = arith.mulf %309, %308 : vector<2x64xf32>
    %311 = math.tanh %310 : vector<2x64xf32>
    %cst_126 = arith.constant 1.000000e+00 : f32
    %312 = vector.broadcast %cst_126 : f32 to vector<2x64xf32>
    %313 = arith.addf %311, %312 : vector<2x64xf32>
    %cst_127 = arith.constant 5.000000e-01 : f32
    %314 = vector.broadcast %cst_127 : f32 to vector<2x64xf32>
    %315 = arith.mulf %314, %313 : vector<2x64xf32>
    %316 = arith.mulf %305, %272 : vector<2x64xf32>
    %317 = arith.mulf %297, %307 : vector<2x64xf32>
    %318 = arith.addf %316, %317 : vector<2x64xf32>
    %319 = math.tanh %318 : vector<2x64xf32>
    %320 = arith.mulf %315, %319 : vector<2x64xf32>
    %321 = arith.truncf %320 : vector<2x64xf32> to vector<2x64xbf16>
    %c6_128 = arith.constant 6 : index
    %c0_129 = arith.constant 0 : index
    %c0_130 = arith.constant 0 : index
    %322 = vector.load %arg4[%c6_128, %c0_129, %c0_130] : memref<8x64x128xbf16, #tpu.memory_space<vmem>>, vector<1x64x128xbf16>
    %323 = vector.shape_cast %322 : vector<1x64x128xbf16> to vector<64x128xbf16>
    %cst_131 = arith.constant dense<0.000000e+00> : vector<2x128xf32>
    %324 = tpu.matmul %321, %323, %cst_131 {dimension_numbers = #tpu.dot_dimension_numbers<[1], [0], [0], [1], [0, 0, 1, 1], [], []>} : vector<2x64xbf16>, vector<64x128xbf16>, vector<2x128xf32> -> vector<2x128xf32>
    %c6_i32 = arith.constant 6 : i32
    %325 = arith.addi %7, %c6_i32 : i32
    %c59_i32_132 = arith.constant 59 : i32
    %326 = arith.cmpi slt, %325, %c59_i32_132 : i32
    %cst_133 = arith.constant 0.000000e+00 : f32
    %327 = vector.broadcast %cst_133 : f32 to vector<2x128xf32>
    %328 = arith.select %326, %324, %327 : vector<2x128xf32>
    %329 = arith.addf %283, %328 : vector<2x128xf32>
    %c0_134 = arith.constant 0 : index
    %c7 = arith.constant 7 : index
    %c0_135 = arith.constant 0 : index
    %330 = vector.load %arg2[%c0_134, %c7, %c0_135] : memref<2x8x256xbf16, #tpu.memory_space<vmem>>, vector<2x1x256xbf16>
    %331 = vector.shape_cast %330 : vector<2x1x256xbf16> to vector<2x256xbf16>
    %332 = arith.extf %331 : vector<2x256xbf16> to vector<2x256xf32>
    %333 = arith.truncf %320 : vector<2x64xf32> to vector<2x64xbf16>
    %cst_136 = arith.constant dense<0.000000e+00> : vector<2x256xf32>
    %334 = tpu.matmul %333, %3, %cst_136 {dimension_numbers = #tpu.dot_dimension_numbers<[1], [0], [0], [1], [0, 0, 1, 1], [], []>} : vector<2x64xbf16>, vector<64x256xbf16>, vector<2x256xf32> -> vector<2x256xf32>
    %335 = arith.addf %332, %334 : vector<2x256xf32>
    %336 = vector.extract_strided_slice %335 {offsets = [0, 0], sizes = [2, 64], strides = [1, 1]} : vector<2x256xf32> to vector<2x64xf32>
    %cst_137 = arith.constant 5.000000e-01 : f32
    %337 = vector.broadcast %cst_137 : f32 to vector<2x64xf32>
    %338 = arith.mulf %337, %336 : vector<2x64xf32>
    %339 = math.tanh %338 : vector<2x64xf32>
    %cst_138 = arith.constant 1.000000e+00 : f32
    %340 = vector.broadcast %cst_138 : f32 to vector<2x64xf32>
    %341 = arith.addf %339, %340 : vector<2x64xf32>
    %cst_139 = arith.constant 5.000000e-01 : f32
    %342 = vector.broadcast %cst_139 : f32 to vector<2x64xf32>
    %343 = arith.mulf %342, %341 : vector<2x64xf32>
    %344 = vector.extract_strided_slice %335 {offsets = [0, 64], sizes = [2, 64], strides = [1, 1]} : vector<2x256xf32> to vector<2x64xf32>
    %cst_140 = arith.constant 5.000000e-01 : f32
    %345 = vector.broadcast %cst_140 : f32 to vector<2x64xf32>
    %346 = arith.mulf %345, %344 : vector<2x64xf32>
    %347 = math.tanh %346 : vector<2x64xf32>
    %cst_141 = arith.constant 1.000000e+00 : f32
    %348 = vector.broadcast %cst_141 : f32 to vector<2x64xf32>
    %349 = arith.addf %347, %348 : vector<2x64xf32>
    %cst_142 = arith.constant 5.000000e-01 : f32
    %350 = vector.broadcast %cst_142 : f32 to vector<2x64xf32>
    %351 = arith.mulf %350, %349 : vector<2x64xf32>
    %352 = vector.extract_strided_slice %335 {offsets = [0, 128], sizes = [2, 64], strides = [1, 1]} : vector<2x256xf32> to vector<2x64xf32>
    %353 = math.tanh %352 : vector<2x64xf32>
    %354 = vector.extract_strided_slice %335 {offsets = [0, 192], sizes = [2, 64], strides = [1, 1]} : vector<2x256xf32> to vector<2x64xf32>
    %cst_143 = arith.constant 5.000000e-01 : f32
    %355 = vector.broadcast %cst_143 : f32 to vector<2x64xf32>
    %356 = arith.mulf %355, %354 : vector<2x64xf32>
    %357 = math.tanh %356 : vector<2x64xf32>
    %cst_144 = arith.constant 1.000000e+00 : f32
    %358 = vector.broadcast %cst_144 : f32 to vector<2x64xf32>
    %359 = arith.addf %357, %358 : vector<2x64xf32>
    %cst_145 = arith.constant 5.000000e-01 : f32
    %360 = vector.broadcast %cst_145 : f32 to vector<2x64xf32>
    %361 = arith.mulf %360, %359 : vector<2x64xf32>
    %362 = arith.mulf %351, %318 : vector<2x64xf32>
    %363 = arith.mulf %343, %353 : vector<2x64xf32>
    %364 = arith.addf %362, %363 : vector<2x64xf32>
    %365 = math.tanh %364 : vector<2x64xf32>
    %366 = arith.mulf %361, %365 : vector<2x64xf32>
    %367 = arith.truncf %366 : vector<2x64xf32> to vector<2x64xbf16>
    %c7_146 = arith.constant 7 : index
    %c0_147 = arith.constant 0 : index
    %c0_148 = arith.constant 0 : index
    %368 = vector.load %arg4[%c7_146, %c0_147, %c0_148] : memref<8x64x128xbf16, #tpu.memory_space<vmem>>, vector<1x64x128xbf16>
    %369 = vector.shape_cast %368 : vector<1x64x128xbf16> to vector<64x128xbf16>
    %cst_149 = arith.constant dense<0.000000e+00> : vector<2x128xf32>
    %370 = tpu.matmul %367, %369, %cst_149 {dimension_numbers = #tpu.dot_dimension_numbers<[1], [0], [0], [1], [0, 0, 1, 1], [], []>} : vector<2x64xbf16>, vector<64x128xbf16>, vector<2x128xf32> -> vector<2x128xf32>
    %c7_i32 = arith.constant 7 : i32
    %371 = arith.addi %7, %c7_i32 : i32
    %c59_i32_150 = arith.constant 59 : i32
    %372 = arith.cmpi slt, %371, %c59_i32_150 : i32
    %cst_151 = arith.constant 0.000000e+00 : f32
    %373 = vector.broadcast %cst_151 : f32 to vector<2x128xf32>
    %374 = arith.select %372, %370, %373 : vector<2x128xf32>
    %375 = arith.addf %329, %374 : vector<2x128xf32>
    %c0_152 = arith.constant 0 : index
    %c0_153 = arith.constant 0 : index
    %376 = vector.load %arg7[%c0_152, %c0_153] : memref<2x64xf32, #tpu.memory_space<vmem>>, vector<2x64xf32>
    tpu.vector_store %arg7[%c0_152, %c0_153], %366 {strides = array<i32>} : memref<2x64xf32, #tpu.memory_space<vmem>>, vector<2x64xf32>,
    %c0_154 = arith.constant 0 : index
    %c0_155 = arith.constant 0 : index
    %377 = vector.load %arg8[%c0_154, %c0_155] : memref<2x64xf32, #tpu.memory_space<vmem>>, vector<2x64xf32>
    tpu.vector_store %arg8[%c0_154, %c0_155], %364 {strides = array<i32>} : memref<2x64xf32, #tpu.memory_space<vmem>>, vector<2x64xf32>,
    %c0_156 = arith.constant 0 : index
    %c0_157 = arith.constant 0 : index
    %378 = vector.load %arg9[%c0_156, %c0_157] : memref<2x128xf32, #tpu.memory_space<vmem>>, vector<2x128xf32>
    tpu.vector_store %arg9[%c0_156, %c0_157], %375 {strides = array<i32>} : memref<2x128xf32, #tpu.memory_space<vmem>>, vector<2x128xf32>,
    %c7_i32_158 = arith.constant 7 : i32
    %379 = arith.cmpi eq, %arg1, %c7_i32_158 : i32
    %380 = arith.extui %379 : i1 to i32
    %c0_i32_159 = arith.constant 0 : i32
    %381 = arith.cmpi ne, %380, %c0_i32_159 : i32
    scf.if %381 {
      %c0_160 = arith.constant 0 : index
      %c0_161 = arith.constant 0 : index
      %382 = vector.load %arg6[%c0_160, %c0_161] : memref<2x128xf32, #tpu.memory_space<vmem>>, vector<2x128xf32>
      tpu.vector_store %arg6[%c0_160, %c0_161], %375 {strides = array<i32>} : memref<2x128xf32, #tpu.memory_space<vmem>>, vector<2x128xf32>,
    } else {
    }
    return
  }
  func.func @transform_0(%arg0: i32, %arg1: i32) -> (i32, i32, i32) {
    %c0_i32 = arith.constant 0 : i32
    %c0_i32_0 = arith.constant 0 : i32
    return %arg0, %arg1, %c0_i32 : i32, i32, i32
  }
  func.func @transform_1(%arg0: i32, %arg1: i32) -> (i32, i32) {
    %c0_i32 = arith.constant 0 : i32
    %c0_i32_0 = arith.constant 0 : i32
    %c0_i32_1 = arith.constant 0 : i32
    return %c0_i32, %c0_i32_0 : i32, i32
  }
  func.func @transform_2(%arg0: i32, %arg1: i32) -> (i32, i32, i32) {
    %c0_i32 = arith.constant 0 : i32
    %c0_i32_0 = arith.constant 0 : i32
    %c0_i32_1 = arith.constant 0 : i32
    return %arg1, %c0_i32, %c0_i32_0 : i32, i32, i32
  }
  func.func @transform_3(%arg0: i32, %arg1: i32) -> (i32, i32) {
    %c0_i32 = arith.constant 0 : i32
    %c0_i32_0 = arith.constant 0 : i32
    %c0_i32_1 = arith.constant 0 : i32
    return %c0_i32, %c0_i32_0 : i32, i32
  }
  func.func @transform_4(%arg0: i32, %arg1: i32) -> (i32, i32) {
    %c0_i32 = arith.constant 0 : i32
    %c0_i32_0 = arith.constant 0 : i32
    return %arg0, %c0_i32 : i32, i32
  }
}

</mosaic_0001>

<llo_original>
// kernel: lstm_forward.2
$region0: #{lstm_forward.2}
  #allocation0 [shape = 'u32[]', space=smem, size = 0x4, offset = 0x4, fixed_abs, tag = 'smem constant byte address 0x4 - core index']
  #allocation1 [shape = 'u32[144,128]{1,0:T(1,128)}', space=vmem, size = 0x12000, scoped, tag = 'internal scratch']
  %s0 = inlined_call_operand.vmem [shape: bf16[118,1600], index: 0, kind: input, shape index: {}]
  %s1 = inlined_call_operand.vmem [shape: bf16[1600,256], index: 1, kind: input, shape index: {}]
  %s2 = inlined_call_operand.vmem [shape: f32[1,256], index: 2, kind: input, shape index: {}]
  %s3 = inlined_call_operand.vmem [shape: bf16[118,256], index: 3, kind: output, shape index: {}]
  %s4 = sld [smem:[#allocation0]]
  $region22: #{lstm_forward.2} parent=0
    _
  %s6 = ssub.s32 1, %s4
  %s7 = scalar_select 0, %s6, %s4
  // Predicated region
  $region2: #{lstm_forward.2} parent=0 // pred_check
    _
  $region3: #{lstm_forward.2} parent=0 // pred_check_branch
    %9 = sbr.rel (0) target = $region5
  $region4: #{lstm_forward.2} parent=0 // pred_region
    _
  $region5: #{lstm_forward.2} parent=0 // pred_fallthru
    _
  // Predicated region
  $region6: #{lstm_forward.2} parent=0 // pred_check
    _
  $region7: #{lstm_forward.2} parent=0 // pred_check_branch
    %11 = sbr.rel (0) target = $region9
  $region8: #{lstm_forward.2} parent=0 // pred_region
    _
  $region9: #{lstm_forward.2} parent=0 // pred_fallthru
    _
  // Predicated region
  $region10: #{lstm_forward.2} parent=0 // pred_check
    _
  $region11: #{lstm_forward.2} parent=0 // pred_check_branch
    %13 = sbr.rel (0) target = $region13
  $region12: #{lstm_forward.2} parent=0 // pred_region
    _
  $region13: #{lstm_forward.2} parent=0 // pred_fallthru
    _
  %v15 = vld [vmem:[%s0] sm:$0xff]
  %v16 = vld [vmem:[%s0 + $0x8] sm:$0xff]
  %v17 = vld [vmem:[%s0 + $0x10] sm:$0xff]
  %v18 = vld [vmem:[%s0 + $0x18] sm:$0xff]
  %v19 = vld [vmem:[%s0 + $0x20] sm:$0xff]
  %v20 = vld [vmem:[%s0 + $0x28] sm:$0xff]
  %v21 = vld [vmem:[%s0 + $0x30] sm:$0xf]
  %v22 = vld [vmem:[%s0 + $0x34] sm:$0xff]
  %v23 = vld [vmem:[%s0 + $0x3c] sm:$0xff]
  %v24 = vld [vmem:[%s0 + $0x44] sm:$0xff]
  %v25 = vld [vmem:[%s0 + $0x4c] sm:$0xff]
  %v26 = vld [vmem:[%s0 + $0x54] sm:$0xff]
  %v27 = vld [vmem:[%s0 + $0x5c] sm:$0xff]
  %v28 = vld [vmem:[%s0 + $0x64] sm:$0xf]
  %v29 = vld [vmem:[%s0 + $0x68] sm:$0xff]
  %v30 = vld [vmem:[%s0 + $0x70] sm:$0xff]
  %v31 = vld [vmem:[%s0 + $0x78] sm:$0xff]
  %v32 = vld [vmem:[%s0 + $0x80] sm:$0xff]
  %v33 = vld [vmem:[%s0 + $0x88] sm:$0xff]
  %v34 = vld [vmem:[%s0 + $0x90] sm:$0xff]
  %v35 = vld [vmem:[%s0 + $0x98] sm:$0xf]
  %v36 = vld [vmem:[%s0 + $0x9c] sm:$0xff]
  %v37 = vld [vmem:[%s0 + $0xa4] sm:$0xff]
  %v38 = vld [vmem:[%s0 + $0xac] sm:$0xff]
  %v39 = vld [vmem:[%s0 + $0xb4] sm:$0xff]
  %v40 = vld [vmem:[%s0 + $0xbc] sm:$0xff]
  %v41 = vld [vmem:[%s0 + $0xc4] sm:$0xff]
  %v42 = vld [vmem:[%s0 + $0xcc] sm:$0xf]
  %v43 = vld [vmem:[%s0 + $0xd0] sm:$0xff]
  %v44 = vld [vmem:[%s0 + $0xd8] sm:$0xff]
  %v45 = vld [vmem:[%s0 + $0xe0] sm:$0xff]
  %v46 = vld [vmem:[%s0 + $0xe8] sm:$0xff]
  %v47 = vld [vmem:[%s0 + $0xf0] sm:$0xff]
  %v48 = vld [vmem:[%s0 + $0xf8] sm:$0xff]
  %v49 = vld [vmem:[%s0 + $0x100] sm:$0xf]
  %v50 = vld [vmem:[%s0 + $0x104] sm:$0xff]
  %v51 = vld [vmem:[%s0 + $0x10c] sm:$0xff]
  %v52 = vld [vmem:[%s0 + $0x114] sm:$0xff]
  %v53 = vld [vmem:[%s0 + $0x11c] sm:$0xff]
  %v54 = vld [vmem:[%s0 + $0x124] sm:$0xff]
  %v55 = vld [vmem:[%s0 + $0x12c] sm:$0xff]
  %v56 = vld [vmem:[%s0 + $0x134] sm:$0xf]
  %v57 = vld [vmem:[%s0 + $0x138] sm:$0xff]
  %v58 = vld [vmem:[%s0 + $0x140] sm:$0xff]
  %v59 = vld [vmem:[%s0 + $0x148] sm:$0xff]
  %v60 = vld [vmem:[%s0 + $0x150] sm:$0xff]
  %v61 = vld [vmem:[%s0 + $0x158] sm:$0xff]
  %v62 = vld [vmem:[%s0 + $0x160] sm:$0xff]
  %v63 = vld [vmem:[%s0 + $0x168] sm:$0xf]
  %v64 = vld [vmem:[%s0 + $0x16c] sm:$0xff]
  %v65 = vld [vmem:[%s0 + $0x174] sm:$0xff]
  %v66 = vld [vmem:[%s0 + $0x17c] sm:$0xff]
  %v67 = vld [vmem:[%s0 + $0x184] sm:$0xff]
  %v68 = vld [vmem:[%s0 + $0x18c] sm:$0xff]
  %v69 = vld [vmem:[%s0 + $0x194] sm:$0xff]
  %v70 = vld [vmem:[%s0 + $0x19c] sm:$0xf]
  %v71 = vld [vmem:[%s0 + $0x1a0] sm:$0xff]
  %v72 = vld [vmem:[%s0 + $0x1a8] sm:$0xff]
  %v73 = vld [vmem:[%s0 + $0x1b0] sm:$0xff]
  %v74 = vld [vmem:[%s0 + $0x1b8] sm:$0xff]
  %v75 = vld [vmem:[%s0 + $0x1c0] sm:$0xff]
  %v76 = vld [vmem:[%s0 + $0x1c8] sm:$0xff]
  %v77 = vld [vmem:[%s0 + $0x1d0] sm:$0xf]
  %v78 = vld [vmem:[%s0 + $0x1d4] sm:$0xff]
  %v79 = vld [vmem:[%s0 + $0x1dc] sm:$0xff]
  %v80 = vld [vmem:[%s0 + $0x1e4] sm:$0xff]
  %v81 = vld [vmem:[%s0 + $0x1ec] sm:$0xff]
  %v82 = vld [vmem:[%s0 + $0x1f4] sm:$0xff]
  %v83 = vld [vmem:[%s0 + $0x1fc] sm:$0xff]
  %v84 = vld [vmem:[%s0 + $0x204] sm:$0xf]
  %v85 = vld [vmem:[%s0 + $0x208] sm:$0xff]
  %v86 = vld [vmem:[%s0 + $0x210] sm:$0xff]
  %v87 = vld [vmem:[%s0 + $0x218] sm:$0xff]
  %v88 = vld [vmem:[%s0 + $0x220] sm:$0xff]
  %v89 = vld [vmem:[%s0 + $0x228] sm:$0xff]
  %v90 = vld [vmem:[%s0 + $0x230] sm:$0xff]
  %v91 = vld [vmem:[%s0 + $0x238] sm:$0xf]
  %v92 = vld [vmem:[%s0 + $0x23c] sm:$0xff]
  %v93 = vld [vmem:[%s0 + $0x244] sm:$0xff]
  %v94 = vld [vmem:[%s0 + $0x24c] sm:$0xff]
  %v95 = vld [vmem:[%s0 + $0x254] sm:$0xff]
  %v96 = vld [vmem:[%s0 + $0x25c] sm:$0xff]
  %v97 = vld [vmem:[%s0 + $0x264] sm:$0xff]
  %v98 = vld [vmem:[%s0 + $0x26c] sm:$0xf]
  %v99 = vld [vmem:[%s0 + $0x270] sm:$0xff]
  %v100 = vld [vmem:[%s0 + $0x278] sm:$0xff]
  %v101 = vld [vmem:[%s0 + $0x280] sm:$0xff]
  %v102 = vld [vmem:[%s0 + $0x288] sm:$0xff]
  %v103 = vld [vmem:[%s0 + $0x290] sm:$0xff]
  %v104 = vld [vmem:[%s0 + $0x298] sm:$0xff]
  %v105 = vld [vmem:[%s0 + $0x2a0] sm:$0xf]
  %v106 = vld [vmem:[%s0 + $0x2a4] sm:$0xff]
  %v107 = vld [vmem:[%s0 + $0x2ac] sm:$0xff]
  %v108 = vld [vmem:[%s0 + $0x2b4] sm:$0xff]
  %v109 = vld [vmem:[%s0 + $0x2bc] sm:$0xff]
  %v110 = vld [vmem:[%s0 + $0x2c4] sm:$0xff]
  %v111 = vld [vmem:[%s0 + $0x2cc] sm:$0xff]
  %v112 = vld [vmem:[%s0 + $0x2d4] sm:$0xf]
  %v113 = vld [vmem:[%s0 + $0x2d8] sm:$0x77]
  %v114 = vld [vmem:[%s0 + $0x2e0] sm:$0x77]
  %v115 = vld [vmem:[%s0 + $0x2e8] sm:$0x77]
  %v116 = vld [vmem:[%s0 + $0x2f0] sm:$0x77]
  %v117 = vld [vmem:[%s0 + $0x2f8] sm:$0x77]
  %v118 = vld [vmem:[%s0 + $0x300] sm:$0x77]
  %v119 = vld [vmem:[%s0 + $0x308] sm:$0x7]
  %v120 = vld [vmem:[%s1] sm:$0xff]
  %v121 = vld [vmem:[%s1 + $0x8] sm:$0xff]
  %v122 = vld [vmem:[%s1 + $0x10] sm:$0xff]
  %v123 = vld [vmem:[%s1 + $0x18] sm:$0xff]
  %v124 = vld [vmem:[%s1 + $0x20] sm:$0xff]
  %v125 = vld [vmem:[%s1 + $0x28] sm:$0xff]
  %v126 = vld [vmem:[%s1 + $0x30] sm:$0xff]
  %v127 = vld [vmem:[%s1 + $0x38] sm:$0xff]
  %v128 = vld [vmem:[%s1 + $0x40] sm:$0xff]
  %v129 = vld [vmem:[%s1 + $0x48] sm:$0xff]
  %v130 = vld [vmem:[%s1 + $0x50] sm:$0xff]
  %v131 = vld [vmem:[%s1 + $0x58] sm:$0xff]
  %v132 = vld [vmem:[%s1 + $0x60] sm:$0xff]
  %v133 = vld [vmem:[%s1 + $0x68] sm:$0xff]
  %v134 = vld [vmem:[%s1 + $0x70] sm:$0xff]
  %v135 = vld [vmem:[%s1 + $0x78] sm:$0xff]
  %v136 = vld [vmem:[%s1 + $0x80] sm:$0xff]
  %v137 = vld [vmem:[%s1 + $0x88] sm:$0xff]
  %v138 = vld [vmem:[%s1 + $0x90] sm:$0xff]
  %v139 = vld [vmem:[%s1 + $0x98] sm:$0xff]
  %v140 = vld [vmem:[%s1 + $0xa0] sm:$0xff]
  %v141 = vld [vmem:[%s1 + $0xa8] sm:$0xff]
  %v142 = vld [vmem:[%s1 + $0xb0] sm:$0xff]
  %v143 = vld [vmem:[%s1 + $0xb8] sm:$0xff]
  %v144 = vld [vmem:[%s1 + $0xc0] sm:$0xff]
  %v145 = vld [vmem:[%s1 + $0xc8] sm:$0xff]
  %v146 = vld [vmem:[%s1 + $0xd0] sm:$0xff]
  %v147 = vld [vmem:[%s1 + $0xd8] sm:$0xff]
  %v148 = vld [vmem:[%s1 + $0xe0] sm:$0xff]
  %v149 = vld [vmem:[%s1 + $0xe8] sm:$0xff]
  %v150 = vld [vmem:[%s1 + $0xf0] sm:$0xff]
  %v151 = vld [vmem:[%s1 + $0xf8] sm:$0xff]
  %v152 = vld [vmem:[%s1 + $0x100] sm:$0xff]
  %v153 = vld [vmem:[%s1 + $0x108] sm:$0xff]
  %v154 = vld [vmem:[%s1 + $0x110] sm:$0xff]
  %v155 = vld [vmem:[%s1 + $0x118] sm:$0xff]
  %v156 = vld [vmem:[%s1 + $0x120] sm:$0xff]
  %v157 = vld [vmem:[%s1 + $0x128] sm:$0xff]
  %v158 = vld [vmem:[%s1 + $0x130] sm:$0xff]
  %v159 = vld [vmem:[%s1 + $0x138] sm:$0xff]
  %v160 = vld [vmem:[%s1 + $0x140] sm:$0xff]
  %v161 = vld [vmem:[%s1 + $0x148] sm:$0xff]
  %v162 = vld [vmem:[%s1 + $0x150] sm:$0xff]
  %v163 = vld [vmem:[%s1 + $0x158] sm:$0xff]
  %v164 = vld [vmem:[%s1 + $0x160] sm:$0xff]
  %v165 = vld [vmem:[%s1 + $0x168] sm:$0xff]
  %v166 = vld [vmem:[%s1 + $0x170] sm:$0xff]
  %v167 = vld [vmem:[%s1 + $0x178] sm:$0xff]
  %v168 = vld [vmem:[%s1 + $0x180] sm:$0xff]
  %v169 = vld [vmem:[%s1 + $0x188] sm:$0xff]
  %v170 = vld [vmem:[%s1 + $0x190] sm:$0xff]
  %v171 = vld [vmem:[%s1 + $0x198] sm:$0xff]
  %v172 = vld [vmem:[%s1 + $0x1a0] sm:$0xff]
  %v173 = vld [vmem:[%s1 + $0x1a8] sm:$0xff]
  %v174 = vld [vmem:[%s1 + $0x1b0] sm:$0xff]
  %v175 = vld [vmem:[%s1 + $0x1b8] sm:$0xff]
  %v176 = vld [vmem:[%s1 + $0x1c0] sm:$0xff]
  %v177 = vld [vmem:[%s1 + $0x1c8] sm:$0xff]
  %v178 = vld [vmem:[%s1 + $0x1d0] sm:$0xff]
  %v179 = vld [vmem:[%s1 + $0x1d8] sm:$0xff]
  %v180 = vld [vmem:[%s1 + $0x1e0] sm:$0xff]
  %v181 = vld [vmem:[%s1 + $0x1e8] sm:$0xff]
  %v182 = vld [vmem:[%s1 + $0x1f0] sm:$0xff]
  %v183 = vld [vmem:[%s1 + $0x1f8] sm:$0xff]
  %v184 = vld [vmem:[%s1 + $0x200] sm:$0xff]
  %v185 = vld [vmem:[%s1 + $0x208] sm:$0xff]
  %v186 = vld [vmem:[%s1 + $0x210] sm:$0xff]
  %v187 = vld [vmem:[%s1 + $0x218] sm:$0xff]
  %v188 = vld [vmem:[%s1 + $0x220] sm:$0xff]
  %v189 = vld [vmem:[%s1 + $0x228] sm:$0xff]
  %v190 = vld [vmem:[%s1 + $0x230] sm:$0xff]
  %v191 = vld [vmem:[%s1 + $0x238] sm:$0xff]
  %v192 = vld [vmem:[%s1 + $0x240] sm:$0xff]
  %v193 = vld [vmem:[%s1 + $0x248] sm:$0xff]
  %v194 = vld [vmem:[%s1 + $0x250] sm:$0xff]
  %v195 = vld [vmem:[%s1 + $0x258] sm:$0xff]
  %v196 = vld [vmem:[%s1 + $0x260] sm:$0xff]
  %v197 = vld [vmem:[%s1 + $0x268] sm:$0xff]
  %v198 = vld [vmem:[%s1 + $0x270] sm:$0xff]
  %v199 = vld [vmem:[%s1 + $0x278] sm:$0xff]
  %v200 = vld [vmem:[%s1 + $0x280] sm:$0xff]
  %v201 = vld [vmem:[%s1 + $0x288] sm:$0xff]
  %v202 = vld [vmem:[%s1 + $0x290] sm:$0xff]
  %v203 = vld [vmem:[%s1 + $0x298] sm:$0xff]
  %v204 = vld [vmem:[%s1 + $0x2a0] sm:$0xff]
  %v205 = vld [vmem:[%s1 + $0x2a8] sm:$0xff]
  %v206 = vld [vmem:[%s1 + $0x2b0] sm:$0xff]
  %v207 = vld [vmem:[%s1 + $0x2b8] sm:$0xff]
  %v208 = vld [vmem:[%s1 + $0x2c0] sm:$0xff]
  %v209 = vld [vmem:[%s1 + $0x2c8] sm:$0xff]
  %v210 = vld [vmem:[%s1 + $0x2d0] sm:$0xff]
  %v211 = vld [vmem:[%s1 + $0x2d8] sm:$0xff]
  %v212 = vld [vmem:[%s1 + $0x2e0] sm:$0xff]
  %v213 = vld [vmem:[%s1 + $0x2e8] sm:$0xff]
  %v214 = vld [vmem:[%s1 + $0x2f0] sm:$0xff]
  %v215 = vld [vmem:[%s1 + $0x2f8] sm:$0xff]
  %v216 = vld [vmem:[%s1 + $0x300] sm:$0xff]
  %v217 = vld [vmem:[%s1 + $0x308] sm:$0xff]
  %v218 = vld [vmem:[%s1 + $0x310] sm:$0xff]
  %v219 = vld [vmem:[%s1 + $0x318] sm:$0xff]
  %v220 = vld [vmem:[%s1 + $0x320] sm:$0xff]
  %v221 = vld [vmem:[%s1 + $0x328] sm:$0xff]
  %v222 = vld [vmem:[%s1 + $0x330] sm:$0xff]
  %v223 = vld [vmem:[%s1 + $0x338] sm:$0xff]
  %v224 = vld [vmem:[%s1 + $0x340] sm:$0xff]
  %v225 = vld [vmem:[%s1 + $0x348] sm:$0xff]
  %v226 = vld [vmem:[%s1 + $0x350] sm:$0xff]
  %v227 = vld [vmem:[%s1 + $0x358] sm:$0xff]
  %v228 = vld [vmem:[%s1 + $0x360] sm:$0xff]
  %v229 = vld [vmem:[%s1 + $0x368] sm:$0xff]
  %v230 = vld [vmem:[%s1 + $0x370] sm:$0xff]
  %v231 = vld [vmem:[%s1 + $0x378] sm:$0xff]
  %v232 = vld [vmem:[%s1 + $0x380] sm:$0xff]
  %v233 = vld [vmem:[%s1 + $0x388] sm:$0xff]
  %v234 = vld [vmem:[%s1 + $0x390] sm:$0xff]
  %v235 = vld [vmem:[%s1 + $0x398] sm:$0xff]
  %v236 = vld [vmem:[%s1 + $0x3a0] sm:$0xff]
  %v237 = vld [vmem:[%s1 + $0x3a8] sm:$0xff]
  %v238 = vld [vmem:[%s1 + $0x3b0] sm:$0xff]
  %v239 = vld [vmem:[%s1 + $0x3b8] sm:$0xff]
  %v240 = vld [vmem:[%s1 + $0x3c0] sm:$0xff]
  %v241 = vld [vmem:[%s1 + $0x3c8] sm:$0xff]
  %v242 = vld [vmem:[%s1 + $0x3d0] sm:$0xff]
  %v243 = vld [vmem:[%s1 + $0x3d8] sm:$0xff]
  %v244 = vld [vmem:[%s1 + $0x3e0] sm:$0xff]
  %v245 = vld [vmem:[%s1 + $0x3e8] sm:$0xff]
  %v246 = vld [vmem:[%s1 + $0x3f0] sm:$0xff]
  %v247 = vld [vmem:[%s1 + $0x3f8] sm:$0xff]
  %v248 = vld [vmem:[%s1 + $0x400] sm:$0xff]
  %v249 = vld [vmem:[%s1 + $0x408] sm:$0xff]
  %v250 = vld [vmem:[%s1 + $0x410] sm:$0xff]
  %v251 = vld [vmem:[%s1 + $0x418] sm:$0xff]
  %v252 = vld [vmem:[%s1 + $0x420] sm:$0xff]
  %v253 = vld [vmem:[%s1 + $0x428] sm:$0xff]
  %v254 = vld [vmem:[%s1 + $0x430] sm:$0xff]
  %v255 = vld [vmem:[%s1 + $0x438] sm:$0xff]
  %v256 = vld [vmem:[%s1 + $0x440] sm:$0xff]
  %v257 = vld [vmem:[%s1 + $0x448] sm:$0xff]
  %v258 = vld [vmem:[%s1 + $0x450] sm:$0xff]
  %v259 = vld [vmem:[%s1 + $0x458] sm:$0xff]
  %v260 = vld [vmem:[%s1 + $0x460] sm:$0xff]
  %v261 = vld [vmem:[%s1 + $0x468] sm:$0xff]
  %v262 = vld [vmem:[%s1 + $0x470] sm:$0xff]
  %v263 = vld [vmem:[%s1 + $0x478] sm:$0xff]
  %v264 = vld [vmem:[%s1 + $0x480] sm:$0xff]
  %v265 = vld [vmem:[%s1 + $0x488] sm:$0xff]
  %v266 = vld [vmem:[%s1 + $0x490] sm:$0xff]
  %v267 = vld [vmem:[%s1 + $0x498] sm:$0xff]
  %v268 = vld [vmem:[%s1 + $0x4a0] sm:$0xff]
  %v269 = vld [vmem:[%s1 + $0x4a8] sm:$0xff]
  %v270 = vld [vmem:[%s1 + $0x4b0] sm:$0xff]
  %v271 = vld [vmem:[%s1 + $0x4b8] sm:$0xff]
  %v272 = vld [vmem:[%s1 + $0x4c0] sm:$0xff]
  %v273 = vld [vmem:[%s1 + $0x4c8] sm:$0xff]
  %v274 = vld [vmem:[%s1 + $0x4d0] sm:$0xff]
  %v275 = vld [vmem:[%s1 + $0x4d8] sm:$0xff]
  %v276 = vld [vmem:[%s1 + $0x4e0] sm:$0xff]
  %v277 = vld [vmem:[%s1 + $0x4e8] sm:$0xff]
  %v278 = vld [vmem:[%s1 + $0x4f0] sm:$0xff]
  %v279 = vld [vmem:[%s1 + $0x4f8] sm:$0xff]
  %v280 = vld [vmem:[%s1 + $0x500] sm:$0xff]
  %v281 = vld [vmem:[%s1 + $0x508] sm:$0xff]
  %v282 = vld [vmem:[%s1 + $0x510] sm:$0xff]
  %v283 = vld [vmem:[%s1 + $0x518] sm:$0xff]
  %v284 = vld [vmem:[%s1 + $0x520] sm:$0xff]
  %v285 = vld [vmem:[%s1 + $0x528] sm:$0xff]
  %v286 = vld [vmem:[%s1 + $0x530] sm:$0xff]
  %v287 = vld [vmem:[%s1 + $0x538] sm:$0xff]
  %v288 = vld [vmem:[%s1 + $0x540] sm:$0xff]
  %v289 = vld [vmem:[%s1 + $0x548] sm:$0xff]
  %v290 = vld [vmem:[%s1 + $0x550] sm:$0xff]
  %v291 = vld [vmem:[%s1 + $0x558] sm:$0xff]
  %v292 = vld [vmem:[%s1 + $0x560] sm:$0xff]
  %v293 = vld [vmem:[%s1 + $0x568] sm:$0xff]
  %v294 = vld [vmem:[%s1 + $0x570] sm:$0xff]
  %v295 = vld [vmem:[%s1 + $0x578] sm:$0xff]
  %v296 = vld [vmem:[%s1 + $0x580] sm:$0xff]
  %v297 = vld [vmem:[%s1 + $0x588] sm:$0xff]
  %v298 = vld [vmem:[%s1 + $0x590] sm:$0xff]
  %v299 = vld [vmem:[%s1 + $0x598] sm:$0xff]
  %v300 = vld [vmem:[%s1 + $0x5a0] sm:$0xff]
  %v301 = vld [vmem:[%s1 + $0x5a8] sm:$0xff]
  %v302 = vld [vmem:[%s1 + $0x5b0] sm:$0xff]
  %v303 = vld [vmem:[%s1 + $0x5b8] sm:$0xff]
  %v304 = vld [vmem:[%s1 + $0x5c0] sm:$0xff]
  %v305 = vld [vmem:[%s1 + $0x5c8] sm:$0xff]
  %v306 = vld [vmem:[%s1 + $0x5d0] sm:$0xff]
  %v307 = vld [vmem:[%s1 + $0x5d8] sm:$0xff]
  %v308 = vld [vmem:[%s1 + $0x5e0] sm:$0xff]
  %v309 = vld [vmem:[%s1 + $0x5e8] sm:$0xff]
  %v310 = vld [vmem:[%s1 + $0x5f0] sm:$0xff]
  %v311 = vld [vmem:[%s1 + $0x5f8] sm:$0xff]
  %v312 = vld [vmem:[%s1 + $0x600] sm:$0xff]
  %v313 = vld [vmem:[%s1 + $0x608] sm:$0xff]
  %v314 = vld [vmem:[%s1 + $0x610] sm:$0xff]
  %v315 = vld [vmem:[%s1 + $0x618] sm:$0xff]
  %v316 = vld [vmem:[%s1 + $0x620] sm:$0xff]
  %v317 = vld [vmem:[%s1 + $0x628] sm:$0xff]
  %v318 = vld [vmem:[%s1 + $0x630] sm:$0xff]
  %v319 = vld [vmem:[%s1 + $0x638] sm:$0xff]
  %v320 = vld [vmem:[%s2] sm:$0x3]
  %v322 = vlaneseq
  %v323 = vshrl.u32 %v322, 7
  %v324 = vsub.s32 0, %v323
  %v325 = vrot.slane %v320, %v324
  %v326 = vlaneseq
  %v327 = vshrl.u32 %v326, 7
  %v328 = vsub.s32 1, %v327
  %v329 = vrot.slane %v320, %v328
  %v437 = vunpack.c.l.b16 %v15
  %v438 = vunpack.c.h.b16 %v15
  %v439 = vunpack.c.l.b16 %v16
  %v440 = vunpack.c.h.b16 %v16
  %v441 = vunpack.c.l.b16 %v17
  %v442 = vunpack.c.h.b16 %v17
  %v443 = vunpack.c.l.b16 %v18
  %v444 = vunpack.c.h.b16 %v18
  %v445 = vunpack.c.l.b16 %v19
  %v446 = vunpack.c.h.b16 %v19
  %v447 = vunpack.c.l.b16 %v20
  %v448 = vunpack.c.h.b16 %v20
  %v449 = vunpack.c.l.b16 %v21
  %v450 = vunpack.c.l.b16 %v22
  %v451 = vunpack.c.h.b16 %v22
  %v452 = vunpack.c.l.b16 %v23
  %v453 = vunpack.c.h.b16 %v23
  %v454 = vunpack.c.l.b16 %v24
  %v455 = vunpack.c.h.b16 %v24
  %v456 = vunpack.c.l.b16 %v25
  %v457 = vunpack.c.h.b16 %v25
  %v458 = vunpack.c.l.b16 %v26
  %v459 = vunpack.c.h.b16 %v26
  %v460 = vunpack.c.l.b16 %v27
  %v461 = vunpack.c.h.b16 %v27
  %v462 = vunpack.c.l.b16 %v28
  %v463 = vunpack.c.l.b16 %v29
  %v464 = vunpack.c.h.b16 %v29
  %v465 = vunpack.c.l.b16 %v30
  %v466 = vunpack.c.h.b16 %v30
  %v467 = vunpack.c.l.b16 %v31
  %v468 = vunpack.c.h.b16 %v31
  %v469 = vunpack.c.l.b16 %v32
  %v470 = vunpack.c.h.b16 %v32
  %v471 = vunpack.c.l.b16 %v33
  %v472 = vunpack.c.h.b16 %v33
  %v473 = vunpack.c.l.b16 %v34
  %v474 = vunpack.c.h.b16 %v34
  %v475 = vunpack.c.l.b16 %v35
  %v476 = vunpack.c.l.b16 %v36
  %v477 = vunpack.c.h.b16 %v36
  %v478 = vunpack.c.l.b16 %v37
  %v479 = vunpack.c.h.b16 %v37
  %v480 = vunpack.c.l.b16 %v38
  %v481 = vunpack.c.h.b16 %v38
  %v482 = vunpack.c.l.b16 %v39
  %v483 = vunpack.c.h.b16 %v39
  %v484 = vunpack.c.l.b16 %v40
  %v485 = vunpack.c.h.b16 %v40
  %v486 = vunpack.c.l.b16 %v41
  %v487 = vunpack.c.h.b16 %v41
  %v488 = vunpack.c.l.b16 %v42
  %v489 = vunpack.c.l.b16 %v43
  %v490 = vunpack.c.h.b16 %v43
  %v491 = vunpack.c.l.b16 %v44
  %v492 = vunpack.c.h.b16 %v44
  %v493 = vunpack.c.l.b16 %v45
  %v494 = vunpack.c.h.b16 %v45
  %v495 = vunpack.c.l.b16 %v46
  %v496 = vunpack.c.h.b16 %v46
  %v497 = vunpack.c.l.b16 %v47
  %v498 = vunpack.c.h.b16 %v47
  %v499 = vunpack.c.l.b16 %v48
  %v500 = vunpack.c.h.b16 %v48
  %v501 = vunpack.c.l.b16 %v49
  %v502 = vunpack.c.l.b16 %v50
  %v503 = vunpack.c.h.b16 %v50
  %v504 = vunpack.c.l.b16 %v51
  %v505 = vunpack.c.h.b16 %v51
  %v506 = vunpack.c.l.b16 %v52
  %v507 = vunpack.c.h.b16 %v52
  %v508 = vunpack.c.l.b16 %v53
  %v509 = vunpack.c.h.b16 %v53
  %v510 = vunpack.c.l.b16 %v54
  %v511 = vunpack.c.h.b16 %v54
  %v512 = vunpack.c.l.b16 %v55
  %v513 = vunpack.c.h.b16 %v55
  %v514 = vunpack.c.l.b16 %v56
  %v515 = vunpack.c.l.b16 %v57
  %v516 = vunpack.c.h.b16 %v57
  %v517 = vunpack.c.l.b16 %v58
  %v518 = vunpack.c.h.b16 %v58
  %v519 = vunpack.c.l.b16 %v59
  %v520 = vunpack.c.h.b16 %v59
  %v521 = vunpack.c.l.b16 %v60
  %v522 = vunpack.c.h.b16 %v60
  %v523 = vunpack.c.l.b16 %v61
  %v524 = vunpack.c.h.b16 %v61
  %v525 = vunpack.c.l.b16 %v62
  %v526 = vunpack.c.h.b16 %v62
  %v527 = vunpack.c.l.b16 %v63
  %v528 = vunpack.c.l.b16 %v64
  %v529 = vunpack.c.h.b16 %v64
  %v530 = vunpack.c.l.b16 %v65
  %v531 = vunpack.c.h.b16 %v65
  %v532 = vunpack.c.l.b16 %v66
  %v533 = vunpack.c.h.b16 %v66
  %v534 = vunpack.c.l.b16 %v67
  %v535 = vunpack.c.h.b16 %v67
  %v536 = vunpack.c.l.b16 %v68
  %v537 = vunpack.c.h.b16 %v68
  %v538 = vunpack.c.l.b16 %v69
  %v539 = vunpack.c.h.b16 %v69
  %v540 = vunpack.c.l.b16 %v70
  %v541 = vunpack.c.l.b16 %v71
  %v542 = vunpack.c.h.b16 %v71
  %v543 = vunpack.c.l.b16 %v72
  %v544 = vunpack.c.h.b16 %v72
  %v545 = vunpack.c.l.b16 %v73
  %v546 = vunpack.c.h.b16 %v73
  %v547 = vunpack.c.l.b16 %v74
  %v548 = vunpack.c.h.b16 %v74
  %v549 = vunpack.c.l.b16 %v75
  %v550 = vunpack.c.h.b16 %v75
  %v551 = vunpack.c.l.b16 %v76
  %v552 = vunpack.c.h.b16 %v76
  %v553 = vunpack.c.l.b16 %v77
  %v554 = vunpack.c.l.b16 %v78
  %v555 = vunpack.c.h.b16 %v78
  %v556 = vunpack.c.l.b16 %v79
  %v557 = vunpack.c.h.b16 %v79
  %v558 = vunpack.c.l.b16 %v80
  %v559 = vunpack.c.h.b16 %v80
  %v560 = vunpack.c.l.b16 %v81
  %v561 = vunpack.c.h.b16 %v81
  %v562 = vunpack.c.l.b16 %v82
  %v563 = vunpack.c.h.b16 %v82
  %v564 = vunpack.c.l.b16 %v83
  %v565 = vunpack.c.h.b16 %v83
  %v566 = vunpack.c.l.b16 %v84
  %v567 = vunpack.c.l.b16 %v85
  %v568 = vunpack.c.h.b16 %v85
  %v569 = vunpack.c.l.b16 %v86
  %v570 = vunpack.c.h.b16 %v86
  %v571 = vunpack.c.l.b16 %v87
  %v572 = vunpack.c.h.b16 %v87
  %v573 = vunpack.c.l.b16 %v88
  %v574 = vunpack.c.h.b16 %v88
  %v575 = vunpack.c.l.b16 %v89
  %v576 = vunpack.c.h.b16 %v89
  %v577 = vunpack.c.l.b16 %v90
  %v578 = vunpack.c.h.b16 %v90
  %v579 = vunpack.c.l.b16 %v91
  %v580 = vunpack.c.l.b16 %v92
  %v581 = vunpack.c.h.b16 %v92
  %v582 = vunpack.c.l.b16 %v93
  %v583 = vunpack.c.h.b16 %v93
  %v584 = vunpack.c.l.b16 %v94
  %v585 = vunpack.c.h.b16 %v94
  %v586 = vunpack.c.l.b16 %v95
  %v587 = vunpack.c.h.b16 %v95
  %v588 = vunpack.c.l.b16 %v96
  %v589 = vunpack.c.h.b16 %v96
  %v590 = vunpack.c.l.b16 %v97
  %v591 = vunpack.c.h.b16 %v97
  %v592 = vunpack.c.l.b16 %v98
  %v593 = vunpack.c.l.b16 %v99
  %v594 = vunpack.c.h.b16 %v99
  %v595 = vunpack.c.l.b16 %v100
  %v596 = vunpack.c.h.b16 %v100
  %v597 = vunpack.c.l.b16 %v101
  %v598 = vunpack.c.h.b16 %v101
  %v599 = vunpack.c.l.b16 %v102
  %v600 = vunpack.c.h.b16 %v102
  %v601 = vunpack.c.l.b16 %v103
  %v602 = vunpack.c.h.b16 %v103
  %v603 = vunpack.c.l.b16 %v104
  %v604 = vunpack.c.h.b16 %v104
  %v605 = vunpack.c.l.b16 %v105
  %v606 = vunpack.c.l.b16 %v106
  %v607 = vunpack.c.h.b16 %v106
  %v608 = vunpack.c.l.b16 %v107
  %v609 = vunpack.c.h.b16 %v107
  %v610 = vunpack.c.l.b16 %v108
  %v611 = vunpack.c.h.b16 %v108
  %v612 = vunpack.c.l.b16 %v109
  %v613 = vunpack.c.h.b16 %v109
  %v614 = vunpack.c.l.b16 %v110
  %v615 = vunpack.c.h.b16 %v110
  %v616 = vunpack.c.l.b16 %v111
  %v617 = vunpack.c.h.b16 %v111
  %v618 = vunpack.c.l.b16 %v112
  %v619 = vunpack.c.l.b16 %v113
  %v620 = vunpack.c.h.b16 %v113
  %v621 = vunpack.c.l.b16 %v114
  %v622 = vunpack.c.h.b16 %v114
  %v623 = vunpack.c.l.b16 %v115
  %v624 = vunpack.c.h.b16 %v115
  %v625 = vunpack.c.l.b16 %v116
  %v626 = vunpack.c.h.b16 %v116
  %v627 = vunpack.c.l.b16 %v117
  %v628 = vunpack.c.h.b16 %v117
  %v629 = vunpack.c.l.b16 %v118
  %v630 = vunpack.c.h.b16 %v118
  %v631 = vunpack.c.l.b16 %v119
  %v632 = vpack.c.b16 %v450, %v437
  %v633 = vpack.c.b16 %v451, %v438
  %v634 = vpack.c.b16 %v452, %v439
  %v635 = vpack.c.b16 %v453, %v440
  %v636 = vpack.c.b16 %v454, %v441
  %v637 = vpack.c.b16 %v455, %v442
  %v638 = vpack.c.b16 %v456, %v443
  %v639 = vpack.c.b16 %v457, %v444
  %v640 = vpack.c.b16 %v458, %v445
  %v641 = vpack.c.b16 %v459, %v446
  %v642 = vpack.c.b16 %v460, %v447
  %v643 = vpack.c.b16 %v461, %v448
  %v644 = vpack.c.b16 %v462, %v449
  %v645 = vpack.c.b16 %v476, %v463
  %v646 = vpack.c.b16 %v477, %v464
  %v647 = vpack.c.b16 %v478, %v465
  %v648 = vpack.c.b16 %v479, %v466
  %v649 = vpack.c.b16 %v480, %v467
  %v650 = vpack.c.b16 %v481, %v468
  %v651 = vpack.c.b16 %v482, %v469
  %v652 = vpack.c.b16 %v483, %v470
  %v653 = vpack.c.b16 %v484, %v471
  %v654 = vpack.c.b16 %v485, %v472
  %v655 = vpack.c.b16 %v486, %v473
  %v656 = vpack.c.b16 %v487, %v474
  %v657 = vpack.c.b16 %v488, %v475
  %v658 = vpack.c.b16 %v502, %v489
  %v659 = vpack.c.b16 %v503, %v490
  %v660 = vpack.c.b16 %v504, %v491
  %v661 = vpack.c.b16 %v505, %v492
  %v662 = vpack.c.b16 %v506, %v493
  %v663 = vpack.c.b16 %v507, %v494
  %v664 = vpack.c.b16 %v508, %v495
  %v665 = vpack.c.b16 %v509, %v496
  %v666 = vpack.c.b16 %v510, %v497
  %v667 = vpack.c.b16 %v511, %v498
  %v668 = vpack.c.b16 %v512, %v499
  %v669 = vpack.c.b16 %v513, %v500
  %v670 = vpack.c.b16 %v514, %v501
  %v671 = vpack.c.b16 %v528, %v515
  %v672 = vpack.c.b16 %v529, %v516
  %v673 = vpack.c.b16 %v530, %v517
  %v674 = vpack.c.b16 %v531, %v518
  %v675 = vpack.c.b16 %v532, %v519
  %v676 = vpack.c.b16 %v533, %v520
  %v677 = vpack.c.b16 %v534, %v521
  %v678 = vpack.c.b16 %v535, %v522
  %v679 = vpack.c.b16 %v536, %v523
  %v680 = vpack.c.b16 %v537, %v524
  %v681 = vpack.c.b16 %v538, %v525
  %v682 = vpack.c.b16 %v539, %v526
  %v683 = vpack.c.b16 %v540, %v527
  %v684 = vpack.c.b16 %v554, %v541
  %v685 = vpack.c.b16 %v555, %v542
  %v686 = vpack.c.b16 %v556, %v543
  %v687 = vpack.c.b16 %v557, %v544
  %v688 = vpack.c.b16 %v558, %v545
  %v689 = vpack.c.b16 %v559, %v546
  %v690 = vpack.c.b16 %v560, %v547
  %v691 = vpack.c.b16 %v561, %v548
  %v692 = vpack.c.b16 %v562, %v549
  %v693 = vpack.c.b16 %v563, %v550
  %v694 = vpack.c.b16 %v564, %v551
  %v695 = vpack.c.b16 %v565, %v552
  %v696 = vpack.c.b16 %v566, %v553
  %v697 = vpack.c.b16 %v580, %v567
  %v698 = vpack.c.b16 %v581, %v568
  %v699 = vpack.c.b16 %v582, %v569
  %v700 = vpack.c.b16 %v583, %v570
  %v701 = vpack.c.b16 %v584, %v571
  %v702 = vpack.c.b16 %v585, %v572
  %v703 = vpack.c.b16 %v586, %v573
  %v704 = vpack.c.b16 %v587, %v574
  %v705 = vpack.c.b16 %v588, %v575
  %v706 = vpack.c.b16 %v589, %v576
  %v707 = vpack.c.b16 %v590, %v577
  %v708 = vpack.c.b16 %v591, %v578
  %v709 = vpack.c.b16 %v592, %v579
  %v710 = vpack.c.b16 %v606, %v593
  %v711 = vpack.c.b16 %v607, %v594
  %v712 = vpack.c.b16 %v608, %v595
  %v713 = vpack.c.b16 %v609, %v596
  %v714 = vpack.c.b16 %v610, %v597
  %v715 = vpack.c.b16 %v611, %v598
  %v716 = vpack.c.b16 %v612, %v599
  %v717 = vpack.c.b16 %v613, %v600
  %v718 = vpack.c.b16 %v614, %v601
  %v719 = vpack.c.b16 %v615, %v602
  %v720 = vpack.c.b16 %v616, %v603
  %v721 = vpack.c.b16 %v617, %v604
  %v722 = vpack.c.b16 %v618, %v605
  %v723 = vpack.c.b16 %v619, %v619
  %v724 = vpack.c.b16 %v620, %v620
  %v725 = vpack.c.b16 %v621, %v621
  %v726 = vpack.c.b16 %v622, %v622
  %v727 = vpack.c.b16 %v623, %v623
  %v728 = vpack.c.b16 %v624, %v624
  %v729 = vpack.c.b16 %v625, %v625
  %v730 = vpack.c.b16 %v626, %v626
  %v731 = vpack.c.b16 %v627, %v627
  %v732 = vpack.c.b16 %v628, %v628
  %v733 = vpack.c.b16 %v629, %v629
  %v734 = vpack.c.b16 %v630, %v630
  %v735 = vpack.c.b16 %v631, %v631
  %v1032 = vunpack.c.l.b16 %v120
  %v1033 = vunpack.c.h.b16 %v120
  %v1034 = vunpack.c.l.b16 %v121
  %v1035 = vunpack.c.h.b16 %v121
  %v1036 = vunpack.c.l.b16 %v122
  %v1037 = vunpack.c.h.b16 %v122
  %v1038 = vunpack.c.l.b16 %v123
  %v1039 = vunpack.c.h.b16 %v123
  %v1040 = vunpack.c.l.b16 %v124
  %v1041 = vunpack.c.h.b16 %v124
  %v1042 = vunpack.c.l.b16 %v125
  %v1043 = vunpack.c.h.b16 %v125
  %v1044 = vunpack.c.l.b16 %v126
  %v1045 = vunpack.c.h.b16 %v126
  %v1046 = vunpack.c.l.b16 %v127
  %v1047 = vunpack.c.h.b16 %v127
  %v1048 = vunpack.c.l.b16 %v128
  %v1049 = vunpack.c.h.b16 %v128
  %v1050 = vunpack.c.l.b16 %v129
  %v1051 = vunpack.c.h.b16 %v129
  %v1052 = vunpack.c.l.b16 %v130
  %v1053 = vunpack.c.h.b16 %v130
  %v1054 = vunpack.c.l.b16 %v131
  %v1055 = vunpack.c.h.b16 %v131
  %v1056 = vunpack.c.l.b16 %v132
  %v1057 = vunpack.c.h.b16 %v132
  %v1058 = vunpack.c.l.b16 %v133
  %v1059 = vunpack.c.h.b16 %v133
  %v1060 = vunpack.c.l.b16 %v134
  %v1061 = vunpack.c.h.b16 %v134
  %v1062 = vunpack.c.l.b16 %v135
  %v1063 = vunpack.c.h.b16 %v135
  %v1064 = vunpack.c.l.b16 %v136
  %v1065 = vunpack.c.h.b16 %v136
  %v1066 = vunpack.c.l.b16 %v137
  %v1067 = vunpack.c.h.b16 %v137
  %v1068 = vunpack.c.l.b16 %v138
  %v1069 = vunpack.c.h.b16 %v138
  %v1070 = vunpack.c.l.b16 %v139
  %v1071 = vunpack.c.h.b16 %v139
  %v1072 = vunpack.c.l.b16 %v140
  %v1073 = vunpack.c.h.b16 %v140
  %v1074 = vunpack.c.l.b16 %v141
  %v1075 = vunpack.c.h.b16 %v141
  %v1076 = vunpack.c.l.b16 %v142
  %v1077 = vunpack.c.h.b16 %v142
  %v1078 = vunpack.c.l.b16 %v143
  %v1079 = vunpack.c.h.b16 %v143
  %v1080 = vunpack.c.l.b16 %v144
  %v1081 = vunpack.c.h.b16 %v144
  %v1082 = vunpack.c.l.b16 %v145
  %v1083 = vunpack.c.h.b16 %v145
  %v1084 = vunpack.c.l.b16 %v146
  %v1085 = vunpack.c.h.b16 %v146
  %v1086 = vunpack.c.l.b16 %v147
  %v1087 = vunpack.c.h.b16 %v147
  %v1088 = vunpack.c.l.b16 %v148
  %v1089 = vunpack.c.h.b16 %v148
  %v1090 = vunpack.c.l.b16 %v149
  %v1091 = vunpack.c.h.b16 %v149
  %v1092 = vunpack.c.l.b16 %v150
  %v1093 = vunpack.c.h.b16 %v150
  %v1094 = vunpack.c.l.b16 %v151
  %v1095 = vunpack.c.h.b16 %v151
  %v1096 = vunpack.c.l.b16 %v152
  %v1097 = vunpack.c.h.b16 %v152
  %v1098 = vunpack.c.l.b16 %v153
  %v1099 = vunpack.c.h.b16 %v153
  %v1100 = vunpack.c.l.b16 %v154
  %v1101 = vunpack.c.h.b16 %v154
  %v1102 = vunpack.c.l.b16 %v155
  %v1103 = vunpack.c.h.b16 %v155
  %v1104 = vunpack.c.l.b16 %v156
  %v1105 = vunpack.c.h.b16 %v156
  %v1106 = vunpack.c.l.b16 %v157
  %v1107 = vunpack.c.h.b16 %v157
  %v1108 = vunpack.c.l.b16 %v158
  %v1109 = vunpack.c.h.b16 %v158
  %v1110 = vunpack.c.l.b16 %v159
  %v1111 = vunpack.c.h.b16 %v159
  %v1112 = vunpack.c.l.b16 %v160
  %v1113 = vunpack.c.h.b16 %v160
  %v1114 = vunpack.c.l.b16 %v161
  %v1115 = vunpack.c.h.b16 %v161
  %v1116 = vunpack.c.l.b16 %v162
  %v1117 = vunpack.c.h.b16 %v162
  %v1118 = vunpack.c.l.b16 %v163
  %v1119 = vunpack.c.h.b16 %v163
  %v1120 = vunpack.c.l.b16 %v164
  %v1121 = vunpack.c.h.b16 %v164
  %v1122 = vunpack.c.l.b16 %v165
  %v1123 = vunpack.c.h.b16 %v165
  %v1124 = vunpack.c.l.b16 %v166
  %v1125 = vunpack.c.h.b16 %v166
  %v1126 = vunpack.c.l.b16 %v167
  %v1127 = vunpack.c.h.b16 %v167
  %v1128 = vunpack.c.l.b16 %v168
  %v1129 = vunpack.c.h.b16 %v168
  %v1130 = vunpack.c.l.b16 %v169
  %v1131 = vunpack.c.h.b16 %v169
  %v1132 = vunpack.c.l.b16 %v170
  %v1133 = vunpack.c.h.b16 %v170
  %v1134 = vunpack.c.l.b16 %v171
  %v1135 = vunpack.c.h.b16 %v171
  %v1136 = vunpack.c.l.b16 %v172
  %v1137 = vunpack.c.h.b16 %v172
  %v1138 = vunpack.c.l.b16 %v173
  %v1139 = vunpack.c.h.b16 %v173
  %v1140 = vunpack.c.l.b16 %v174
  %v1141 = vunpack.c.h.b16 %v174
  %v1142 = vunpack.c.l.b16 %v175
  %v1143 = vunpack.c.h.b16 %v175
  %v1144 = vunpack.c.l.b16 %v176
  %v1145 = vunpack.c.h.b16 %v176
  %v1146 = vunpack.c.l.b16 %v177
  %v1147 = vunpack.c.h.b16 %v177
  %v1148 = vunpack.c.l.b16 %v178
  %v1149 = vunpack.c.h.b16 %v178
  %v1150 = vunpack.c.l.b16 %v179
  %v1151 = vunpack.c.h.b16 %v179
  %v1152 = vunpack.c.l.b16 %v180
  %v1153 = vunpack.c.h.b16 %v180
  %v1154 = vunpack.c.l.b16 %v181
  %v1155 = vunpack.c.h.b16 %v181
  %v1156 = vunpack.c.l.b16 %v182
  %v1157 = vunpack.c.h.b16 %v182
  %v1158 = vunpack.c.l.b16 %v183
  %v1159 = vunpack.c.h.b16 %v183
  %v1160 = vunpack.c.l.b16 %v184
  %v1161 = vunpack.c.h.b16 %v184
  %v1162 = vunpack.c.l.b16 %v185
  %v1163 = vunpack.c.h.b16 %v185
  %v1164 = vunpack.c.l.b16 %v186
  %v1165 = vunpack.c.h.b16 %v186
  %v1166 = vunpack.c.l.b16 %v187
  %v1167 = vunpack.c.h.b16 %v187
  %v1168 = vunpack.c.l.b16 %v188
  %v1169 = vunpack.c.h.b16 %v188
  %v1170 = vunpack.c.l.b16 %v189
  %v1171 = vunpack.c.h.b16 %v189
  %v1172 = vunpack.c.l.b16 %v190
  %v1173 = vunpack.c.h.b16 %v190
  %v1174 = vunpack.c.l.b16 %v191
  %v1175 = vunpack.c.h.b16 %v191
  %v1176 = vunpack.c.l.b16 %v192
  %v1177 = vunpack.c.h.b16 %v192
  %v1178 = vunpack.c.l.b16 %v193
  %v1179 = vunpack.c.h.b16 %v193
  %v1180 = vunpack.c.l.b16 %v194
  %v1181 = vunpack.c.h.b16 %v194
  %v1182 = vunpack.c.l.b16 %v195
  %v1183 = vunpack.c.h.b16 %v195
  %v1184 = vunpack.c.l.b16 %v196
  %v1185 = vunpack.c.h.b16 %v196
  %v1186 = vunpack.c.l.b16 %v197
  %v1187 = vunpack.c.h.b16 %v197
  %v1188 = vunpack.c.l.b16 %v198
  %v1189 = vunpack.c.h.b16 %v198
  %v1190 = vunpack.c.l.b16 %v199
  %v1191 = vunpack.c.h.b16 %v199
  %v1192 = vunpack.c.l.b16 %v200
  %v1193 = vunpack.c.h.b16 %v200
  %v1194 = vunpack.c.l.b16 %v201
  %v1195 = vunpack.c.h.b16 %v201
  %v1196 = vunpack.c.l.b16 %v202
  %v1197 = vunpack.c.h.b16 %v202
  %v1198 = vunpack.c.l.b16 %v203
  %v1199 = vunpack.c.h.b16 %v203
  %v1200 = vunpack.c.l.b16 %v204
  %v1201 = vunpack.c.h.b16 %v204
  %v1202 = vunpack.c.l.b16 %v205
  %v1203 = vunpack.c.h.b16 %v205
  %v1204 = vunpack.c.l.b16 %v206
  %v1205 = vunpack.c.h.b16 %v206
  %v1206 = vunpack.c.l.b16 %v207
  %v1207 = vunpack.c.h.b16 %v207
  %v1208 = vunpack.c.l.b16 %v208
  %v1209 = vunpack.c.h.b16 %v208
  %v1210 = vunpack.c.l.b16 %v209
  %v1211 = vunpack.c.h.b16 %v209
  %v1212 = vunpack.c.l.b16 %v210
  %v1213 = vunpack.c.h.b16 %v210
  %v1214 = vunpack.c.l.b16 %v211
  %v1215 = vunpack.c.h.b16 %v211
  %v1216 = vunpack.c.l.b16 %v212
  %v1217 = vunpack.c.h.b16 %v212
  %v1218 = vunpack.c.l.b16 %v213
  %v1219 = vunpack.c.h.b16 %v213
  %v1220 = vunpack.c.l.b16 %v214
  %v1221 = vunpack.c.h.b16 %v214
  %v1222 = vunpack.c.l.b16 %v215
  %v1223 = vunpack.c.h.b16 %v215
  %v1224 = vunpack.c.l.b16 %v216
  %v1225 = vunpack.c.h.b16 %v216
  %v1226 = vunpack.c.l.b16 %v217
  %v1227 = vunpack.c.h.b16 %v217
  %v1228 = vunpack.c.l.b16 %v218
  %v1229 = vunpack.c.h.b16 %v218
  %v1230 = vunpack.c.l.b16 %v219
  %v1231 = vunpack.c.h.b16 %v219
  %v1232 = vunpack.c.l.b16 %v220
  %v1233 = vunpack.c.h.b16 %v220
  %v1234 = vunpack.c.l.b16 %v221
  %v1235 = vunpack.c.h.b16 %v221
  %v1236 = vunpack.c.l.b16 %v222
  %v1237 = vunpack.c.h.b16 %v222
  %v1238 = vunpack.c.l.b16 %v223
  %v1239 = vunpack.c.h.b16 %v223
  %v1240 = vunpack.c.l.b16 %v224
  %v1241 = vunpack.c.h.b16 %v224
  %v1242 = vunpack.c.l.b16 %v225
  %v1243 = vunpack.c.h.b16 %v225
  %v1244 = vunpack.c.l.b16 %v226
  %v1245 = vunpack.c.h.b16 %v226
  %v1246 = vunpack.c.l.b16 %v227
  %v1247 = vunpack.c.h.b16 %v227
  %v1248 = vunpack.c.l.b16 %v228
  %v1249 = vunpack.c.h.b16 %v228
  %v1250 = vunpack.c.l.b16 %v229
  %v1251 = vunpack.c.h.b16 %v229
  %v1252 = vunpack.c.l.b16 %v230
  %v1253 = vunpack.c.h.b16 %v230
  %v1254 = vunpack.c.l.b16 %v231
  %v1255 = vunpack.c.h.b16 %v231
  %v1256 = vunpack.c.l.b16 %v232
  %v1257 = vunpack.c.h.b16 %v232
  %v1258 = vunpack.c.l.b16 %v233
  %v1259 = vunpack.c.h.b16 %v233
  %v1260 = vunpack.c.l.b16 %v234
  %v1261 = vunpack.c.h.b16 %v234
  %v1262 = vunpack.c.l.b16 %v235
  %v1263 = vunpack.c.h.b16 %v235
  %v1264 = vunpack.c.l.b16 %v236
  %v1265 = vunpack.c.h.b16 %v236
  %v1266 = vunpack.c.l.b16 %v237
  %v1267 = vunpack.c.h.b16 %v237
  %v1268 = vunpack.c.l.b16 %v238
  %v1269 = vunpack.c.h.b16 %v238
  %v1270 = vunpack.c.l.b16 %v239
  %v1271 = vunpack.c.h.b16 %v239
  %v1272 = vunpack.c.l.b16 %v240
  %v1273 = vunpack.c.h.b16 %v240
  %v1274 = vunpack.c.l.b16 %v241
  %v1275 = vunpack.c.h.b16 %v241
  %v1276 = vunpack.c.l.b16 %v242
  %v1277 = vunpack.c.h.b16 %v242
  %v1278 = vunpack.c.l.b16 %v243
  %v1279 = vunpack.c.h.b16 %v243
  %v1280 = vunpack.c.l.b16 %v244
  %v1281 = vunpack.c.h.b16 %v244
  %v1282 = vunpack.c.l.b16 %v245
  %v1283 = vunpack.c.h.b16 %v245
  %v1284 = vunpack.c.l.b16 %v246
  %v1285 = vunpack.c.h.b16 %v246
  %v1286 = vunpack.c.l.b16 %v247
  %v1287 = vunpack.c.h.b16 %v247
  %v1288 = vunpack.c.l.b16 %v248
  %v1289 = vunpack.c.h.b16 %v248
  %v1290 = vunpack.c.l.b16 %v249
  %v1291 = vunpack.c.h.b16 %v249
  %v1292 = vunpack.c.l.b16 %v250
  %v1293 = vunpack.c.h.b16 %v250
  %v1294 = vunpack.c.l.b16 %v251
  %v1295 = vunpack.c.h.b16 %v251
  %v1296 = vunpack.c.l.b16 %v252
  %v1297 = vunpack.c.h.b16 %v252
  %v1298 = vunpack.c.l.b16 %v253
  %v1299 = vunpack.c.h.b16 %v253
  %v1300 = vunpack.c.l.b16 %v254
  %v1301 = vunpack.c.h.b16 %v254
  %v1302 = vunpack.c.l.b16 %v255
  %v1303 = vunpack.c.h.b16 %v255
  %v1304 = vunpack.c.l.b16 %v256
  %v1305 = vunpack.c.h.b16 %v256
  %v1306 = vunpack.c.l.b16 %v257
  %v1307 = vunpack.c.h.b16 %v257
  %v1308 = vunpack.c.l.b16 %v258
  %v1309 = vunpack.c.h.b16 %v258
  %v1310 = vunpack.c.l.b16 %v259
  %v1311 = vunpack.c.h.b16 %v259
  %v1312 = vunpack.c.l.b16 %v260
  %v1313 = vunpack.c.h.b16 %v260
  %v1314 = vunpack.c.l.b16 %v261
  %v1315 = vunpack.c.h.b16 %v261
  %v1316 = vunpack.c.l.b16 %v262
  %v1317 = vunpack.c.h.b16 %v262
  %v1318 = vunpack.c.l.b16 %v263
  %v1319 = vunpack.c.h.b16 %v263
  %v1320 = vunpack.c.l.b16 %v264
  %v1321 = vunpack.c.h.b16 %v264
  %v1322 = vunpack.c.l.b16 %v265
  %v1323 = vunpack.c.h.b16 %v265
  %v1324 = vunpack.c.l.b16 %v266
  %v1325 = vunpack.c.h.b16 %v266
  %v1326 = vunpack.c.l.b16 %v267
  %v1327 = vunpack.c.h.b16 %v267
  %v1328 = vunpack.c.l.b16 %v268
  %v1329 = vunpack.c.h.b16 %v268
  %v1330 = vunpack.c.l.b16 %v269
  %v1331 = vunpack.c.h.b16 %v269
  %v1332 = vunpack.c.l.b16 %v270
  %v1333 = vunpack.c.h.b16 %v270
  %v1334 = vunpack.c.l.b16 %v271
  %v1335 = vunpack.c.h.b16 %v271
  %v1336 = vunpack.c.l.b16 %v272
  %v1337 = vunpack.c.h.b16 %v272
  %v1338 = vunpack.c.l.b16 %v273
  %v1339 = vunpack.c.h.b16 %v273
  %v1340 = vunpack.c.l.b16 %v274
  %v1341 = vunpack.c.h.b16 %v274
  %v1342 = vunpack.c.l.b16 %v275
  %v1343 = vunpack.c.h.b16 %v275
  %v1344 = vunpack.c.l.b16 %v276
  %v1345 = vunpack.c.h.b16 %v276
  %v1346 = vunpack.c.l.b16 %v277
  %v1347 = vunpack.c.h.b16 %v277
  %v1348 = vunpack.c.l.b16 %v278
  %v1349 = vunpack.c.h.b16 %v278
  %v1350 = vunpack.c.l.b16 %v279
  %v1351 = vunpack.c.h.b16 %v279
  %v1352 = vunpack.c.l.b16 %v280
  %v1353 = vunpack.c.h.b16 %v280
  %v1354 = vunpack.c.l.b16 %v281
  %v1355 = vunpack.c.h.b16 %v281
  %v1356 = vunpack.c.l.b16 %v282
  %v1357 = vunpack.c.h.b16 %v282
  %v1358 = vunpack.c.l.b16 %v283
  %v1359 = vunpack.c.h.b16 %v283
  %v1360 = vunpack.c.l.b16 %v284
  %v1361 = vunpack.c.h.b16 %v284
  %v1362 = vunpack.c.l.b16 %v285
  %v1363 = vunpack.c.h.b16 %v285
  %v1364 = vunpack.c.l.b16 %v286
  %v1365 = vunpack.c.h.b16 %v286
  %v1366 = vunpack.c.l.b16 %v287
  %v1367 = vunpack.c.h.b16 %v287
  %v1368 = vunpack.c.l.b16 %v288
  %v1369 = vunpack.c.h.b16 %v288
  %v1370 = vunpack.c.l.b16 %v289
  %v1371 = vunpack.c.h.b16 %v289
  %v1372 = vunpack.c.l.b16 %v290
  %v1373 = vunpack.c.h.b16 %v290
  %v1374 = vunpack.c.l.b16 %v291
  %v1375 = vunpack.c.h.b16 %v291
  %v1376 = vunpack.c.l.b16 %v292
  %v1377 = vunpack.c.h.b16 %v292
  %v1378 = vunpack.c.l.b16 %v293
  %v1379 = vunpack.c.h.b16 %v293
  %v1380 = vunpack.c.l.b16 %v294
  %v1381 = vunpack.c.h.b16 %v294
  %v1382 = vunpack.c.l.b16 %v295
  %v1383 = vunpack.c.h.b16 %v295
  %v1384 = vunpack.c.l.b16 %v296
  %v1385 = vunpack.c.h.b16 %v296
  %v1386 = vunpack.c.l.b16 %v297
  %v1387 = vunpack.c.h.b16 %v297
  %v1388 = vunpack.c.l.b16 %v298
  %v1389 = vunpack.c.h.b16 %v298
  %v1390 = vunpack.c.l.b16 %v299
  %v1391 = vunpack.c.h.b16 %v299
  %v1392 = vunpack.c.l.b16 %v300
  %v1393 = vunpack.c.h.b16 %v300
  %v1394 = vunpack.c.l.b16 %v301
  %v1395 = vunpack.c.h.b16 %v301
  %v1396 = vunpack.c.l.b16 %v302
  %v1397 = vunpack.c.h.b16 %v302
  %v1398 = vunpack.c.l.b16 %v303
  %v1399 = vunpack.c.h.b16 %v303
  %v1400 = vunpack.c.l.b16 %v304
  %v1401 = vunpack.c.h.b16 %v304
  %v1402 = vunpack.c.l.b16 %v305
  %v1403 = vunpack.c.h.b16 %v305
  %v1404 = vunpack.c.l.b16 %v306
  %v1405 = vunpack.c.h.b16 %v306
  %v1406 = vunpack.c.l.b16 %v307
  %v1407 = vunpack.c.h.b16 %v307
  %v1408 = vunpack.c.l.b16 %v308
  %v1409 = vunpack.c.h.b16 %v308
  %v1410 = vunpack.c.l.b16 %v309
  %v1411 = vunpack.c.h.b16 %v309
  %v1412 = vunpack.c.l.b16 %v310
  %v1413 = vunpack.c.h.b16 %v310
  %v1414 = vunpack.c.l.b16 %v311
  %v1415 = vunpack.c.h.b16 %v311
  %v1416 = vunpack.c.l.b16 %v312
  %v1417 = vunpack.c.h.b16 %v312
  %v1418 = vunpack.c.l.b16 %v313
  %v1419 = vunpack.c.h.b16 %v313
  %v1420 = vunpack.c.l.b16 %v314
  %v1421 = vunpack.c.h.b16 %v314
  %v1422 = vunpack.c.l.b16 %v315
  %v1423 = vunpack.c.h.b16 %v315
  %v1424 = vunpack.c.l.b16 %v316
  %v1425 = vunpack.c.h.b16 %v316
  %v1426 = vunpack.c.l.b16 %v317
  %v1427 = vunpack.c.h.b16 %v317
  %v1428 = vunpack.c.l.b16 %v318
  %v1429 = vunpack.c.h.b16 %v318
  %v1430 = vunpack.c.l.b16 %v319
  %v1431 = vunpack.c.h.b16 %v319
  %v1432 = vpack.c.b16 %v1034, %v1032
  %v1433 = vpack.c.b16 %v1035, %v1033
  %v1434 = vpack.c.b16 %v1038, %v1036
  %v1435 = vpack.c.b16 %v1039, %v1037
  %v1436 = vpack.c.b16 %v1042, %v1040
  %v1437 = vpack.c.b16 %v1043, %v1041
  %v1438 = vpack.c.b16 %v1046, %v1044
  %v1439 = vpack.c.b16 %v1047, %v1045
  %v1440 = vpack.c.b16 %v1050, %v1048
  %v1441 = vpack.c.b16 %v1051, %v1049
  %v1442 = vpack.c.b16 %v1054, %v1052
  %v1443 = vpack.c.b16 %v1055, %v1053
  %v1444 = vpack.c.b16 %v1058, %v1056
  %v1445 = vpack.c.b16 %v1059, %v1057
  %v1446 = vpack.c.b16 %v1062, %v1060
  %v1447 = vpack.c.b16 %v1063, %v1061
  %v1448 = vpack.c.b16 %v1066, %v1064
  %v1449 = vpack.c.b16 %v1067, %v1065
  %v1450 = vpack.c.b16 %v1070, %v1068
  %v1451 = vpack.c.b16 %v1071, %v1069
  %v1452 = vpack.c.b16 %v1074, %v1072
  %v1453 = vpack.c.b16 %v1075, %v1073
  %v1454 = vpack.c.b16 %v1078, %v1076
  %v1455 = vpack.c.b16 %v1079, %v1077
  %v1456 = vpack.c.b16 %v1082, %v1080
  %v1457 = vpack.c.b16 %v1083, %v1081
  %v1458 = vpack.c.b16 %v1086, %v1084
  %v1459 = vpack.c.b16 %v1087, %v1085
  %v1460 = vpack.c.b16 %v1090, %v1088
  %v1461 = vpack.c.b16 %v1091, %v1089
  %v1462 = vpack.c.b16 %v1094, %v1092
  %v1463 = vpack.c.b16 %v1095, %v1093
  %v1464 = vpack.c.b16 %v1098, %v1096
  %v1465 = vpack.c.b16 %v1099, %v1097
  %v1466 = vpack.c.b16 %v1102, %v1100
  %v1467 = vpack.c.b16 %v1103, %v1101
  %v1468 = vpack.c.b16 %v1106, %v1104
  %v1469 = vpack.c.b16 %v1107, %v1105
  %v1470 = vpack.c.b16 %v1110, %v1108
  %v1471 = vpack.c.b16 %v1111, %v1109
  %v1472 = vpack.c.b16 %v1114, %v1112
  %v1473 = vpack.c.b16 %v1115, %v1113
  %v1474 = vpack.c.b16 %v1118, %v1116
  %v1475 = vpack.c.b16 %v1119, %v1117
  %v1476 = vpack.c.b16 %v1122, %v1120
  %v1477 = vpack.c.b16 %v1123, %v1121
  %v1478 = vpack.c.b16 %v1126, %v1124
  %v1479 = vpack.c.b16 %v1127, %v1125
  %v1480 = vpack.c.b16 %v1130, %v1128
  %v1481 = vpack.c.b16 %v1131, %v1129
  %v1482 = vpack.c.b16 %v1134, %v1132
  %v1483 = vpack.c.b16 %v1135, %v1133
  %v1484 = vpack.c.b16 %v1138, %v1136
  %v1485 = vpack.c.b16 %v1139, %v1137
  %v1486 = vpack.c.b16 %v1142, %v1140
  %v1487 = vpack.c.b16 %v1143, %v1141
  %v1488 = vpack.c.b16 %v1146, %v1144
  %v1489 = vpack.c.b16 %v1147, %v1145
  %v1490 = vpack.c.b16 %v1150, %v1148
  %v1491 = vpack.c.b16 %v1151, %v1149
  %v1492 = vpack.c.b16 %v1154, %v1152
  %v1493 = vpack.c.b16 %v1155, %v1153
  %v1494 = vpack.c.b16 %v1158, %v1156
  %v1495 = vpack.c.b16 %v1159, %v1157
  %v1496 = vpack.c.b16 %v1162, %v1160
  %v1497 = vpack.c.b16 %v1163, %v1161
  %v1498 = vpack.c.b16 %v1166, %v1164
  %v1499 = vpack.c.b16 %v1167, %v1165
  %v1500 = vpack.c.b16 %v1170, %v1168
  %v1501 = vpack.c.b16 %v1171, %v1169
  %v1502 = vpack.c.b16 %v1174, %v1172
  %v1503 = vpack.c.b16 %v1175, %v1173
  %v1504 = vpack.c.b16 %v1178, %v1176
  %v1505 = vpack.c.b16 %v1179, %v1177
  %v1506 = vpack.c.b16 %v1182, %v1180
  %v1507 = vpack.c.b16 %v1183, %v1181
  %v1508 = vpack.c.b16 %v1186, %v1184
  %v1509 = vpack.c.b16 %v1187, %v1185
  %v1510 = vpack.c.b16 %v1190, %v1188
  %v1511 = vpack.c.b16 %v1191, %v1189
  %v1512 = vpack.c.b16 %v1194, %v1192
  %v1513 = vpack.c.b16 %v1195, %v1193
  %v1514 = vpack.c.b16 %v1198, %v1196
  %v1515 = vpack.c.b16 %v1199, %v1197
  %v1516 = vpack.c.b16 %v1202, %v1200
  %v1517 = vpack.c.b16 %v1203, %v1201
  %v1518 = vpack.c.b16 %v1206, %v1204
  %v1519 = vpack.c.b16 %v1207, %v1205
  %v1520 = vpack.c.b16 %v1210, %v1208
  %v1521 = vpack.c.b16 %v1211, %v1209
  %v1522 = vpack.c.b16 %v1214, %v1212
  %v1523 = vpack.c.b16 %v1215, %v1213
  %v1524 = vpack.c.b16 %v1218, %v1216
  %v1525 = vpack.c.b16 %v1219, %v1217
  %v1526 = vpack.c.b16 %v1222, %v1220
  %v1527 = vpack.c.b16 %v1223, %v1221
  %v1528 = vpack.c.b16 %v1226, %v1224
  %v1529 = vpack.c.b16 %v1227, %v1225
  %v1530 = vpack.c.b16 %v1230, %v1228
  %v1531 = vpack.c.b16 %v1231, %v1229
  %v1532 = vpack.c.b16 %v1234, %v1232
  %v1533 = vpack.c.b16 %v1235, %v1233
  %v1534 = vpack.c.b16 %v1238, %v1236
  %v1535 = vpack.c.b16 %v1239, %v1237
  %v1536 = vpack.c.b16 %v1242, %v1240
  %v1537 = vpack.c.b16 %v1243, %v1241
  %v1538 = vpack.c.b16 %v1246, %v1244
  %v1539 = vpack.c.b16 %v1247, %v1245
  %v1540 = vpack.c.b16 %v1250, %v1248
  %v1541 = vpack.c.b16 %v1251, %v1249
  %v1542 = vpack.c.b16 %v1254, %v1252
  %v1543 = vpack.c.b16 %v1255, %v1253
  %v1544 = vpack.c.b16 %v1258, %v1256
  %v1545 = vpack.c.b16 %v1259, %v1257
  %v1546 = vpack.c.b16 %v1262, %v1260
  %v1547 = vpack.c.b16 %v1263, %v1261
  %v1548 = vpack.c.b16 %v1266, %v1264
  %v1549 = vpack.c.b16 %v1267, %v1265
  %v1550 = vpack.c.b16 %v1270, %v1268
  %v1551 = vpack.c.b16 %v1271, %v1269
  %v1552 = vpack.c.b16 %v1274, %v1272
  %v1553 = vpack.c.b16 %v1275, %v1273
  %v1554 = vpack.c.b16 %v1278, %v1276
  %v1555 = vpack.c.b16 %v1279, %v1277
  %v1556 = vpack.c.b16 %v1282, %v1280
  %v1557 = vpack.c.b16 %v1283, %v1281
  %v1558 = vpack.c.b16 %v1286, %v1284
  %v1559 = vpack.c.b16 %v1287, %v1285
  %v1560 = vpack.c.b16 %v1290, %v1288
  %v1561 = vpack.c.b16 %v1291, %v1289
  %v1562 = vpack.c.b16 %v1294, %v1292
  %v1563 = vpack.c.b16 %v1295, %v1293
  %v1564 = vpack.c.b16 %v1298, %v1296
  %v1565 = vpack.c.b16 %v1299, %v1297
  %v1566 = vpack.c.b16 %v1302, %v1300
  %v1567 = vpack.c.b16 %v1303, %v1301
  %v1568 = vpack.c.b16 %v1306, %v1304
  %v1569 = vpack.c.b16 %v1307, %v1305
  %v1570 = vpack.c.b16 %v1310, %v1308
  %v1571 = vpack.c.b16 %v1311, %v1309
  %v1572 = vpack.c.b16 %v1314, %v1312
  %v1573 = vpack.c.b16 %v1315, %v1313
  %v1574 = vpack.c.b16 %v1318, %v1316
  %v1575 = vpack.c.b16 %v1319, %v1317
  %v1576 = vpack.c.b16 %v1322, %v1320
  %v1577 = vpack.c.b16 %v1323, %v1321
  %v1578 = vpack.c.b16 %v1326, %v1324
  %v1579 = vpack.c.b16 %v1327, %v1325
  %v1580 = vpack.c.b16 %v1330, %v1328
  %v1581 = vpack.c.b16 %v1331, %v1329
  %v1582 = vpack.c.b16 %v1334, %v1332
  %v1583 = vpack.c.b16 %v1335, %v1333
  %v1584 = vpack.c.b16 %v1338, %v1336
  %v1585 = vpack.c.b16 %v1339, %v1337
  %v1586 = vpack.c.b16 %v1342, %v1340
  %v1587 = vpack.c.b16 %v1343, %v1341
  %v1588 = vpack.c.b16 %v1346, %v1344
  %v1589 = vpack.c.b16 %v1347, %v1345
  %v1590 = vpack.c.b16 %v1350, %v1348
  %v1591 = vpack.c.b16 %v1351, %v1349
  %v1592 = vpack.c.b16 %v1354, %v1352
  %v1593 = vpack.c.b16 %v1355, %v1353
  %v1594 = vpack.c.b16 %v1358, %v1356
  %v1595 = vpack.c.b16 %v1359, %v1357
  %v1596 = vpack.c.b16 %v1362, %v1360
  %v1597 = vpack.c.b16 %v1363, %v1361
  %v1598 = vpack.c.b16 %v1366, %v1364
  %v1599 = vpack.c.b16 %v1367, %v1365
  %v1600 = vpack.c.b16 %v1370, %v1368
  %v1601 = vpack.c.b16 %v1371, %v1369
  %v1602 = vpack.c.b16 %v1374, %v1372
  %v1603 = vpack.c.b16 %v1375, %v1373
  %v1604 = vpack.c.b16 %v1378, %v1376
  %v1605 = vpack.c.b16 %v1379, %v1377
  %v1606 = vpack.c.b16 %v1382, %v1380
  %v1607 = vpack.c.b16 %v1383, %v1381
  %v1608 = vpack.c.b16 %v1386, %v1384
  %v1609 = vpack.c.b16 %v1387, %v1385
  %v1610 = vpack.c.b16 %v1390, %v1388
  %v1611 = vpack.c.b16 %v1391, %v1389
  %v1612 = vpack.c.b16 %v1394, %v1392
  %v1613 = vpack.c.b16 %v1395, %v1393
  %v1614 = vpack.c.b16 %v1398, %v1396
  %v1615 = vpack.c.b16 %v1399, %v1397
  %v1616 = vpack.c.b16 %v1402, %v1400
  %v1617 = vpack.c.b16 %v1403, %v1401
  %v1618 = vpack.c.b16 %v1406, %v1404
  %v1619 = vpack.c.b16 %v1407, %v1405
  %v1620 = vpack.c.b16 %v1410, %v1408
  %v1621 = vpack.c.b16 %v1411, %v1409
  %v1622 = vpack.c.b16 %v1414, %v1412
  %v1623 = vpack.c.b16 %v1415, %v1413
  %v1624 = vpack.c.b16 %v1418, %v1416
  %v1625 = vpack.c.b16 %v1419, %v1417
  %v1626 = vpack.c.b16 %v1422, %v1420
  %v1627 = vpack.c.b16 %v1423, %v1421
  %v1628 = vpack.c.b16 %v1426, %v1424
  %v1629 = vpack.c.b16 %v1427, %v1425
  %v1630 = vpack.c.b16 %v1430, %v1428
  %v1631 = vpack.c.b16 %v1431, %v1429
  %vm1832 = vcmask 523264
  %v1834 = vsel %vm1832, %v644, 0
  %v1837 = vsel %vm1832, %v657, 0
  %v1840 = vsel %vm1832, %v670, 0
  %v1843 = vsel %vm1832, %v683, 0
  %v1846 = vsel %vm1832, %v696, 0
  %v1849 = vsel %vm1832, %v709, 0
  %v1852 = vsel %vm1832, %v722, 0
  %v1855 = vsel %vm1832, %v735, 0
  %1857 = vmatprep.subr.bf16.mxu0 %v1447
  %1858 = vmatpush1.bf16.msra.mxu0 %v1446
  %1859 = vmatprep.subr.bf16.mxu0 %v1445
  %1860 = vmatpush1.bf16.msra.mxu0 %v1444
  %1861 = vmatprep.subr.bf16.mxu0 %v1443
  %1862 = vmatpush1.bf16.msra.mxu0 %v1442
  %1863 = vmatprep.subr.bf16.mxu0 %v1441
  %1864 = vmatpush1.bf16.msra.mxu0 %v1440
  %1865 = vmatprep.subr.bf16.mxu0 %v1439
  %1866 = vmatpush1.bf16.msra.mxu0 %v1438
  %1867 = vmatprep.subr.bf16.mxu0 %v1437
  %1868 = vmatpush1.bf16.msra.mxu0 %v1436
  %1869 = vmatprep.subr.bf16.mxu0 %v1435
  %1870 = vmatpush1.bf16.msra.mxu0 %v1434
  %1871 = vmatprep.subr.bf16.mxu0 %v1433
  %1872 = vmatpush1.bf16.msra.mxu0 %v1432
  %1873 = vmatprep.subr.bf16.mxu0 %v1463
  %1874 = vmatpush2.bf16.msra.mxu0 %v1462
  %1875 = vmatprep.subr.bf16.mxu0 %v1461
  %1876 = vmatpush2.bf16.msra.mxu0 %v1460
  %1877 = vmatprep.subr.bf16.mxu0 %v1459
  %1878 = vmatpush2.bf16.msra.mxu0 %v1458
  %1879 = vmatprep.subr.bf16.mxu0 %v1457
  %1880 = vmatpush2.bf16.msra.mxu0 %v1456
  %1881 = vmatprep.subr.bf16.mxu0 %v1455
  %1882 = vmatpush2.bf16.msra.mxu0 %v1454
  %1883 = vmatprep.subr.bf16.mxu0 %v1453
  %1884 = vmatpush2.bf16.msra.mxu0 %v1452
  %1885 = vmatprep.subr.bf16.mxu0 %v1451
  %1886 = vmatpush2.bf16.msra.mxu0 %v1450
  %1887 = vmatprep.subr.bf16.mxu0 %v1449
  %1888 = vmatpush2.bf16.msra.mxu0 %v1448
  %1889 = vmatprep.mubr.bf16.mxu0 %v633
  %1890 = vmatmul.mubr.bf16.gmra.mxu0 %v632
  %v1891 = vpop.f32.mrf.mxu0
  %v1892 = vadd.f32 %v325, %v1891
  %v1893 = vpop.f32.mrf.mxu0
  %v1894 = vadd.f32 %v329, %v1893
  %v1895 = vpop.f32.mrf.mxu0
  %v1896 = vadd.f32 %v325, %v1895
  %v1897 = vpop.f32.mrf.mxu0
  %v1898 = vadd.f32 %v329, %v1897
  %1899 = vmatprep.mubr.bf16.mxu0 %v646
  %1900 = vmatmul.mubr.bf16.gmra.mxu0 %v645
  %v1901 = vpop.f32.mrf.mxu0
  %v1902 = vadd.f32 %v325, %v1901
  %v1903 = vpop.f32.mrf.mxu0
  %v1904 = vadd.f32 %v329, %v1903
  %v1905 = vpop.f32.mrf.mxu0
  %v1906 = vadd.f32 %v325, %v1905
  %v1907 = vpop.f32.mrf.mxu0
  %v1908 = vadd.f32 %v329, %v1907
  %1909 = vmatprep.mubr.bf16.mxu0 %v659
  %1910 = vmatmul.mubr.bf16.gmra.mxu0 %v658
  %v1911 = vpop.f32.mrf.mxu0
  %v1912 = vadd.f32 %v325, %v1911
  %v1913 = vpop.f32.mrf.mxu0
  %v1914 = vadd.f32 %v329, %v1913
  %v1915 = vpop.f32.mrf.mxu0
  %v1916 = vadd.f32 %v325, %v1915
  %v1917 = vpop.f32.mrf.mxu0
  %v1918 = vadd.f32 %v329, %v1917
  %1919 = vmatprep.mubr.bf16.mxu0 %v672
  %1920 = vmatmul.mubr.bf16.gmra.mxu0 %v671
  %v1921 = vpop.f32.mrf.mxu0
  %v1922 = vadd.f32 %v325, %v1921
  %v1923 = vpop.f32.mrf.mxu0
  %v1924 = vadd.f32 %v329, %v1923
  %v1925 = vpop.f32.mrf.mxu0
  %v1926 = vadd.f32 %v325, %v1925
  %v1927 = vpop.f32.mrf.mxu0
  %v1928 = vadd.f32 %v329, %v1927
  %1929 = vmatprep.mubr.bf16.mxu0 %v685
  %1930 = vmatmul.mubr.bf16.gmra.mxu0 %v684
  %v1931 = vpop.f32.mrf.mxu0
  %v1932 = vadd.f32 %v325, %v1931
  %v1933 = vpop.f32.mrf.mxu0
  %v1934 = vadd.f32 %v329, %v1933
  %v1935 = vpop.f32.mrf.mxu0
  %v1936 = vadd.f32 %v325, %v1935
  %v1937 = vpop.f32.mrf.mxu0
  %v1938 = vadd.f32 %v329, %v1937
  %1939 = vmatprep.mubr.bf16.mxu0 %v698
  %1940 = vmatmul.mubr.bf16.gmra.mxu0 %v697
  %v1941 = vpop.f32.mrf.mxu0
  %v1942 = vadd.f32 %v325, %v1941
  %v1943 = vpop.f32.mrf.mxu0
  %v1944 = vadd.f32 %v329, %v1943
  %v1945 = vpop.f32.mrf.mxu0
  %v1946 = vadd.f32 %v325, %v1945
  %v1947 = vpop.f32.mrf.mxu0
  %v1948 = vadd.f32 %v329, %v1947
  %1949 = vmatprep.mubr.bf16.mxu0 %v711
  %1950 = vmatmul.mubr.bf16.gmra.mxu0 %v710
  %v1951 = vpop.f32.mrf.mxu0
  %v1952 = vadd.f32 %v325, %v1951
  %v1953 = vpop.f32.mrf.mxu0
  %v1954 = vadd.f32 %v329, %v1953
  %v1955 = vpop.f32.mrf.mxu0
  %v1956 = vadd.f32 %v325, %v1955
  %v1957 = vpop.f32.mrf.mxu0
  %v1958 = vadd.f32 %v329, %v1957
  %1959 = vmatprep.mubr.bf16.mxu0 %v724
  %1960 = vmatmul.mubr.bf16.gmra.mxu0 %v723
  %v1961 = vpop.f32.mrf.mxu0
  %v1962 = vadd.f32 %v325, %v1961
  %v1963 = vpop.f32.mrf.mxu0
  %v1964 = vadd.f32 %v329, %v1963
  %v1965 = vpop.f32.mrf.mxu0
  %v1966 = vpop.f32.mrf.mxu0
  %1967 = vdwg.mxu0
  %1968 = vmatprep.subr.bf16.mxu0 %v1479
  %1969 = vmatpush1.bf16.msra.mxu0 %v1478
  %1970 = vmatprep.subr.bf16.mxu0 %v1477
  %1971 = vmatpush1.bf16.msra.mxu0 %v1476
  %1972 = vmatprep.subr.bf16.mxu0 %v1475
  %1973 = vmatpush1.bf16.msra.mxu0 %v1474
  %1974 = vmatprep.subr.bf16.mxu0 %v1473
  %1975 = vmatpush1.bf16.msra.mxu0 %v1472
  %1976 = vmatprep.subr.bf16.mxu0 %v1471
  %1977 = vmatpush1.bf16.msra.mxu0 %v1470
  %1978 = vmatprep.subr.bf16.mxu0 %v1469
  %1979 = vmatpush1.bf16.msra.mxu0 %v1468
  %1980 = vmatprep.subr.bf16.mxu0 %v1467
  %1981 = vmatpush1.bf16.msra.mxu0 %v1466
  %1982 = vmatprep.subr.bf16.mxu0 %v1465
  %1983 = vmatpush1.bf16.msra.mxu0 %v1464
  %1984 = vmatprep.subr.bf16.mxu0 %v1495
  %1985 = vmatpush2.bf16.msra.mxu0 %v1494
  %1986 = vmatprep.subr.bf16.mxu0 %v1493
  %1987 = vmatpush2.bf16.msra.mxu0 %v1492
  %1988 = vmatprep.subr.bf16.mxu0 %v1491
  %1989 = vmatpush2.bf16.msra.mxu0 %v1490
  %1990 = vmatprep.subr.bf16.mxu0 %v1489
  %1991 = vmatpush2.bf16.msra.mxu0 %v1488
  %1992 = vmatprep.subr.bf16.mxu0 %v1487
  %1993 = vmatpush2.bf16.msra.mxu0 %v1486
  %1994 = vmatprep.subr.bf16.mxu0 %v1485
  %1995 = vmatpush2.bf16.msra.mxu0 %v1484
  %1996 = vmatprep.subr.bf16.mxu0 %v1483
  %1997 = vmatpush2.bf16.msra.mxu0 %v1482
  %1998 = vmatprep.subr.bf16.mxu0 %v1481
  %1999 = vmatpush2.bf16.msra.mxu0 %v1480
  %2000 = vmatprep.mubr.bf16.mxu0 %v635
  %2001 = vmatmul.mubr.bf16.gmra.mxu0 %v634
  %v2002 = vpop.f32.mrf.mxu0
  %v2003 = vadd.f32 %v1892, %v2002
  %v2004 = vpop.f32.mrf.mxu0
  %v2005 = vadd.f32 %v1894, %v2004
  %v2006 = vpop.f32.mrf.mxu0
  %v2007 = vadd.f32 %v1896, %v2006
  %v2008 = vpop.f32.mrf.mxu0
  %v2009 = vadd.f32 %v1898, %v2008
  %2010 = vmatprep.mubr.bf16.mxu0 %v648
  %2011 = vmatmul.mubr.bf16.gmra.mxu0 %v647
  %v2012 = vpop.f32.mrf.mxu0
  %v2013 = vadd.f32 %v1902, %v2012
  %v2014 = vpop.f32.mrf.mxu0
  %v2015 = vadd.f32 %v1904, %v2014
  %v2016 = vpop.f32.mrf.mxu0
  %v2017 = vadd.f32 %v1906, %v2016
  %v2018 = vpop.f32.mrf.mxu0
  %v2019 = vadd.f32 %v1908, %v2018
  %2020 = vmatprep.mubr.bf16.mxu0 %v661
  %2021 = vmatmul.mubr.bf16.gmra.mxu0 %v660
  %v2022 = vpop.f32.mrf.mxu0
  %v2023 = vadd.f32 %v1912, %v2022
  %v2024 = vpop.f32.mrf.mxu0
  %v2025 = vadd.f32 %v1914, %v2024
  %v2026 = vpop.f32.mrf.mxu0
  %v2027 = vadd.f32 %v1916, %v2026
  %v2028 = vpop.f32.mrf.mxu0
  %v2029 = vadd.f32 %v1918, %v2028
  %2030 = vmatprep.mubr.bf16.mxu0 %v674
  %2031 = vmatmul.mubr.bf16.gmra.mxu0 %v673
  %v2032 = vpop.f32.mrf.mxu0
  %v2033 = vadd.f32 %v1922, %v2032
  %v2034 = vpop.f32.mrf.mxu0
  %v2035 = vadd.f32 %v1924, %v2034
  %v2036 = vpop.f32.mrf.mxu0
  %v2037 = vadd.f32 %v1926, %v2036
  %v2038 = vpop.f32.mrf.mxu0
  %v2039 = vadd.f32 %v1928, %v2038
  %2040 = vmatprep.mubr.bf16.mxu0 %v687
  %2041 = vmatmul.mubr.bf16.gmra.mxu0 %v686
  %v2042 = vpop.f32.mrf.mxu0
  %v2043 = vadd.f32 %v1932, %v2042
  %v2044 = vpop.f32.mrf.mxu0
  %v2045 = vadd.f32 %v1934, %v2044
  %v2046 = vpop.f32.mrf.mxu0
  %v2047 = vadd.f32 %v1936, %v2046
  %v2048 = vpop.f32.mrf.mxu0
  %v2049 = vadd.f32 %v1938, %v2048
  %2050 = vmatprep.mubr.bf16.mxu0 %v700
  %2051 = vmatmul.mubr.bf16.gmra.mxu0 %v699
  %v2052 = vpop.f32.mrf.mxu0
  %v2053 = vadd.f32 %v1942, %v2052
  %v2054 = vpop.f32.mrf.mxu0
  %v2055 = vadd.f32 %v1944, %v2054
  %v2056 = vpop.f32.mrf.mxu0
  %v2057 = vadd.f32 %v1946, %v2056
  %v2058 = vpop.f32.mrf.mxu0
  %v2059 = vadd.f32 %v1948, %v2058
  %2060 = vmatprep.mubr.bf16.mxu0 %v713
  %2061 = vmatmul.mubr.bf16.gmra.mxu0 %v712
  %v2062 = vpop.f32.mrf.mxu0
  %v2063 = vadd.f32 %v1952, %v2062
  %v2064 = vpop.f32.mrf.mxu0
  %v2065 = vadd.f32 %v1954, %v2064
  %v2066 = vpop.f32.mrf.mxu0
  %v2067 = vadd.f32 %v1956, %v2066
  %v2068 = vpop.f32.mrf.mxu0
  %v2069 = vadd.f32 %v1958, %v2068
  %2070 = vmatprep.mubr.bf16.mxu0 %v726
  %2071 = vmatmul.mubr.bf16.gmra.mxu0 %v725
  %v2072 = vpop.f32.mrf.mxu0
  %v2073 = vadd.f32 %v1962, %v2072
  %v2074 = vpop.f32.mrf.mxu0
  %v2075 = vadd.f32 %v1964, %v2074
  %v2076 = vpop.f32.mrf.mxu0
  %v2077 = vpop.f32.mrf.mxu0
  %2078 = vdwg.mxu0
  %2079 = vmatprep.subr.bf16.mxu0 %v1511
  %2080 = vmatpush1.bf16.msra.mxu0 %v1510
  %2081 = vmatprep.subr.bf16.mxu0 %v1509
  %2082 = vmatpush1.bf16.msra.mxu0 %v1508
  %2083 = vmatprep.subr.bf16.mxu0 %v1507
  %2084 = vmatpush1.bf16.msra.mxu0 %v1506
  %2085 = vmatprep.subr.bf16.mxu0 %v1505
  %2086 = vmatpush1.bf16.msra.mxu0 %v1504
  %2087 = vmatprep.subr.bf16.mxu0 %v1503
  %2088 = vmatpush1.bf16.msra.mxu0 %v1502
  %2089 = vmatprep.subr.bf16.mxu0 %v1501
  %2090 = vmatpush1.bf16.msra.mxu0 %v1500
  %2091 = vmatprep.subr.bf16.mxu0 %v1499
  %2092 = vmatpush1.bf16.msra.mxu0 %v1498
  %2093 = vmatprep.subr.bf16.mxu0 %v1497
  %2094 = vmatpush1.bf16.msra.mxu0 %v1496
  %2095 = vmatprep.subr.bf16.mxu0 %v1527
  %2096 = vmatpush2.bf16.msra.mxu0 %v1526
  %2097 = vmatprep.subr.bf16.mxu0 %v1525
  %2098 = vmatpush2.bf16.msra.mxu0 %v1524
  %2099 = vmatprep.subr.bf16.mxu0 %v1523
  %2100 = vmatpush2.bf16.msra.mxu0 %v1522
  %2101 = vmatprep.subr.bf16.mxu0 %v1521
  %2102 = vmatpush2.bf16.msra.mxu0 %v1520
  %2103 = vmatprep.subr.bf16.mxu0 %v1519
  %2104 = vmatpush2.bf16.msra.mxu0 %v1518
  %2105 = vmatprep.subr.bf16.mxu0 %v1517
  %2106 = vmatpush2.bf16.msra.mxu0 %v1516
  %2107 = vmatprep.subr.bf16.mxu0 %v1515
  %2108 = vmatpush2.bf16.msra.mxu0 %v1514
  %2109 = vmatprep.subr.bf16.mxu0 %v1513
  %2110 = vmatpush2.bf16.msra.mxu0 %v1512
  %2111 = vmatprep.mubr.bf16.mxu0 %v637
  %2112 = vmatmul.mubr.bf16.gmra.mxu0 %v636
  %v2113 = vpop.f32.mrf.mxu0
  %v2114 = vadd.f32 %v2003, %v2113
  %v2115 = vpop.f32.mrf.mxu0
  %v2116 = vadd.f32 %v2005, %v2115
  %v2117 = vpop.f32.mrf.mxu0
  %v2118 = vadd.f32 %v2007, %v2117
  %v2119 = vpop.f32.mrf.mxu0
  %v2120 = vadd.f32 %v2009, %v2119
  %2121 = vmatprep.mubr.bf16.mxu0 %v650
  %2122 = vmatmul.mubr.bf16.gmra.mxu0 %v649
  %v2123 = vpop.f32.mrf.mxu0
  %v2124 = vadd.f32 %v2013, %v2123
  %v2125 = vpop.f32.mrf.mxu0
  %v2126 = vadd.f32 %v2015, %v2125
  %v2127 = vpop.f32.mrf.mxu0
  %v2128 = vadd.f32 %v2017, %v2127
  %v2129 = vpop.f32.mrf.mxu0
  %v2130 = vadd.f32 %v2019, %v2129
  %2131 = vmatprep.mubr.bf16.mxu0 %v663
  %2132 = vmatmul.mubr.bf16.gmra.mxu0 %v662
  %v2133 = vpop.f32.mrf.mxu0
  %v2134 = vadd.f32 %v2023, %v2133
  %v2135 = vpop.f32.mrf.mxu0
  %v2136 = vadd.f32 %v2025, %v2135
  %v2137 = vpop.f32.mrf.mxu0
  %v2138 = vadd.f32 %v2027, %v2137
  %v2139 = vpop.f32.mrf.mxu0
  %v2140 = vadd.f32 %v2029, %v2139
  %2141 = vmatprep.mubr.bf16.mxu0 %v676
  %2142 = vmatmul.mubr.bf16.gmra.mxu0 %v675
  %v2143 = vpop.f32.mrf.mxu0
  %v2144 = vadd.f32 %v2033, %v2143
  %v2145 = vpop.f32.mrf.mxu0
  %v2146 = vadd.f32 %v2035, %v2145
  %v2147 = vpop.f32.mrf.mxu0
  %v2148 = vadd.f32 %v2037, %v2147
  %v2149 = vpop.f32.mrf.mxu0
  %v2150 = vadd.f32 %v2039, %v2149
  %2151 = vmatprep.mubr.bf16.mxu0 %v689
  %2152 = vmatmul.mubr.bf16.gmra.mxu0 %v688
  %v2153 = vpop.f32.mrf.mxu0
  %v2154 = vadd.f32 %v2043, %v2153
  %v2155 = vpop.f32.mrf.mxu0
  %v2156 = vadd.f32 %v2045, %v2155
  %v2157 = vpop.f32.mrf.mxu0
  %v2158 = vadd.f32 %v2047, %v2157
  %v2159 = vpop.f32.mrf.mxu0
  %v2160 = vadd.f32 %v2049, %v2159
  %2161 = vmatprep.mubr.bf16.mxu0 %v702
  %2162 = vmatmul.mubr.bf16.gmra.mxu0 %v701
  %v2163 = vpop.f32.mrf.mxu0
  %v2164 = vadd.f32 %v2053, %v2163
  %v2165 = vpop.f32.mrf.mxu0
  %v2166 = vadd.f32 %v2055, %v2165
  %v2167 = vpop.f32.mrf.mxu0
  %v2168 = vadd.f32 %v2057, %v2167
  %v2169 = vpop.f32.mrf.mxu0
  %v2170 = vadd.f32 %v2059, %v2169
  %2171 = vmatprep.mubr.bf16.mxu0 %v715
  %2172 = vmatmul.mubr.bf16.gmra.mxu0 %v714
  %v2173 = vpop.f32.mrf.mxu0
  %v2174 = vadd.f32 %v2063, %v2173
  %v2175 = vpop.f32.mrf.mxu0
  %v2176 = vadd.f32 %v2065, %v2175
  %v2177 = vpop.f32.mrf.mxu0
  %v2178 = vadd.f32 %v2067, %v2177
  %v2179 = vpop.f32.mrf.mxu0
  %v2180 = vadd.f32 %v2069, %v2179
  %2181 = vmatprep.mubr.bf16.mxu0 %v728
  %2182 = vmatmul.mubr.bf16.gmra.mxu0 %v727
  %v2183 = vpop.f32.mrf.mxu0
  %v2184 = vadd.f32 %v2073, %v2183
  %v2185 = vpop.f32.mrf.mxu0
  %v2186 = vadd.f32 %v2075, %v2185
  %v2187 = vpop.f32.mrf.mxu0
  %v2188 = vpop.f32.mrf.mxu0
  %2189 = vdwg.mxu0
  %2190 = vmatprep.subr.bf16.mxu0 %v1543
  %2191 = vmatpush1.bf16.msra.mxu0 %v1542
  %2192 = vmatprep.subr.bf16.mxu0 %v1541
  %2193 = vmatpush1.bf16.msra.mxu0 %v1540
  %2194 = vmatprep.subr.bf16.mxu0 %v1539
  %2195 = vmatpush1.bf16.msra.mxu0 %v1538
  %2196 = vmatprep.subr.bf16.mxu0 %v1537
  %2197 = vmatpush1.bf16.msra.mxu0 %v1536
  %2198 = vmatprep.subr.bf16.mxu0 %v1535
  %2199 = vmatpush1.bf16.msra.mxu0 %v1534
  %2200 = vmatprep.subr.bf16.mxu0 %v1533
  %2201 = vmatpush1.bf16.msra.mxu0 %v1532
  %2202 = vmatprep.subr.bf16.mxu0 %v1531
  %2203 = vmatpush1.bf16.msra.mxu0 %v1530
  %2204 = vmatprep.subr.bf16.mxu0 %v1529
  %2205 = vmatpush1.bf16.msra.mxu0 %v1528
  %2206 = vmatprep.subr.bf16.mxu0 %v1559
  %2207 = vmatpush2.bf16.msra.mxu0 %v1558
  %2208 = vmatprep.subr.bf16.mxu0 %v1557
  %2209 = vmatpush2.bf16.msra.mxu0 %v1556
  %2210 = vmatprep.subr.bf16.mxu0 %v1555
  %2211 = vmatpush2.bf16.msra.mxu0 %v1554
  %2212 = vmatprep.subr.bf16.mxu0 %v1553
  %2213 = vmatpush2.bf16.msra.mxu0 %v1552
  %2214 = vmatprep.subr.bf16.mxu0 %v1551
  %2215 = vmatpush2.bf16.msra.mxu0 %v1550
  %2216 = vmatprep.subr.bf16.mxu0 %v1549
  %2217 = vmatpush2.bf16.msra.mxu0 %v1548
  %2218 = vmatprep.subr.bf16.mxu0 %v1547
  %2219 = vmatpush2.bf16.msra.mxu0 %v1546
  %2220 = vmatprep.subr.bf16.mxu0 %v1545
  %2221 = vmatpush2.bf16.msra.mxu0 %v1544
  %2222 = vmatprep.mubr.bf16.mxu0 %v639
  %2223 = vmatmul.mubr.bf16.gmra.mxu0 %v638
  %v2224 = vpop.f32.mrf.mxu0
  %v2225 = vadd.f32 %v2114, %v2224
  %v2226 = vpop.f32.mrf.mxu0
  %v2227 = vadd.f32 %v2116, %v2226
  %v2228 = vpop.f32.mrf.mxu0
  %v2229 = vadd.f32 %v2118, %v2228
  %v2230 = vpop.f32.mrf.mxu0
  %v2231 = vadd.f32 %v2120, %v2230
  %2232 = vmatprep.mubr.bf16.mxu0 %v652
  %2233 = vmatmul.mubr.bf16.gmra.mxu0 %v651
  %v2234 = vpop.f32.mrf.mxu0
  %v2235 = vadd.f32 %v2124, %v2234
  %v2236 = vpop.f32.mrf.mxu0
  %v2237 = vadd.f32 %v2126, %v2236
  %v2238 = vpop.f32.mrf.mxu0
  %v2239 = vadd.f32 %v2128, %v2238
  %v2240 = vpop.f32.mrf.mxu0
  %v2241 = vadd.f32 %v2130, %v2240
  %2242 = vmatprep.mubr.bf16.mxu0 %v665
  %2243 = vmatmul.mubr.bf16.gmra.mxu0 %v664
  %v2244 = vpop.f32.mrf.mxu0
  %v2245 = vadd.f32 %v2134, %v2244
  %v2246 = vpop.f32.mrf.mxu0
  %v2247 = vadd.f32 %v2136, %v2246
  %v2248 = vpop.f32.mrf.mxu0
  %v2249 = vadd.f32 %v2138, %v2248
  %v2250 = vpop.f32.mrf.mxu0
  %v2251 = vadd.f32 %v2140, %v2250
  %2252 = vmatprep.mubr.bf16.mxu0 %v678
  %2253 = vmatmul.mubr.bf16.gmra.mxu0 %v677
  %v2254 = vpop.f32.mrf.mxu0
  %v2255 = vadd.f32 %v2144, %v2254
  %v2256 = vpop.f32.mrf.mxu0
  %v2257 = vadd.f32 %v2146, %v2256
  %v2258 = vpop.f32.mrf.mxu0
  %v2259 = vadd.f32 %v2148, %v2258
  %v2260 = vpop.f32.mrf.mxu0
  %v2261 = vadd.f32 %v2150, %v2260
  %2262 = vmatprep.mubr.bf16.mxu0 %v691
  %2263 = vmatmul.mubr.bf16.gmra.mxu0 %v690
  %v2264 = vpop.f32.mrf.mxu0
  %v2265 = vadd.f32 %v2154, %v2264
  %v2266 = vpop.f32.mrf.mxu0
  %v2267 = vadd.f32 %v2156, %v2266
  %v2268 = vpop.f32.mrf.mxu0
  %v2269 = vadd.f32 %v2158, %v2268
  %v2270 = vpop.f32.mrf.mxu0
  %v2271 = vadd.f32 %v2160, %v2270
  %2272 = vmatprep.mubr.bf16.mxu0 %v704
  %2273 = vmatmul.mubr.bf16.gmra.mxu0 %v703
  %v2274 = vpop.f32.mrf.mxu0
  %v2275 = vadd.f32 %v2164, %v2274
  %v2276 = vpop.f32.mrf.mxu0
  %v2277 = vadd.f32 %v2166, %v2276
  %v2278 = vpop.f32.mrf.mxu0
  %v2279 = vadd.f32 %v2168, %v2278
  %v2280 = vpop.f32.mrf.mxu0
  %v2281 = vadd.f32 %v2170, %v2280
  %2282 = vmatprep.mubr.bf16.mxu0 %v717
  %2283 = vmatmul.mubr.bf16.gmra.mxu0 %v716
  %v2284 = vpop.f32.mrf.mxu0
  %v2285 = vadd.f32 %v2174, %v2284
  %v2286 = vpop.f32.mrf.mxu0
  %v2287 = vadd.f32 %v2176, %v2286
  %v2288 = vpop.f32.mrf.mxu0
  %v2289 = vadd.f32 %v2178, %v2288
  %v2290 = vpop.f32.mrf.mxu0
  %v2291 = vadd.f32 %v2180, %v2290
  %2292 = vmatprep.mubr.bf16.mxu0 %v730
  %2293 = vmatmul.mubr.bf16.gmra.mxu0 %v729
  %v2294 = vpop.f32.mrf.mxu0
  %v2295 = vadd.f32 %v2184, %v2294
  %v2296 = vpop.f32.mrf.mxu0
  %v2297 = vadd.f32 %v2186, %v2296
  %v2298 = vpop.f32.mrf.mxu0
  %v2299 = vpop.f32.mrf.mxu0
  %2300 = vdwg.mxu0
  %2301 = vmatprep.subr.bf16.mxu0 %v1575
  %2302 = vmatpush1.bf16.msra.mxu0 %v1574
  %2303 = vmatprep.subr.bf16.mxu0 %v1573
  %2304 = vmatpush1.bf16.msra.mxu0 %v1572
  %2305 = vmatprep.subr.bf16.mxu0 %v1571
  %2306 = vmatpush1.bf16.msra.mxu0 %v1570
  %2307 = vmatprep.subr.bf16.mxu0 %v1569
  %2308 = vmatpush1.bf16.msra.mxu0 %v1568
  %2309 = vmatprep.subr.bf16.mxu0 %v1567
  %2310 = vmatpush1.bf16.msra.mxu0 %v1566
  %2311 = vmatprep.subr.bf16.mxu0 %v1565
  %2312 = vmatpush1.bf16.msra.mxu0 %v1564
  %2313 = vmatprep.subr.bf16.mxu0 %v1563
  %2314 = vmatpush1.bf16.msra.mxu0 %v1562
  %2315 = vmatprep.subr.bf16.mxu0 %v1561
  %2316 = vmatpush1.bf16.msra.mxu0 %v1560
  %2317 = vmatprep.subr.bf16.mxu0 %v1591
  %2318 = vmatpush2.bf16.msra.mxu0 %v1590
  %2319 = vmatprep.subr.bf16.mxu0 %v1589
  %2320 = vmatpush2.bf16.msra.mxu0 %v1588
  %2321 = vmatprep.subr.bf16.mxu0 %v1587
  %2322 = vmatpush2.bf16.msra.mxu0 %v1586
  %2323 = vmatprep.subr.bf16.mxu0 %v1585
  %2324 = vmatpush2.bf16.msra.mxu0 %v1584
  %2325 = vmatprep.subr.bf16.mxu0 %v1583
  %2326 = vmatpush2.bf16.msra.mxu0 %v1582
  %2327 = vmatprep.subr.bf16.mxu0 %v1581
  %2328 = vmatpush2.bf16.msra.mxu0 %v1580
  %2329 = vmatprep.subr.bf16.mxu0 %v1579
  %2330 = vmatpush2.bf16.msra.mxu0 %v1578
  %2331 = vmatprep.subr.bf16.mxu0 %v1577
  %2332 = vmatpush2.bf16.msra.mxu0 %v1576
  %2333 = vmatprep.mubr.bf16.mxu0 %v641
  %2334 = vmatmul.mubr.bf16.gmra.mxu0 %v640
  %v2335 = vpop.f32.mrf.mxu0
  %v2336 = vadd.f32 %v2225, %v2335
  %v2337 = vpop.f32.mrf.mxu0
  %v2338 = vadd.f32 %v2227, %v2337
  %v2339 = vpop.f32.mrf.mxu0
  %v2340 = vadd.f32 %v2229, %v2339
  %v2341 = vpop.f32.mrf.mxu0
  %v2342 = vadd.f32 %v2231, %v2341
  %2343 = vmatprep.mubr.bf16.mxu0 %v654
  %2344 = vmatmul.mubr.bf16.gmra.mxu0 %v653
  %v2345 = vpop.f32.mrf.mxu0
  %v2346 = vadd.f32 %v2235, %v2345
  %v2347 = vpop.f32.mrf.mxu0
  %v2348 = vadd.f32 %v2237, %v2347
  %v2349 = vpop.f32.mrf.mxu0
  %v2350 = vadd.f32 %v2239, %v2349
  %v2351 = vpop.f32.mrf.mxu0
  %v2352 = vadd.f32 %v2241, %v2351
  %2353 = vmatprep.mubr.bf16.mxu0 %v667
  %2354 = vmatmul.mubr.bf16.gmra.mxu0 %v666
  %v2355 = vpop.f32.mrf.mxu0
  %v2356 = vadd.f32 %v2245, %v2355
  %v2357 = vpop.f32.mrf.mxu0
  %v2358 = vadd.f32 %v2247, %v2357
  %v2359 = vpop.f32.mrf.mxu0
  %v2360 = vadd.f32 %v2249, %v2359
  %v2361 = vpop.f32.mrf.mxu0
  %v2362 = vadd.f32 %v2251, %v2361
  %2363 = vmatprep.mubr.bf16.mxu0 %v680
  %2364 = vmatmul.mubr.bf16.gmra.mxu0 %v679
  %v2365 = vpop.f32.mrf.mxu0
  %v2366 = vadd.f32 %v2255, %v2365
  %v2367 = vpop.f32.mrf.mxu0
  %v2368 = vadd.f32 %v2257, %v2367
  %v2369 = vpop.f32.mrf.mxu0
  %v2370 = vadd.f32 %v2259, %v2369
  %v2371 = vpop.f32.mrf.mxu0
  %v2372 = vadd.f32 %v2261, %v2371
  %2373 = vmatprep.mubr.bf16.mxu0 %v693
  %2374 = vmatmul.mubr.bf16.gmra.mxu0 %v692
  %v2375 = vpop.f32.mrf.mxu0
  %v2376 = vadd.f32 %v2265, %v2375
  %v2377 = vpop.f32.mrf.mxu0
  %v2378 = vadd.f32 %v2267, %v2377
  %v2379 = vpop.f32.mrf.mxu0
  %v2380 = vadd.f32 %v2269, %v2379
  %v2381 = vpop.f32.mrf.mxu0
  %v2382 = vadd.f32 %v2271, %v2381
  %2383 = vmatprep.mubr.bf16.mxu0 %v706
  %2384 = vmatmul.mubr.bf16.gmra.mxu0 %v705
  %v2385 = vpop.f32.mrf.mxu0
  %v2386 = vadd.f32 %v2275, %v2385
  %v2387 = vpop.f32.mrf.mxu0
  %v2388 = vadd.f32 %v2277, %v2387
  %v2389 = vpop.f32.mrf.mxu0
  %v2390 = vadd.f32 %v2279, %v2389
  %v2391 = vpop.f32.mrf.mxu0
  %v2392 = vadd.f32 %v2281, %v2391
  %2393 = vmatprep.mubr.bf16.mxu0 %v719
  %2394 = vmatmul.mubr.bf16.gmra.mxu0 %v718
  %v2395 = vpop.f32.mrf.mxu0
  %v2396 = vadd.f32 %v2285, %v2395
  %v2397 = vpop.f32.mrf.mxu0
  %v2398 = vadd.f32 %v2287, %v2397
  %v2399 = vpop.f32.mrf.mxu0
  %v2400 = vadd.f32 %v2289, %v2399
  %v2401 = vpop.f32.mrf.mxu0
  %v2402 = vadd.f32 %v2291, %v2401
  %2403 = vmatprep.mubr.bf16.mxu0 %v732
  %2404 = vmatmul.mubr.bf16.gmra.mxu0 %v731
  %v2405 = vpop.f32.mrf.mxu0
  %v2406 = vadd.f32 %v2295, %v2405
  %v2407 = vpop.f32.mrf.mxu0
  %v2408 = vadd.f32 %v2297, %v2407
  %v2409 = vpop.f32.mrf.mxu0
  %v2410 = vpop.f32.mrf.mxu0
  %2411 = vdwg.mxu0
  %2412 = vmatprep.subr.bf16.mxu0 %v1607
  %2413 = vmatpush1.bf16.msra.mxu0 %v1606
  %2414 = vmatprep.subr.bf16.mxu0 %v1605
  %2415 = vmatpush1.bf16.msra.mxu0 %v1604
  %2416 = vmatprep.subr.bf16.mxu0 %v1603
  %2417 = vmatpush1.bf16.msra.mxu0 %v1602
  %2418 = vmatprep.subr.bf16.mxu0 %v1601
  %2419 = vmatpush1.bf16.msra.mxu0 %v1600
  %2420 = vmatprep.subr.bf16.mxu0 %v1599
  %2421 = vmatpush1.bf16.msra.mxu0 %v1598
  %2422 = vmatprep.subr.bf16.mxu0 %v1597
  %2423 = vmatpush1.bf16.msra.mxu0 %v1596
  %2424 = vmatprep.subr.bf16.mxu0 %v1595
  %2425 = vmatpush1.bf16.msra.mxu0 %v1594
  %2426 = vmatprep.subr.bf16.mxu0 %v1593
  %2427 = vmatpush1.bf16.msra.mxu0 %v1592
  %2428 = vmatprep.subr.bf16.mxu0 %v1623
  %2429 = vmatpush2.bf16.msra.mxu0 %v1622
  %2430 = vmatprep.subr.bf16.mxu0 %v1621
  %2431 = vmatpush2.bf16.msra.mxu0 %v1620
  %2432 = vmatprep.subr.bf16.mxu0 %v1619
  %2433 = vmatpush2.bf16.msra.mxu0 %v1618
  %2434 = vmatprep.subr.bf16.mxu0 %v1617
  %2435 = vmatpush2.bf16.msra.mxu0 %v1616
  %2436 = vmatprep.subr.bf16.mxu0 %v1615
  %2437 = vmatpush2.bf16.msra.mxu0 %v1614
  %2438 = vmatprep.subr.bf16.mxu0 %v1613
  %2439 = vmatpush2.bf16.msra.mxu0 %v1612
  %2440 = vmatprep.subr.bf16.mxu0 %v1611
  %2441 = vmatpush2.bf16.msra.mxu0 %v1610
  %2442 = vmatprep.subr.bf16.mxu0 %v1609
  %2443 = vmatpush2.bf16.msra.mxu0 %v1608
  %2444 = vmatprep.mubr.bf16.mxu0 %v643
  %2445 = vmatmul.mubr.bf16.gmra.mxu0 %v642
  %v2446 = vpop.f32.mrf.mxu0
  %v2447 = vadd.f32 %v2336, %v2446
  %v2448 = vpop.f32.mrf.mxu0
  %v2449 = vadd.f32 %v2338, %v2448
  %v2450 = vpop.f32.mrf.mxu0
  %v2451 = vadd.f32 %v2340, %v2450
  %v2452 = vpop.f32.mrf.mxu0
  %v2453 = vadd.f32 %v2342, %v2452
  %2454 = vmatprep.mubr.bf16.mxu0 %v656
  %2455 = vmatmul.mubr.bf16.gmra.mxu0 %v655
  %v2456 = vpop.f32.mrf.mxu0
  %v2457 = vadd.f32 %v2346, %v2456
  %v2458 = vpop.f32.mrf.mxu0
  %v2459 = vadd.f32 %v2348, %v2458
  %v2460 = vpop.f32.mrf.mxu0
  %v2461 = vadd.f32 %v2350, %v2460
  %v2462 = vpop.f32.mrf.mxu0
  %v2463 = vadd.f32 %v2352, %v2462
  %2464 = vmatprep.mubr.bf16.mxu0 %v669
  %2465 = vmatmul.mubr.bf16.gmra.mxu0 %v668
  %v2466 = vpop.f32.mrf.mxu0
  %v2467 = vadd.f32 %v2356, %v2466
  %v2468 = vpop.f32.mrf.mxu0
  %v2469 = vadd.f32 %v2358, %v2468
  %v2470 = vpop.f32.mrf.mxu0
  %v2471 = vadd.f32 %v2360, %v2470
  %v2472 = vpop.f32.mrf.mxu0
  %v2473 = vadd.f32 %v2362, %v2472
  %2474 = vmatprep.mubr.bf16.mxu0 %v682
  %2475 = vmatmul.mubr.bf16.gmra.mxu0 %v681
  %v2476 = vpop.f32.mrf.mxu0
  %v2477 = vadd.f32 %v2366, %v2476
  %v2478 = vpop.f32.mrf.mxu0
  %v2479 = vadd.f32 %v2368, %v2478
  %v2480 = vpop.f32.mrf.mxu0
  %v2481 = vadd.f32 %v2370, %v2480
  %v2482 = vpop.f32.mrf.mxu0
  %v2483 = vadd.f32 %v2372, %v2482
  %2484 = vmatprep.mubr.bf16.mxu0 %v695
  %2485 = vmatmul.mubr.bf16.gmra.mxu0 %v694
  %v2486 = vpop.f32.mrf.mxu0
  %v2487 = vadd.f32 %v2376, %v2486
  %v2488 = vpop.f32.mrf.mxu0
  %v2489 = vadd.f32 %v2378, %v2488
  %v2490 = vpop.f32.mrf.mxu0
  %v2491 = vadd.f32 %v2380, %v2490
  %v2492 = vpop.f32.mrf.mxu0
  %v2493 = vadd.f32 %v2382, %v2492
  %2494 = vmatprep.mubr.bf16.mxu0 %v708
  %2495 = vmatmul.mubr.bf16.gmra.mxu0 %v707
  %v2496 = vpop.f32.mrf.mxu0
  %v2497 = vadd.f32 %v2386, %v2496
  %v2498 = vpop.f32.mrf.mxu0
  %v2499 = vadd.f32 %v2388, %v2498
  %v2500 = vpop.f32.mrf.mxu0
  %v2501 = vadd.f32 %v2390, %v2500
  %v2502 = vpop.f32.mrf.mxu0
  %v2503 = vadd.f32 %v2392, %v2502
  %2504 = vmatprep.mubr.bf16.mxu0 %v721
  %2505 = vmatmul.mubr.bf16.gmra.mxu0 %v720
  %v2506 = vpop.f32.mrf.mxu0
  %v2507 = vadd.f32 %v2396, %v2506
  %v2508 = vpop.f32.mrf.mxu0
  %v2509 = vadd.f32 %v2398, %v2508
  %v2510 = vpop.f32.mrf.mxu0
  %v2511 = vadd.f32 %v2400, %v2510
  %v2512 = vpop.f32.mrf.mxu0
  %v2513 = vadd.f32 %v2402, %v2512
  %2514 = vmatprep.mubr.bf16.mxu0 %v734
  %2515 = vmatmul.mubr.bf16.gmra.mxu0 %v733
  %v2516 = vpop.f32.mrf.mxu0
  %v2517 = vadd.f32 %v2406, %v2516
  %v2518 = vpop.f32.mrf.mxu0
  %v2519 = vadd.f32 %v2408, %v2518
  %v2520 = vpop.f32.mrf.mxu0
  %v2521 = vpop.f32.mrf.mxu0
  %2522 = vdwg.mxu0
  %2523 = vmatprep.subr.bf16.mxu0 0
  %2524 = vmatpush1.bf16.msra.mxu0 0
  %2525 = vmatprep.subr.bf16.mxu0 0
  %2526 = vmatpush1.bf16.msra.mxu0 0
  %2527 = vmatprep.subr.bf16.mxu0 0
  %2528 = vmatpush1.bf16.msra.mxu0 0
  %2529 = vmatprep.subr.bf16.mxu0 0
  %2530 = vmatpush1.bf16.msra.mxu0 0
  %2531 = vmatprep.subr.bf16.mxu0 %v1631
  %2532 = vmatpush1.bf16.msra.mxu0 %v1630
  %2533 = vmatprep.subr.bf16.mxu0 %v1629
  %2534 = vmatpush1.bf16.msra.mxu0 %v1628
  %2535 = vmatprep.subr.bf16.mxu0 %v1627
  %2536 = vmatpush1.bf16.msra.mxu0 %v1626
  %2537 = vmatprep.subr.bf16.mxu0 %v1625
  %2538 = vmatpush1.bf16.msra.mxu0 %v1624
  %2539 = vmatprep.subr.bf16.mxu0 0
  %2540 = vmatpush2.bf16.msra.mxu0 0
  %2541 = vmatprep.subr.bf16.mxu0 0
  %2542 = vmatpush2.bf16.msra.mxu0 0
  %2543 = vmatprep.subr.bf16.mxu0 0
  %2544 = vmatpush2.bf16.msra.mxu0 0
  %2545 = vmatprep.subr.bf16.mxu0 0
  %2546 = vmatpush2.bf16.msra.mxu0 0
  %2547 = vmatprep.subr.bf16.mxu0 0
  %2548 = vmatpush2.bf16.msra.mxu0 0
  %2549 = vmatprep.subr.bf16.mxu0 0
  %2550 = vmatpush2.bf16.msra.mxu0 0
  %2551 = vmatprep.subr.bf16.mxu0 0
  %2552 = vmatpush2.bf16.msra.mxu0 0
  %2553 = vmatprep.subr.bf16.mxu0 0
  %2554 = vmatpush2.bf16.msra.mxu0 0
  %2555 = vmatprep.mubr.bf16.mxu0 0
  %2556 = vmatmul.mubr.bf16.gmra.mxu0 %v1834
  %v2557 = vpop.f32.mrf.mxu0
  %v2558 = vadd.f32 %v2447, %v2557
  %v2559 = vpop.f32.mrf.mxu0
  %v2560 = vadd.f32 %v2449, %v2559
  %v2561 = vpop.f32.mrf.mxu0
  %v2562 = vadd.f32 %v2451, %v2561
  %v2563 = vpop.f32.mrf.mxu0
  %v2564 = vadd.f32 %v2453, %v2563
  %2565 = vmatprep.mubr.bf16.mxu0 0
  %2566 = vmatmul.mubr.bf16.gmra.mxu0 %v1837
  %v2567 = vpop.f32.mrf.mxu0
  %v2568 = vadd.f32 %v2457, %v2567
  %v2569 = vpop.f32.mrf.mxu0
  %v2570 = vadd.f32 %v2459, %v2569
  %v2571 = vpop.f32.mrf.mxu0
  %v2572 = vadd.f32 %v2461, %v2571
  %v2573 = vpop.f32.mrf.mxu0
  %v2574 = vadd.f32 %v2463, %v2573
  %2575 = vmatprep.mubr.bf16.mxu0 0
  %2576 = vmatmul.mubr.bf16.gmra.mxu0 %v1840
  %v2577 = vpop.f32.mrf.mxu0
  %v2578 = vadd.f32 %v2467, %v2577
  %v2579 = vpop.f32.mrf.mxu0
  %v2580 = vadd.f32 %v2469, %v2579
  %v2581 = vpop.f32.mrf.mxu0
  %v2582 = vadd.f32 %v2471, %v2581
  %v2583 = vpop.f32.mrf.mxu0
  %v2584 = vadd.f32 %v2473, %v2583
  %2585 = vmatprep.mubr.bf16.mxu0 0
  %2586 = vmatmul.mubr.bf16.gmra.mxu0 %v1843
  %v2587 = vpop.f32.mrf.mxu0
  %v2588 = vadd.f32 %v2477, %v2587
  %v2589 = vpop.f32.mrf.mxu0
  %v2590 = vadd.f32 %v2479, %v2589
  %v2591 = vpop.f32.mrf.mxu0
  %v2592 = vadd.f32 %v2481, %v2591
  %v2593 = vpop.f32.mrf.mxu0
  %v2594 = vadd.f32 %v2483, %v2593
  %2595 = vmatprep.mubr.bf16.mxu0 0
  %2596 = vmatmul.mubr.bf16.gmra.mxu0 %v1846
  %v2597 = vpop.f32.mrf.mxu0
  %v2598 = vadd.f32 %v2487, %v2597
  %v2599 = vpop.f32.mrf.mxu0
  %v2600 = vadd.f32 %v2489, %v2599
  %v2601 = vpop.f32.mrf.mxu0
  %v2602 = vadd.f32 %v2491, %v2601
  %v2603 = vpop.f32.mrf.mxu0
  %v2604 = vadd.f32 %v2493, %v2603
  %2605 = vmatprep.mubr.bf16.mxu0 0
  %2606 = vmatmul.mubr.bf16.gmra.mxu0 %v1849
  %v2607 = vpop.f32.mrf.mxu0
  %v2608 = vadd.f32 %v2497, %v2607
  %v2609 = vpop.f32.mrf.mxu0
  %v2610 = vadd.f32 %v2499, %v2609
  %v2611 = vpop.f32.mrf.mxu0
  %v2612 = vadd.f32 %v2501, %v2611
  %v2613 = vpop.f32.mrf.mxu0
  %v2614 = vadd.f32 %v2503, %v2613
  %2615 = vmatprep.mubr.bf16.mxu0 0
  %2616 = vmatmul.mubr.bf16.gmra.mxu0 %v1852
  %v2617 = vpop.f32.mrf.mxu0
  %v2618 = vadd.f32 %v2507, %v2617
  %v2619 = vpop.f32.mrf.mxu0
  %v2620 = vadd.f32 %v2509, %v2619
  %v2621 = vpop.f32.mrf.mxu0
  %v2622 = vadd.f32 %v2511, %v2621
  %v2623 = vpop.f32.mrf.mxu0
  %v2624 = vadd.f32 %v2513, %v2623
  %2625 = vmatprep.mubr.bf16.mxu0 0
  %2626 = vmatmul.mubr.bf16.gmra.mxu0 %v1855
  %v2627 = vpop.f32.mrf.mxu0
  %v2628 = vadd.f32 %v2517, %v2627
  %v2629 = vpop.f32.mrf.mxu0
  %v2630 = vadd.f32 %v2519, %v2629
  %v2631 = vpop.f32.mrf.mxu0
  %v2632 = vpop.f32.mrf.mxu0
  %2633 = vdwg.mxu0
  %v2634 = vpack.c.bf16 %v2562, %v2558
  %v2635 = vpack.c.bf16 %v2564, %v2560
  %v2636 = vpack.c.bf16 %v2572, %v2568
  %v2637 = vpack.c.bf16 %v2574, %v2570
  %v2638 = vpack.c.bf16 %v2582, %v2578
  %v2639 = vpack.c.bf16 %v2584, %v2580
  %v2640 = vpack.c.bf16 %v2592, %v2588
  %v2641 = vpack.c.bf16 %v2594, %v2590
  %v2642 = vpack.c.bf16 %v2602, %v2598
  %v2643 = vpack.c.bf16 %v2604, %v2600
  %v2644 = vpack.c.bf16 %v2612, %v2608
  %v2645 = vpack.c.bf16 %v2614, %v2610
  %v2646 = vpack.c.bf16 %v2622, %v2618
  %v2647 = vpack.c.bf16 %v2624, %v2620
  %v2648 = vpack.c.bf16 %v2628, %v2628
  %v2649 = vpack.c.bf16 %v2630, %v2630
  %v2666 = vunpack.c.l.b16 %v2634
  %v2667 = vunpack.c.l.b16 %v2635
  %v2668 = vunpack.c.h.b16 %v2634
  %v2669 = vunpack.c.h.b16 %v2635
  %v2670 = vunpack.c.l.b16 %v2636
  %v2671 = vunpack.c.l.b16 %v2637
  %v2672 = vunpack.c.h.b16 %v2636
  %v2673 = vunpack.c.h.b16 %v2637
  %v2674 = vunpack.c.l.b16 %v2638
  %v2675 = vunpack.c.l.b16 %v2639
  %v2676 = vunpack.c.h.b16 %v2638
  %v2677 = vunpack.c.h.b16 %v2639
  %v2678 = vunpack.c.l.b16 %v2640
  %v2679 = vunpack.c.l.b16 %v2641
  %v2680 = vunpack.c.h.b16 %v2640
  %v2681 = vunpack.c.h.b16 %v2641
  %v2682 = vunpack.c.l.b16 %v2642
  %v2683 = vunpack.c.l.b16 %v2643
  %v2684 = vunpack.c.h.b16 %v2642
  %v2685 = vunpack.c.h.b16 %v2643
  %v2686 = vunpack.c.l.b16 %v2644
  %v2687 = vunpack.c.l.b16 %v2645
  %v2688 = vunpack.c.h.b16 %v2644
  %v2689 = vunpack.c.h.b16 %v2645
  %v2690 = vunpack.c.l.b16 %v2646
  %v2691 = vunpack.c.l.b16 %v2647
  %v2692 = vunpack.c.h.b16 %v2646
  %v2693 = vunpack.c.h.b16 %v2647
  %v2694 = vunpack.c.l.b16 %v2648
  %v2695 = vunpack.c.l.b16 %v2649
  %v2696 = vpack.c.b16 %v2667, %v2666
  %v2697 = vpack.c.b16 %v2669, %v2668
  %v2698 = vpack.c.b16 %v2671, %v2670
  %v2699 = vpack.c.b16 %v2673, %v2672
  %v2700 = vpack.c.b16 %v2675, %v2674
  %v2701 = vpack.c.b16 %v2677, %v2676
  %v2702 = vpack.c.b16 %v2679, %v2678
  %v2703 = vpack.c.b16 %v2681, %v2680
  %v2704 = vpack.c.b16 %v2683, %v2682
  %v2705 = vpack.c.b16 %v2685, %v2684
  %v2706 = vpack.c.b16 %v2687, %v2686
  %v2707 = vpack.c.b16 %v2689, %v2688
  %v2708 = vpack.c.b16 %v2691, %v2690
  %v2709 = vpack.c.b16 %v2693, %v2692
  %v2710 = vpack.c.b16 %v2695, %v2694
  %2726 = vst [vmem:[%s3] sm:$0xff] %v2696
  %2727 = vst [vmem:[%s3 + $0x8] sm:$0xff] %v2697
  %2728 = vst [vmem:[%s3 + $0x10] sm:$0xff] %v2698
  %2729 = vst [vmem:[%s3 + $0x18] sm:$0xff] %v2699
  %2730 = vst [vmem:[%s3 + $0x20] sm:$0xff] %v2700
  %2731 = vst [vmem:[%s3 + $0x28] sm:$0xff] %v2701
  %2732 = vst [vmem:[%s3 + $0x30] sm:$0xff] %v2702
  %2733 = vst [vmem:[%s3 + $0x38] sm:$0xff] %v2703
  %2734 = vst [vmem:[%s3 + $0x40] sm:$0xff] %v2704
  %2735 = vst [vmem:[%s3 + $0x48] sm:$0xff] %v2705
  %2736 = vst [vmem:[%s3 + $0x50] sm:$0xff] %v2706
  %2737 = vst [vmem:[%s3 + $0x58] sm:$0xff] %v2707
  %2738 = vst [vmem:[%s3 + $0x60] sm:$0xff] %v2708
  %2739 = vst [vmem:[%s3 + $0x68] sm:$0xff] %v2709
  %2740 = vst [vmem:[%s3 + $0x70] sm:$0x77] %v2710
  // Predicated region
  $region14: #{lstm_forward.2} parent=0 // pred_check
    _
  $region15: #{lstm_forward.2} parent=0 // pred_check_branch
    %2742 = sbr.rel (0) target = $region17
  $region16: #{lstm_forward.2} parent=0 // pred_region
    _
  $region17: #{lstm_forward.2} parent=0 // pred_fallthru
    _
  // Predicated region
  $region18: #{lstm_forward.2} parent=0 // pred_check
    _
  $region19: #{lstm_forward.2} parent=0 // pred_check_branch
    %2744 = sbr.rel (0) target = $region21
  $region20: #{lstm_forward.2} parent=0 // pred_region
    _
  $region21: #{lstm_forward.2} parent=0 // pred_fallthru
    _

// kernel: lstm_forward.3
$region0: #{lstm_forward.3}
  #allocation0 [shape = 'u32[]', space=smem, size = 0x4, offset = 0x4, fixed_abs, tag = 'smem constant byte address 0x4 - core index']
  #allocation1 [shape = 'u32[144,128]{1,0:T(1,128)}', space=vmem, size = 0x12000, scoped, tag = 'internal scratch']
  #allocation2 [shape = 'f32[2,64]{1,0:T(2,128)}', space=vmem, size = 0x400, scoped, tag = 'scratch operand']
  #allocation3 [shape = 'f32[2,64]{1,0:T(2,128)}', space=vmem, size = 0x400, scoped, tag = 'scratch operand']
  #allocation4 [shape = 'f32[2,128]{1,0:T(2,128)}', space=vmem, size = 0x400, scoped, tag = 'scratch operand']
  %s0 = inlined_call_operand.vmem [shape: bf16[2,59,256], index: 0, kind: input, shape index: {}]
  %s1 = inlined_call_operand.vmem [shape: bf16[64,256], index: 1, kind: input, shape index: {}]
  %s2 = inlined_call_operand.vmem [shape: bf16[64,64,128], index: 2, kind: input, shape index: {}]
  %s3 = inlined_call_operand.vmem [shape: f32[1,128], index: 3, kind: input, shape index: {}]
  %s4 = inlined_call_operand.hbm [shape: f32[2,128], index: 4, kind: output, shape index: {}]
  %s5 = sld [smem:[#allocation0]]
  $region95: #{lstm_forward.3} parent=0
    _
  %s7 = ssub.s32 1, %s5
  %s8 = scalar_select 0, %s7, %s5
  $region1: #{lstm_forward.3} parent=0
    #allocation5 [shape = 'u8[16384]{0}', space=vmem, size = 0x4000, scoped, tag = 'input window, operand 0']
    #allocation6 [shape = 'u8[1024]{0}', space=vmem, size = 0x400, scoped, tag = 'output window, operand 0, single buffered']
    #allocation7 [shape = 's32[2]{0}', space=sflag, size = 0x8, scoped, tag = 'scoped memory for lstm_forward.3']
    %9 = vsyncpa [#allocation7], 0
    loop: start=0, step=1, limit=10
    $region2: #{lstm_forward.3} parent=1 // loop_pre_header
      _
    $region3: #{lstm_forward.3} parent=1 // loop_header
      %s11 = sphi 0, %s15
      %p12 = scmp.ge.s32.totalorder %s11, 10
      %s18 = sphi 0, %s30
      %s19 = sphi 0, %s26
      %s20 = sphi 0, %s18
      %s21 = sphi 0, %s19
      %s22 = sphi 0, %s20
      %s23 = sphi 0, %s21
      %s35 = sphi 0, %s37
      %s38 = sphi 0, %s35
      %s39 = sphi 0, %s38
      %s55 = sphi 0, %s39
      %s59 = sphi 0, %s59
      %s61 = sphi 0, %s59
      %s62 = sphi 0, %s61
      %s76 = sphi 0, %s62
      %s82 = sphi 0, %s84
      %s85 = sphi 0, %s82
      %s86 = sphi 0, %s85
      %s102 = sphi 0, %s86
      %s106 = sphi 0, %s106
      %s108 = sphi 0, %s106
      %s109 = sphi 0, %s108
      %s123 = sphi 0, %s109
      %s129 = sphi 0, %s131
      %s132 = sphi 0, %s129
      %s133 = sphi 0, %s132
      %s149 = sphi 0, %s133
    $region4: #{lstm_forward.3} parent=1 // loop_header_branch
      %14 = sbr.rel (%p12) target = $region8
    $region5: #{lstm_forward.3} parent=1 // loop_body
      %s16 = ssub.s32 %s11, 1
      %s17 = ssub.s32 %s11, 2
      %s24 = sadd.s32 1, %s19
      %p25 = scmp.ge.s32.totalorder %s24, 8
      %s26 = scalar_select %p25, 0, %s24
      %s27 = sadd.s32 1, %s18
      %s28 = scalar_select %p25, %s27, %s18
      %p29 = scmp.ge.s32.totalorder %s28, 1
      %s30 = scalar_select %p29, 0, %s28
      %s31 = ssub.s32 %s18, %s30
      %s32 = ssub.s32 %s19, %s26
      %s33 = sor.u32 %s31, %s32
      %p34 = scmp.eq.s32.totalorder %s33, 0
      %s36 = sadd.s32 %s35, 1
      %s37 = scalar_select %p34, %s35, %s36
      %p40 = pneg %p34
      %p41 = scmp.eq.s32.totalorder %s11, 7
      %p42 = por %p40, %p41
      %p43 = scmp.ne.s32.totalorder %s35, %s38
      %p44 = scmp.eq.s32.totalorder %s11, 0
      %p45 = por %p43, %p44
      %p46 = scmp.ne.s32.totalorder %s35, %s38
      %p47 = scmp.eq.s32.totalorder %s16, 7
      %p48 = por %p46, %p47
      %p49 = scmp.ne.s32.totalorder %s38, %s39
      %p50 = scmp.eq.s32.totalorder %s16, 0
      %p51 = por %p49, %p50
      %p52 = scmp.ne.s32.totalorder %s38, %s39
      %p53 = scmp.eq.s32.totalorder %s17, 7
      %p54 = por %p52, %p53
      %p56 = scmp.ne.s32.totalorder %s39, %s55
      %p57 = scmp.eq.s32.totalorder %s17, 0
      %p58 = por %p56, %p57
      %s60 = sadd.s32 %s59, 1
      %p63 = scmp.eq.s32.totalorder %s11, 7
      %p64 = scmp.ne.s32.totalorder %s59, %s61
      %p65 = scmp.eq.s32.totalorder %s11, 0
      %p66 = por %p64, %p65
      %p67 = scmp.ne.s32.totalorder %s59, %s61
      %p68 = scmp.eq.s32.totalorder %s16, 7
      %p69 = por %p67, %p68
      %p70 = scmp.ne.s32.totalorder %s61, %s62
      %p71 = scmp.eq.s32.totalorder %s16, 0
      %p72 = por %p70, %p71
      %p73 = scmp.ne.s32.totalorder %s61, %s62
      %p74 = scmp.eq.s32.totalorder %s17, 7
      %p75 = por %p73, %p74
      %p77 = scmp.ne.s32.totalorder %s62, %s76
      %p78 = scmp.eq.s32.totalorder %s17, 0
      %p79 = por %p77, %p78
      %s80 = ssub.s32 %s19, %s26
      %p81 = scmp.eq.s32.totalorder %s80, 0
      %s83 = sadd.s32 %s82, 1
      %s84 = scalar_select %p81, %s82, %s83
      %p87 = pneg %p81
      %p88 = scmp.eq.s32.totalorder %s11, 7
      %p89 = por %p87, %p88
      %p90 = scmp.ne.s32.totalorder %s82, %s85
      %p91 = scmp.eq.s32.totalorder %s11, 0
      %p92 = por %p90, %p91
      %p93 = scmp.ne.s32.totalorder %s82, %s85
      %p94 = scmp.eq.s32.totalorder %s16, 7
      %p95 = por %p93, %p94
      %p96 = scmp.ne.s32.totalorder %s85, %s86
      %p97 = scmp.eq.s32.totalorder %s16, 0
      %p98 = por %p96, %p97
      %p99 = scmp.ne.s32.totalorder %s85, %s86
      %p100 = scmp.eq.s32.totalorder %s17, 7
      %p101 = por %p99, %p100
      %p103 = scmp.ne.s32.totalorder %s86, %s102
      %p104 = scmp.eq.s32.totalorder %s17, 0
      %p105 = por %p103, %p104
      %s107 = sadd.s32 %s106, 1
      %p110 = scmp.eq.s32.totalorder %s11, 7
      %p111 = scmp.ne.s32.totalorder %s106, %s108
      %p112 = scmp.eq.s32.totalorder %s11, 0
      %p113 = por %p111, %p112
      %p114 = scmp.ne.s32.totalorder %s106, %s108
      %p115 = scmp.eq.s32.totalorder %s16, 7
      %p116 = por %p114, %p115
      %p117 = scmp.ne.s32.totalorder %s108, %s109
      %p118 = scmp.eq.s32.totalorder %s16, 0
      %p119 = por %p117, %p118
      %p120 = scmp.ne.s32.totalorder %s108, %s109
      %p121 = scmp.eq.s32.totalorder %s17, 7
      %p122 = por %p120, %p121
      %p124 = scmp.ne.s32.totalorder %s109, %s123
      %p125 = scmp.eq.s32.totalorder %s17, 0
      %p126 = por %p124, %p125
      %s127 = ssub.s32 %s18, %s30
      %p128 = scmp.eq.s32.totalorder %s127, 0
      %s130 = sadd.s32 %s129, 1
      %s131 = scalar_select %p128, %s129, %s130
      %p134 = pneg %p128
      %p135 = scmp.eq.s32.totalorder %s11, 7
      %p136 = por %p134, %p135
      %p137 = scmp.ne.s32.totalorder %s129, %s132
      %p138 = scmp.eq.s32.totalorder %s11, 0
      %p139 = por %p137, %p138
      %p140 = scmp.ne.s32.totalorder %s129, %s132
      %p141 = scmp.eq.s32.totalorder %s16, 7
      %p142 = por %p140, %p141
      %p143 = scmp.ne.s32.totalorder %s132, %s133
      %p144 = scmp.eq.s32.totalorder %s16, 0
      %p145 = por %p143, %p144
      %p146 = scmp.ne.s32.totalorder %s132, %s133
      %p147 = scmp.eq.s32.totalorder %s17, 7
      %p148 = por %p146, %p147
      %p150 = scmp.ne.s32.totalorder %s133, %s149
      %p151 = scmp.eq.s32.totalorder %s17, 0
      %p152 = por %p150, %p151
      %p153 = scmp.le.s32.totalorder 1, %s11
      %p154 = scmp.lt.s32.totalorder %s11, 9
      %p155 = pnand %p153, %p154
      %p156 = pneg %p155
      // Predicated region
      $region9: #{lstm_forward.3} parent=5 // pred_check
        _
      $region10: #{lstm_forward.3} parent=5 // pred_check_branch
        %158 = sbr.rel (%p155) target = $region12
      $region11: #{lstm_forward.3} parent=5 // pred_region
        %s159 = ssub.s32 %s11, 1
        // Predicated region
        $region13: #{lstm_forward.3} parent=11 // pred_check
          %p160 = pneg %p72
        $region14: #{lstm_forward.3} parent=11 // pred_check_branch
          %162 = sbr.rel (%p160) target = $region16
        $region15: #{lstm_forward.3} parent=11 // pred_region
          _
        $region16: #{lstm_forward.3} parent=11 // pred_fallthru
          _
        // Predicated region
        $region17: #{lstm_forward.3} parent=11 // pred_check
          %p163 = pneg %p119
        $region18: #{lstm_forward.3} parent=11 // pred_check_branch
          %165 = sbr.rel (%p163) target = $region20
        $region19: #{lstm_forward.3} parent=11 // pred_region
          _
        $region20: #{lstm_forward.3} parent=11 // pred_fallthru
          _
      $region12: #{lstm_forward.3} parent=5 // pred_fallthru
        _
      %p166 = scmp.lt.s32.totalorder %s11, 8
      // Predicated region
      $region21: #{lstm_forward.3} parent=5 // pred_check
        %p167 = pneg %p166
      $region22: #{lstm_forward.3} parent=5 // pred_check_branch
        %169 = sbr.rel (%p167) target = $region24
      $region23: #{lstm_forward.3} parent=5 // pred_region
        // Predicated region
        $region25: #{lstm_forward.3} parent=23 // pred_check
          %p170 = pneg %p45
        $region26: #{lstm_forward.3} parent=23 // pred_check_branch
          %172 = sbr.rel (%p170) target = $region28
        $region27: #{lstm_forward.3} parent=23 // pred_region
          %s173 = sand.u32 %s35, 1
          %s174 = sand.u32 %s35, 1
          %s175 = smul.addr %s174, 16
          %s176 = scalar_lea.vmem [#allocation5], %s175
          %s177 = smul.u32 2, %s18
          %s178 = smul.addr %s19, 2
          %s179 = smul.addr %s177, 16
          %s180 = sadd.s32 %s178, %s179
          %s181 = smul.addr %s180, 4
          %s182 = scalar_lea.vmem %s0, %s181
          // Predicated region
          $region29: #{lstm_forward.3} parent=27 // pred_check
            _
          $region30: #{lstm_forward.3} parent=27 // pred_check_branch
            %184 = sbr.rel (0) target = $region32
          $region31: #{lstm_forward.3} parent=27 // pred_region
            // Predicated region
            $region33: #{lstm_forward.3} parent=31 // pred_check
              _
            $region34: #{lstm_forward.3} parent=31 // pred_check_branch
              %186 = sbr.rel (0) target = $region36
            $region35: #{lstm_forward.3} parent=31 // pred_region
              // Predicated region
              $region48: #{lstm_forward.3} parent=35 // pred_check
                _
              $region49: #{lstm_forward.3} parent=35 // pred_check_branch
                %204 = sbr.rel (0) target = $region51
              $region50: #{lstm_forward.3} parent=35 // pred_region
                loop: start=0, step=1, limit=1
                $region52: #{lstm_forward.3} parent=50 // loop_pre_header
                  _
                $region53: #{lstm_forward.3} parent=50 // loop_header
                  %s206 = sphi 0, %s210
                  %p207 = scmp.ge.s32.totalorder %s206, 1
                  %s211 = sphi %s182, %s182
                  %s212 = sphi %s176, %s176
                $region54: #{lstm_forward.3} parent=50 // loop_header_branch
                  %209 = sbr.rel (%p207) target = $region58
                $region55: #{lstm_forward.3} parent=50 // loop_body
                  %v213 = vld [vmem:[%s211] sm:$0xff]
                  %214 = vst [vmem:[%s212] sm:$0xff] %v213
                  %v215 = vld [vmem:[%s211 + $0x40] sm:$0xff]
                  %216 = vst [vmem:[%s212 + $0x8] sm:$0xff] %v215
                $region56: #{lstm_forward.3} parent=50 // loop_footer
                  %s210 = sadd.s32 1, %s206
                $region57: #{lstm_forward.3} parent=50 // loop_footer_branch
                  %205 = sbr.rel target = $region53
                $region58: #{lstm_forward.3} parent=50 // loop_exit
                  _
              $region51: #{lstm_forward.3} parent=35 // pred_fallthru
                _
              // Predicated region
              $region59: #{lstm_forward.3} parent=35 // pred_check
                _
              $region60: #{lstm_forward.3} parent=35 // pred_check_branch
                %218 = sbr.rel target = $region62
              $region61: #{lstm_forward.3} parent=35 // pred_region
                _
              $region62: #{lstm_forward.3} parent=35 // pred_fallthru
                _
            $region36: #{lstm_forward.3} parent=31 // pred_fallthru
              _
            // Predicated region
            $region37: #{lstm_forward.3} parent=31 // pred_check
              _
            $region38: #{lstm_forward.3} parent=31 // pred_check_branch
              %188 = sbr.rel target = $region40
            $region39: #{lstm_forward.3} parent=31 // pred_region
              %s190 = ssub.s32 256, 1
              loop: start=0, step=1, limit=1
              $region41: #{lstm_forward.3} parent=39 // loop_pre_header
                _
              $region42: #{lstm_forward.3} parent=39 // loop_header
                %s192 = sphi 0, %s196
                %p193 = scmp.ge.s32.totalorder %s192, 1
                %s197 = sphi %s182, %s182
                %s198 = sphi %s176, %s176
              $region43: #{lstm_forward.3} parent=39 // loop_header_branch
                %195 = sbr.rel (%p193) target = $region47
              $region44: #{lstm_forward.3} parent=39 // loop_body
                %v199 = vld [vmem:[%s197] sm:%s190]
                %200 = vst [vmem:[%s198] sm:%s190] %v199
                %v201 = vld [vmem:[%s197 + $0x40] sm:%s190]
                %202 = vst [vmem:[%s198 + $0x8] sm:%s190] %v201
              $region45: #{lstm_forward.3} parent=39 // loop_footer
                %s196 = sadd.s32 1, %s192
              $region46: #{lstm_forward.3} parent=39 // loop_footer_branch
                %191 = sbr.rel target = $region42
              $region47: #{lstm_forward.3} parent=39 // loop_exit
                _
            $region40: #{lstm_forward.3} parent=31 // pred_fallthru
              _
          $region32: #{lstm_forward.3} parent=27 // pred_fallthru
            _
          %219 = vnop
        $region28: #{lstm_forward.3} parent=23 // pred_fallthru
          _
        // Predicated region
        $region63: #{lstm_forward.3} parent=23 // pred_check
          %p220 = pneg %p92
        $region64: #{lstm_forward.3} parent=23 // pred_check_branch
          %222 = sbr.rel (%p220) target = $region66
        $region65: #{lstm_forward.3} parent=23 // pred_region
          %s223 = smul.u32 8, %s19
          %p224 = scmp.lt.s32.totalorder %s223, 63
          %s225 = scalar_select %p224, %s223, 63
          %s226 = smul.addr %s225, 8
          %s227 = smul.addr %s226, 4
          %s228 = scalar_lea.vmem %s2, %s227
          %s229 = smul.u32 8, %s19
        $region66: #{lstm_forward.3} parent=23 // pred_fallthru
          _
      $region24: #{lstm_forward.3} parent=5 // pred_fallthru
        _
      %p230 = scmp.le.s32.totalorder 1, %s11
      %p231 = scmp.lt.s32.totalorder %s11, 9
      %p232 = pnand %p230, %p231
      %p233 = pneg %p232
      // Predicated region
      $region67: #{lstm_forward.3} parent=5 // pred_check
        _
      $region68: #{lstm_forward.3} parent=5 // pred_check_branch
        %235 = sbr.rel (%p232) target = $region70
      $region69: #{lstm_forward.3} parent=5 // pred_region
        %s236 = ssub.s32 %s11, 1
        %s237 = sand.u32 %s38, 1
        %s238 = sand.u32 %s38, 1
        %s239 = smul.addr %s238, 16
        %s240 = scalar_lea.vmem [#allocation5], %s239
        // Predicated region
        $region71: #{lstm_forward.3} parent=69 // pred_check
          %p241 = pneg %p51
        $region72: #{lstm_forward.3} parent=69 // pred_check_branch
          %243 = sbr.rel (%p241) target = $region74
        $region73: #{lstm_forward.3} parent=69 // pred_region
          _
        $region74: #{lstm_forward.3} parent=69 // pred_fallthru
          _
        %s244 = sand.u32 %s38, 1
        %s245 = sand.u32 %s38, 1
        %s246 = smul.addr %s245, 16
        %s247 = scalar_lea.vmem [#allocation5], %s246
        %p248 = pneg %p51
        %p249 = pneg %p48
        %p250 = pneg %p72
        %p251 = pneg %p69
        %s252 = smul.u32 8, %s21
        %p253 = scmp.lt.s32.totalorder %s252, 63
        %s254 = scalar_select %p253, %s252, 63
        %s255 = smul.addr %s254, 8
        %s256 = smul.addr %s255, 4
        %s257 = scalar_lea.vmem %s2, %s256
        %p258 = pneg %p98
        %p259 = pneg %p95
        %p260 = pneg %p119
        %p261 = pneg %p116
        %p262 = pneg %p145
        %p263 = pneg %p142
        %s264 = smul.u32 2, %s20
        %s265 = smul.u32 8, %s21
        %p266 = scmp.lt.s32.totalorder %s265, 63
        %s267 = scalar_select %p266, %s265, 63
        %s268 = smul.addr %s267, 8
        %s269 = smul.addr %s268, 4
        %s270 = scalar_lea.vmem %s2, %s269
        %s271 = smul.u32 8, %s21
        %p273 = scmp.eq.s32.totalorder %s21, 0
        // Predicated region
        $region75: #{lstm_forward.3} parent=69 // pred_check
          %p274 = pneg %p273
        $region76: #{lstm_forward.3} parent=69 // pred_check_branch
          %276 = sbr.rel (%p274) target = $region78
        $region77: #{lstm_forward.3} parent=69 // pred_region
          %vm277 = vcmask 517120
          %278 = vst.msk [vmem:[#allocation2] sm:$0x3] %vm277, 0.0
          %279 = vst.msk [vmem:[#allocation3] sm:$0x3] %vm277, 0.0
          %v280 = vld [vmem:[%s3] sm:$0x1]
          %v282 = vlaneseq
          %v283 = vshrl.u32 %v282, 7
          %v284 = vsub.s32 0, %v283
          %v285 = vrot.slane %v280, %v284
          %287 = vst [vmem:[#allocation4] sm:$0x3] %v285
        $region78: #{lstm_forward.3} parent=69 // pred_fallthru
          _
        %v288 = vld [vmem:[%s1] sm:$0xff]
        %v289 = vld [vmem:[%s1 + $0x8] sm:$0xff]
        %v290 = vld [vmem:[%s1 + $0x10] sm:$0xff]
        %v291 = vld [vmem:[%s1 + $0x18] sm:$0xff]
        %v292 = vld [vmem:[%s1 + $0x20] sm:$0xff]
        %v293 = vld [vmem:[%s1 + $0x28] sm:$0xff]
        %v294 = vld [vmem:[%s1 + $0x30] sm:$0xff]
        %v295 = vld [vmem:[%s1 + $0x38] sm:$0xff]
        %v296 = vld [vmem:[#allocation2] sm:$0x3]
        %v297 = vld [vmem:[#allocation3] sm:$0x3]
        %v298 = vld [vmem:[#allocation4] sm:$0x3]
        %s299 = smul.u32 %s21, 8
        %v300 = vld [vmem:[%s240] sm:$0x11]
        %v301 = vld [vmem:[%s240 + $0x8] sm:$0x11]
        %v302 = vunpack.c.l.bf16 %v300
        %v303 = vunpack.c.h.bf16 %v300
        %v304 = vunpack.c.l.bf16 %v301
        %v305 = vunpack.c.h.bf16 %v301
        %v306 = vpack.c.bf16 %v296, %v296
        %v315 = vunpack.c.l.b16 %v288
        %v316 = vunpack.c.h.b16 %v288
        %v317 = vunpack.c.l.b16 %v289
        %v318 = vunpack.c.h.b16 %v289
        %v319 = vunpack.c.l.b16 %v290
        %v320 = vunpack.c.h.b16 %v290
        %v321 = vunpack.c.l.b16 %v291
        %v322 = vunpack.c.h.b16 %v291
        %v323 = vunpack.c.l.b16 %v292
        %v324 = vunpack.c.h.b16 %v292
        %v325 = vunpack.c.l.b16 %v293
        %v326 = vunpack.c.h.b16 %v293
        %v327 = vunpack.c.l.b16 %v294
        %v328 = vunpack.c.h.b16 %v294
        %v329 = vunpack.c.l.b16 %v295
        %v330 = vunpack.c.h.b16 %v295
        %v331 = vpack.c.b16 %v317, %v315
        %v332 = vpack.c.b16 %v318, %v316
        %v333 = vpack.c.b16 %v321, %v319
        %v334 = vpack.c.b16 %v322, %v320
        %v335 = vpack.c.b16 %v325, %v323
        %v336 = vpack.c.b16 %v326, %v324
        %v337 = vpack.c.b16 %v329, %v327
        %v338 = vpack.c.b16 %v330, %v328
        %vm347 = vcmask 523264
        %v349 = vsel %vm347, %v306, 0
        %351 = vmatprep.subr.bf16.mxu0 0
        %352 = vmatpush1.bf16.msra.mxu0 0
        %353 = vmatprep.subr.bf16.mxu0 0
        %354 = vmatpush1.bf16.msra.mxu0 0
        %355 = vmatprep.subr.bf16.mxu0 0
        %356 = vmatpush1.bf16.msra.mxu0 0
        %357 = vmatprep.subr.bf16.mxu0 0
        %358 = vmatpush1.bf16.msra.mxu0 0
        %359 = vmatprep.subr.bf16.mxu0 %v338
        %360 = vmatpush1.bf16.msra.mxu0 %v337
        %361 = vmatprep.subr.bf16.mxu0 %v336
        %362 = vmatpush1.bf16.msra.mxu0 %v335
        %363 = vmatprep.subr.bf16.mxu0 %v334
        %364 = vmatpush1.bf16.msra.mxu0 %v333
        %365 = vmatprep.subr.bf16.mxu0 %v332
        %366 = vmatpush1.bf16.msra.mxu0 %v331
        %367 = vmatprep.subr.bf16.mxu0 0
        %368 = vmatpush2.bf16.msra.mxu0 0
        %369 = vmatprep.subr.bf16.mxu0 0
        %370 = vmatpush2.bf16.msra.mxu0 0
        %371 = vmatprep.subr.bf16.mxu0 0
        %372 = vmatpush2.bf16.msra.mxu0 0
        %373 = vmatprep.subr.bf16.mxu0 0
        %374 = vmatpush2.bf16.msra.mxu0 0
        %375 = vmatprep.subr.bf16.mxu0 0
        %376 = vmatpush2.bf16.msra.mxu0 0
        %377 = vmatprep.subr.bf16.mxu0 0
        %378 = vmatpush2.bf16.msra.mxu0 0
        %379 = vmatprep.subr.bf16.mxu0 0
        %380 = vmatpush2.bf16.msra.mxu0 0
        %381 = vmatprep.subr.bf16.mxu0 0
        %382 = vmatpush2.bf16.msra.mxu0 0
        %383 = vmatprep.mubr.bf16.mxu0 0
        %384 = vmatmul.mubr.bf16.gmra.mxu0 %v349
        %v385 = vpop.f32.mrf.mxu0
        %v386 = vadd.f32 0.0, %v385
        %v387 = vpop.f32.mrf.mxu0
        %v388 = vadd.f32 0.0, %v387
        %v389 = vpop.f32.mrf.mxu0
        %v390 = vpop.f32.mrf.mxu0
        %391 = vdwg.mxu0
        %v394 = vrot.slane %v386, 1
        %v395 = vrot.slane %v388, 1
        %v400 = vadd.f32 %v302, %v386
        %v401 = vadd.f32 %v303, %v388
        %v402 = vadd.f32 %v304, %v394
        %v403 = vadd.f32 %v305, %v395
        %v404 = vmul.f32 %v400, 0.5
        %v405 = vmul.f32 %v402, 0.5
        %v406 = vtanh.pop %v404
        %v407 = vtanh.pop %v405
        %v408 = vadd.f32 %v406, 1.0
        %v409 = vadd.f32 %v407, 1.0
        %v410 = vmul.f32 %v408, 0.5
        %v411 = vmul.f32 %v409, 0.5
        %v412 = vtanh.pop %v401
        %v413 = vtanh.pop %v403
        %v414 = vmul.f32 %v401, 0.5
        %v415 = vmul.f32 %v403, 0.5
        %v416 = vtanh.pop %v414
        %v417 = vtanh.pop %v415
        %v418 = vadd.f32 %v416, 1.0
        %v419 = vadd.f32 %v417, 1.0
        %v420 = vmul.f32 %v418, 0.5
        %v421 = vmul.f32 %v419, 0.5
        %v423 = vrot.slane %v297, 1
        %424 = vrot.lane.b32.xlu0 %v297, 64
        %v425 = vpop.permute.xlu0 %424
        %426 = vrot.lane.b32.xlu0 %v423, 64
        %v427 = vpop.permute.xlu0 %426
        %v430 = vmul.f32 %v410, %v425
        %v431 = vmul.f32 %v411, %v427
        %v432 = vmul.f32 %v410, %v412
        %v433 = vmul.f32 %v411, %v413
        %436 = vrot.lane.b32.xlu0 %v432, 64
        %v437 = vpop.permute.xlu0 %436
        %438 = vrot.lane.b32.xlu0 %v433, 64
        %v439 = vpop.permute.xlu0 %438
        %v442 = vadd.f32 %v430, %v437
        %v443 = vadd.f32 %v431, %v439
        %v444 = vtanh.pop %v442
        %v445 = vtanh.pop %v443
        %v446 = vmul.f32 %v420, %v444
        %v447 = vmul.f32 %v421, %v445
        %v448 = vpack.c.bf16 %v446, %v446
        %v449 = vpack.c.bf16 %v447, %v447
        %v450 = vld [vmem:[%s270] sm:$0xf]
        %v451 = vld [vmem:[%s270 + $0x4] sm:$0xf]
        %v452 = vld [vmem:[%s270 + $0x8] sm:$0xf]
        %v453 = vld [vmem:[%s270 + $0xc] sm:$0xf]
        %v454 = vld [vmem:[%s270 + $0x10] sm:$0xf]
        %v455 = vld [vmem:[%s270 + $0x14] sm:$0xf]
        %v456 = vld [vmem:[%s270 + $0x18] sm:$0xf]
        %v457 = vld [vmem:[%s270 + $0x1c] sm:$0xf]
        %v460 = vunpack.c.l.b16 %v448
        %v461 = vunpack.c.l.b16 %v449
        %v462 = vrot.slane %v461, 7
        %vm463 = vcmask 1041409
        %v464 = vsel %vm463, %v462, %v460
        %v465 = vpack.c.b16 %v464, %v464
        %466 = vrot.lane.b32.xlu0 %v465, 64
        %v467 = vpop.permute.xlu0 %466
        %v476 = vunpack.c.l.b16 %v450
        %v477 = vunpack.c.l.b16 %v451
        %v478 = vunpack.c.l.b16 %v452
        %v479 = vunpack.c.l.b16 %v453
        %v480 = vunpack.c.l.b16 %v454
        %v481 = vunpack.c.l.b16 %v455
        %v482 = vunpack.c.l.b16 %v456
        %v483 = vunpack.c.l.b16 %v457
        %v484 = vpack.c.b16 %v477, %v476
        %v485 = vpack.c.b16 %v479, %v478
        %v486 = vpack.c.b16 %v481, %v480
        %v487 = vpack.c.b16 %v483, %v482
        %v493 = vsel %vm347, %v467, 0
        %495 = vmatprep.subr.bf16.mxu0 0
        %496 = vmatpush1.bf16.msra.mxu0 0
        %497 = vmatprep.subr.bf16.mxu0 0
        %498 = vmatpush1.bf16.msra.mxu0 0
        %499 = vmatprep.subr.bf16.mxu0 0
        %500 = vmatpush1.bf16.msra.mxu0 0
        %501 = vmatprep.subr.bf16.mxu0 0
        %502 = vmatpush1.bf16.msra.mxu0 0
        %503 = vmatprep.subr.bf16.mxu0 0
        %504 = vmatpush1.bf16.msra.mxu0 %v487
        %505 = vmatprep.subr.bf16.mxu0 0
        %506 = vmatpush1.bf16.msra.mxu0 %v486
        %507 = vmatprep.subr.bf16.mxu0 0
        %508 = vmatpush1.bf16.msra.mxu0 %v485
        %509 = vmatprep.subr.bf16.mxu0 0
        %510 = vmatpush1.bf16.msra.mxu0 %v484
        %511 = vmatprep.subr.bf16.mxu0 0
        %512 = vmatpush2.bf16.msra.mxu0 0
        %513 = vmatprep.subr.bf16.mxu0 0
        %514 = vmatpush2.bf16.msra.mxu0 0
        %515 = vmatprep.subr.bf16.mxu0 0
        %516 = vmatpush2.bf16.msra.mxu0 0
        %517 = vmatprep.subr.bf16.mxu0 0
        %518 = vmatpush2.bf16.msra.mxu0 0
        %519 = vmatprep.subr.bf16.mxu0 0
        %520 = vmatpush2.bf16.msra.mxu0 0
        %521 = vmatprep.subr.bf16.mxu0 0
        %522 = vmatpush2.bf16.msra.mxu0 0
        %523 = vmatprep.subr.bf16.mxu0 0
        %524 = vmatpush2.bf16.msra.mxu0 0
        %525 = vmatprep.subr.bf16.mxu0 0
        %526 = vmatpush2.bf16.msra.mxu0 0
        %527 = vmatprep.mubr.bf16.mxu0 0
        %528 = vmatmul.mubr.bf16.gmra.mxu0 %v493
        %v529 = vpop.f32.mrf.mxu0
        %v530 = vadd.f32 0.0, %v529
        %v531 = vpop.f32.mrf.mxu0
        %v532 = vpop.f32.mrf.mxu0
        %v533 = vpop.f32.mrf.mxu0
        %534 = vdwg.mxu0
        %p535 = scmp.lt.s32.totalorder %s299, 59
        %s536 = scalar_select %p535, 1, 0
        %v537 = vstv %s536
        %vm538 = vcmp.eq.s32.totalorder %v537, 1
        %v539 = vsel %vm538, %v530, 0.0
        %v540 = vadd.f32 %v298, %v539
        %541 = vmatprep.subr.bf16.mxu0 0
        %542 = vmatpush1.bf16.msra.mxu0 0
        %543 = vmatprep.subr.bf16.mxu0 0
        %544 = vmatpush1.bf16.msra.mxu0 0
        %545 = vmatprep.subr.bf16.mxu0 0
        %546 = vmatpush1.bf16.msra.mxu0 0
        %547 = vmatprep.subr.bf16.mxu0 0
        %548 = vmatpush1.bf16.msra.mxu0 0
        %549 = vmatprep.subr.bf16.mxu0 %v338
        %550 = vmatpush1.bf16.msra.mxu0 %v337
        %551 = vmatprep.subr.bf16.mxu0 %v336
        %552 = vmatpush1.bf16.msra.mxu0 %v335
        %553 = vmatprep.subr.bf16.mxu0 %v334
        %554 = vmatpush1.bf16.msra.mxu0 %v333
        %555 = vmatprep.subr.bf16.mxu0 %v332
        %556 = vmatpush1.bf16.msra.mxu0 %v331
        %557 = vmatprep.subr.bf16.mxu0 0
        %558 = vmatpush2.bf16.msra.mxu0 0
        %559 = vmatprep.subr.bf16.mxu0 0
        %560 = vmatpush2.bf16.msra.mxu0 0
        %561 = vmatprep.subr.bf16.mxu0 0
        %562 = vmatpush2.bf16.msra.mxu0 0
        %563 = vmatprep.subr.bf16.mxu0 0
        %564 = vmatpush2.bf16.msra.mxu0 0
        %565 = vmatprep.subr.bf16.mxu0 0
        %566 = vmatpush2.bf16.msra.mxu0 0
        %567 = vmatprep.subr.bf16.mxu0 0
        %568 = vmatpush2.bf16.msra.mxu0 0
        %569 = vmatprep.subr.bf16.mxu0 0
        %570 = vmatpush2.bf16.msra.mxu0 0
        %571 = vmatprep.subr.bf16.mxu0 0
        %572 = vmatpush2.bf16.msra.mxu0 0
        %573 = vmatprep.mubr.bf16.mxu0 0
        %574 = vmatmul.mubr.bf16.gmra.mxu0 %v493
        %v575 = vpop.f32.mrf.mxu0
        %v576 = vadd.f32 0.0, %v575
        %v577 = vpop.f32.mrf.mxu0
        %v578 = vadd.f32 0.0, %v577
        %v579 = vpop.f32.mrf.mxu0
        %v580 = vpop.f32.mrf.mxu0
        %581 = vdwg.mxu0
        %v584 = vrot.slane %v576, 7
        %v585 = vrot.slane %v578, 7
        %v590 = vadd.f32 %v302, %v584
        %v591 = vadd.f32 %v303, %v585
        %v592 = vadd.f32 %v304, %v576
        %v593 = vadd.f32 %v305, %v578
        %v594 = vmul.f32 %v590, 0.5
        %v595 = vmul.f32 %v592, 0.5
        %v596 = vtanh.pop %v594
        %v597 = vtanh.pop %v595
        %v598 = vadd.f32 %v596, 1.0
        %v599 = vadd.f32 %v597, 1.0
        %v600 = vmul.f32 %v598, 0.5
        %v601 = vmul.f32 %v599, 0.5
        %v602 = vtanh.pop %v591
        %v603 = vtanh.pop %v593
        %v604 = vmul.f32 %v591, 0.5
        %v605 = vmul.f32 %v593, 0.5
        %v606 = vtanh.pop %v604
        %v607 = vtanh.pop %v605
        %v608 = vadd.f32 %v606, 1.0
        %v609 = vadd.f32 %v607, 1.0
        %v610 = vmul.f32 %v608, 0.5
        %v611 = vmul.f32 %v609, 0.5
        %v614 = vrot.slane %v442, 7
        %v615 = vrot.slane %v443, 7
        %v618 = vmul.f32 %v600, %v614
        %v619 = vmul.f32 %v601, %v615
        %v620 = vmul.f32 %v600, %v602
        %v621 = vmul.f32 %v601, %v603
        %624 = vrot.lane.b32.xlu0 %v620, 64
        %v625 = vpop.permute.xlu0 %624
        %626 = vrot.lane.b32.xlu0 %v621, 64
        %v627 = vpop.permute.xlu0 %626
        %v630 = vadd.f32 %v618, %v625
        %v631 = vadd.f32 %v619, %v627
        %v632 = vtanh.pop %v630
        %v633 = vtanh.pop %v631
        %v634 = vmul.f32 %v610, %v632
        %v635 = vmul.f32 %v611, %v633
        %v636 = vpack.c.bf16 %v634, %v634
        %v637 = vpack.c.bf16 %v635, %v635
        %s638 = scalar_lea.vmem %s270, 32
        %v639 = vld [vmem:[%s638] sm:$0xf]
        %v640 = vld [vmem:[%s638 + $0x4] sm:$0xf]
        %v641 = vld [vmem:[%s638 + $0x8] sm:$0xf]
        %v642 = vld [vmem:[%s638 + $0xc] sm:$0xf]
        %v643 = vld [vmem:[%s638 + $0x10] sm:$0xf]
        %v644 = vld [vmem:[%s638 + $0x14] sm:$0xf]
        %v645 = vld [vmem:[%s638 + $0x18] sm:$0xf]
        %v646 = vld [vmem:[%s638 + $0x1c] sm:$0xf]
        %v649 = vunpack.c.l.b16 %v636
        %v650 = vunpack.c.l.b16 %v637
        %v651 = vrot.slane %v649, 1
        %v652 = vsel %vm463, %v650, %v651
        %v653 = vpack.c.b16 %v652, %v652
        %654 = vrot.lane.b32.xlu0 %v653, 64
        %v655 = vpop.permute.xlu0 %654
        %v664 = vunpack.c.l.b16 %v639
        %v665 = vunpack.c.l.b16 %v640
        %v666 = vunpack.c.l.b16 %v641
        %v667 = vunpack.c.l.b16 %v642
        %v668 = vunpack.c.l.b16 %v643
        %v669 = vunpack.c.l.b16 %v644
        %v670 = vunpack.c.l.b16 %v645
        %v671 = vunpack.c.l.b16 %v646
        %v672 = vpack.c.b16 %v665, %v664
        %v673 = vpack.c.b16 %v667, %v666
        %v674 = vpack.c.b16 %v669, %v668
        %v675 = vpack.c.b16 %v671, %v670
        %v681 = vsel %vm347, %v655, 0
        %683 = vmatprep.subr.bf16.mxu0 0
        %684 = vmatpush1.bf16.msra.mxu0 0
        %685 = vmatprep.subr.bf16.mxu0 0
        %686 = vmatpush1.bf16.msra.mxu0 0
        %687 = vmatprep.subr.bf16.mxu0 0
        %688 = vmatpush1.bf16.msra.mxu0 0
        %689 = vmatprep.subr.bf16.mxu0 0
        %690 = vmatpush1.bf16.msra.mxu0 0
        %691 = vmatprep.subr.bf16.mxu0 0
        %692 = vmatpush1.bf16.msra.mxu0 %v675
        %693 = vmatprep.subr.bf16.mxu0 0
        %694 = vmatpush1.bf16.msra.mxu0 %v674
        %695 = vmatprep.subr.bf16.mxu0 0
        %696 = vmatpush1.bf16.msra.mxu0 %v673
        %697 = vmatprep.subr.bf16.mxu0 0
        %698 = vmatpush1.bf16.msra.mxu0 %v672
        %699 = vmatprep.subr.bf16.mxu0 0
        %700 = vmatpush2.bf16.msra.mxu0 0
        %701 = vmatprep.subr.bf16.mxu0 0
        %702 = vmatpush2.bf16.msra.mxu0 0
        %703 = vmatprep.subr.bf16.mxu0 0
        %704 = vmatpush2.bf16.msra.mxu0 0
        %705 = vmatprep.subr.bf16.mxu0 0
        %706 = vmatpush2.bf16.msra.mxu0 0
        %707 = vmatprep.subr.bf16.mxu0 0
        %708 = vmatpush2.bf16.msra.mxu0 0
        %709 = vmatprep.subr.bf16.mxu0 0
        %710 = vmatpush2.bf16.msra.mxu0 0
        %711 = vmatprep.subr.bf16.mxu0 0
        %712 = vmatpush2.bf16.msra.mxu0 0
        %713 = vmatprep.subr.bf16.mxu0 0
        %714 = vmatpush2.bf16.msra.mxu0 0
        %715 = vmatprep.mubr.bf16.mxu0 0
        %716 = vmatmul.mubr.bf16.gmra.mxu0 %v681
        %v717 = vpop.f32.mrf.mxu0
        %v718 = vadd.f32 0.0, %v717
        %v719 = vpop.f32.mrf.mxu0
        %v720 = vpop.f32.mrf.mxu0
        %v721 = vpop.f32.mrf.mxu0
        %722 = vdwg.mxu0
        %s723 = sadd.s32 %s299, 1
        %p724 = scmp.lt.s32.totalorder %s723, 59
        %s725 = scalar_select %p724, 1, 0
        %v726 = vstv %s725
        %vm727 = vcmp.eq.s32.totalorder %v726, 1
        %v728 = vsel %vm727, %v718, 0.0
        %v729 = vadd.f32 %v540, %v728
        %v730 = vld [vmem:[%s240] sm:$0x22]
        %v731 = vld [vmem:[%s240 + $0x8] sm:$0x22]
        %v732 = vunpack.c.l.bf16 %v730
        %v733 = vunpack.c.h.bf16 %v730
        %v734 = vunpack.c.l.bf16 %v731
        %v735 = vunpack.c.h.bf16 %v731
        %736 = vmatprep.subr.bf16.mxu0 0
        %737 = vmatpush1.bf16.msra.mxu0 0
        %738 = vmatprep.subr.bf16.mxu0 0
        %739 = vmatpush1.bf16.msra.mxu0 0
        %740 = vmatprep.subr.bf16.mxu0 0
        %741 = vmatpush1.bf16.msra.mxu0 0
        %742 = vmatprep.subr.bf16.mxu0 0
        %743 = vmatpush1.bf16.msra.mxu0 0
        %744 = vmatprep.subr.bf16.mxu0 %v338
        %745 = vmatpush1.bf16.msra.mxu0 %v337
        %746 = vmatprep.subr.bf16.mxu0 %v336
        %747 = vmatpush1.bf16.msra.mxu0 %v335
        %748 = vmatprep.subr.bf16.mxu0 %v334
        %749 = vmatpush1.bf16.msra.mxu0 %v333
        %750 = vmatprep.subr.bf16.mxu0 %v332
        %751 = vmatpush1.bf16.msra.mxu0 %v331
        %752 = vmatprep.subr.bf16.mxu0 0
        %753 = vmatpush2.bf16.msra.mxu0 0
        %754 = vmatprep.subr.bf16.mxu0 0
        %755 = vmatpush2.bf16.msra.mxu0 0
        %756 = vmatprep.subr.bf16.mxu0 0
        %757 = vmatpush2.bf16.msra.mxu0 0
        %758 = vmatprep.subr.bf16.mxu0 0
        %759 = vmatpush2.bf16.msra.mxu0 0
        %760 = vmatprep.subr.bf16.mxu0 0
        %761 = vmatpush2.bf16.msra.mxu0 0
        %762 = vmatprep.subr.bf16.mxu0 0
        %763 = vmatpush2.bf16.msra.mxu0 0
        %764 = vmatprep.subr.bf16.mxu0 0
        %765 = vmatpush2.bf16.msra.mxu0 0
        %766 = vmatprep.subr.bf16.mxu0 0
        %767 = vmatpush2.bf16.msra.mxu0 0
        %768 = vmatprep.mubr.bf16.mxu0 0
        %769 = vmatmul.mubr.bf16.gmra.mxu0 %v681
        %v770 = vpop.f32.mrf.mxu0
        %v771 = vadd.f32 0.0, %v770
        %v772 = vpop.f32.mrf.mxu0
        %v773 = vadd.f32 0.0, %v772
        %v774 = vpop.f32.mrf.mxu0
        %v775 = vpop.f32.mrf.mxu0
        %776 = vdwg.mxu0
        %v779 = vrot.slane %v771, 6
        %v780 = vrot.slane %v773, 6
        %v781 = vrot.slane %v771, 7
        %v782 = vrot.slane %v773, 7
        %v787 = vadd.f32 %v732, %v779
        %v788 = vadd.f32 %v733, %v780
        %v789 = vadd.f32 %v734, %v781
        %v790 = vadd.f32 %v735, %v782
        %v791 = vmul.f32 %v787, 0.5
        %v792 = vmul.f32 %v789, 0.5
        %v793 = vtanh.pop %v791
        %v794 = vtanh.pop %v792
        %v795 = vadd.f32 %v793, 1.0
        %v796 = vadd.f32 %v794, 1.0
        %v797 = vmul.f32 %v795, 0.5
        %v798 = vmul.f32 %v796, 0.5
        %v799 = vtanh.pop %v788
        %v800 = vtanh.pop %v790
        %v801 = vmul.f32 %v788, 0.5
        %v802 = vmul.f32 %v790, 0.5
        %v803 = vtanh.pop %v801
        %v804 = vtanh.pop %v802
        %v805 = vadd.f32 %v803, 1.0
        %v806 = vadd.f32 %v804, 1.0
        %v807 = vmul.f32 %v805, 0.5
        %v808 = vmul.f32 %v806, 0.5
        %v811 = vrot.slane %v630, 7
        %v812 = vrot.slane %v631, 7
        %v815 = vmul.f32 %v797, %v811
        %v816 = vmul.f32 %v798, %v812
        %v817 = vmul.f32 %v797, %v799
        %v818 = vmul.f32 %v798, %v800
        %821 = vrot.lane.b32.xlu0 %v817, 64
        %v822 = vpop.permute.xlu0 %821
        %823 = vrot.lane.b32.xlu0 %v818, 64
        %v824 = vpop.permute.xlu0 %823
        %v827 = vadd.f32 %v815, %v822
        %v828 = vadd.f32 %v816, %v824
        %v829 = vtanh.pop %v827
        %v830 = vtanh.pop %v828
        %v831 = vmul.f32 %v807, %v829
        %v832 = vmul.f32 %v808, %v830
        %v833 = vpack.c.bf16 %v831, %v831
        %v834 = vpack.c.bf16 %v832, %v832
        %s835 = scalar_lea.vmem %s270, 64
        %v836 = vld [vmem:[%s835] sm:$0xf]
        %v837 = vld [vmem:[%s835 + $0x4] sm:$0xf]
        %v838 = vld [vmem:[%s835 + $0x8] sm:$0xf]
        %v839 = vld [vmem:[%s835 + $0xc] sm:$0xf]
        %v840 = vld [vmem:[%s835 + $0x10] sm:$0xf]
        %v841 = vld [vmem:[%s835 + $0x14] sm:$0xf]
        %v842 = vld [vmem:[%s835 + $0x18] sm:$0xf]
        %v843 = vld [vmem:[%s835 + $0x1c] sm:$0xf]
        %v846 = vunpack.c.l.b16 %v833
        %v847 = vunpack.c.l.b16 %v834
        %v848 = vrot.slane %v846, 2
        %v849 = vrot.slane %v847, 1
        %v850 = vsel %vm463, %v849, %v848
        %v851 = vpack.c.b16 %v850, %v850
        %852 = vrot.lane.b32.xlu0 %v851, 64
        %v853 = vpop.permute.xlu0 %852
        %v862 = vunpack.c.l.b16 %v836
        %v863 = vunpack.c.l.b16 %v837
        %v864 = vunpack.c.l.b16 %v838
        %v865 = vunpack.c.l.b16 %v839
        %v866 = vunpack.c.l.b16 %v840
        %v867 = vunpack.c.l.b16 %v841
        %v868 = vunpack.c.l.b16 %v842
        %v869 = vunpack.c.l.b16 %v843
        %v870 = vpack.c.b16 %v863, %v862
        %v871 = vpack.c.b16 %v865, %v864
        %v872 = vpack.c.b16 %v867, %v866
        %v873 = vpack.c.b16 %v869, %v868
        %v879 = vsel %vm347, %v853, 0
        %881 = vmatprep.subr.bf16.mxu0 0
        %882 = vmatpush1.bf16.msra.mxu0 0
        %883 = vmatprep.subr.bf16.mxu0 0
        %884 = vmatpush1.bf16.msra.mxu0 0
        %885 = vmatprep.subr.bf16.mxu0 0
        %886 = vmatpush1.bf16.msra.mxu0 0
        %887 = vmatprep.subr.bf16.mxu0 0
        %888 = vmatpush1.bf16.msra.mxu0 0
        %889 = vmatprep.subr.bf16.mxu0 0
        %890 = vmatpush1.bf16.msra.mxu0 %v873
        %891 = vmatprep.subr.bf16.mxu0 0
        %892 = vmatpush1.bf16.msra.mxu0 %v872
        %893 = vmatprep.subr.bf16.mxu0 0
        %894 = vmatpush1.bf16.msra.mxu0 %v871
        %895 = vmatprep.subr.bf16.mxu0 0
        %896 = vmatpush1.bf16.msra.mxu0 %v870
        %897 = vmatprep.subr.bf16.mxu0 0
        %898 = vmatpush2.bf16.msra.mxu0 0
        %899 = vmatprep.subr.bf16.mxu0 0
        %900 = vmatpush2.bf16.msra.mxu0 0
        %901 = vmatprep.subr.bf16.mxu0 0
        %902 = vmatpush2.bf16.msra.mxu0 0
        %903 = vmatprep.subr.bf16.mxu0 0
        %904 = vmatpush2.bf16.msra.mxu0 0
        %905 = vmatprep.subr.bf16.mxu0 0
        %906 = vmatpush2.bf16.msra.mxu0 0
        %907 = vmatprep.subr.bf16.mxu0 0
        %908 = vmatpush2.bf16.msra.mxu0 0
        %909 = vmatprep.subr.bf16.mxu0 0
        %910 = vmatpush2.bf16.msra.mxu0 0
        %911 = vmatprep.subr.bf16.mxu0 0
        %912 = vmatpush2.bf16.msra.mxu0 0
        %913 = vmatprep.mubr.bf16.mxu0 0
        %914 = vmatmul.mubr.bf16.gmra.mxu0 %v879
        %v915 = vpop.f32.mrf.mxu0
        %v916 = vadd.f32 0.0, %v915
        %v917 = vpop.f32.mrf.mxu0
        %v918 = vpop.f32.mrf.mxu0
        %v919 = vpop.f32.mrf.mxu0
        %920 = vdwg.mxu0
        %s921 = sadd.s32 %s299, 2
        %p922 = scmp.lt.s32.totalorder %s921, 59
        %s923 = scalar_select %p922, 1, 0
        %v924 = vstv %s923
        %vm925 = vcmp.eq.s32.totalorder %v924, 1
        %v926 = vsel %vm925, %v916, 0.0
        %v927 = vadd.f32 %v729, %v926
        %928 = vmatprep.subr.bf16.mxu0 0
        %929 = vmatpush1.bf16.msra.mxu0 0
        %930 = vmatprep.subr.bf16.mxu0 0
        %931 = vmatpush1.bf16.msra.mxu0 0
        %932 = vmatprep.subr.bf16.mxu0 0
        %933 = vmatpush1.bf16.msra.mxu0 0
        %934 = vmatprep.subr.bf16.mxu0 0
        %935 = vmatpush1.bf16.msra.mxu0 0
        %936 = vmatprep.subr.bf16.mxu0 %v338
        %937 = vmatpush1.bf16.msra.mxu0 %v337
        %938 = vmatprep.subr.bf16.mxu0 %v336
        %939 = vmatpush1.bf16.msra.mxu0 %v335
        %940 = vmatprep.subr.bf16.mxu0 %v334
        %941 = vmatpush1.bf16.msra.mxu0 %v333
        %942 = vmatprep.subr.bf16.mxu0 %v332
        %943 = vmatpush1.bf16.msra.mxu0 %v331
        %944 = vmatprep.subr.bf16.mxu0 0
        %945 = vmatpush2.bf16.msra.mxu0 0
        %946 = vmatprep.subr.bf16.mxu0 0
        %947 = vmatpush2.bf16.msra.mxu0 0
        %948 = vmatprep.subr.bf16.mxu0 0
        %949 = vmatpush2.bf16.msra.mxu0 0
        %950 = vmatprep.subr.bf16.mxu0 0
        %951 = vmatpush2.bf16.msra.mxu0 0
        %952 = vmatprep.subr.bf16.mxu0 0
        %953 = vmatpush2.bf16.msra.mxu0 0
        %954 = vmatprep.subr.bf16.mxu0 0
        %955 = vmatpush2.bf16.msra.mxu0 0
        %956 = vmatprep.subr.bf16.mxu0 0
        %957 = vmatpush2.bf16.msra.mxu0 0
        %958 = vmatprep.subr.bf16.mxu0 0
        %959 = vmatpush2.bf16.msra.mxu0 0
        %960 = vmatprep.mubr.bf16.mxu0 0
        %961 = vmatmul.mubr.bf16.gmra.mxu0 %v879
        %v962 = vpop.f32.mrf.mxu0
        %v963 = vadd.f32 0.0, %v962
        %v964 = vpop.f32.mrf.mxu0
        %v965 = vadd.f32 0.0, %v964
        %v966 = vpop.f32.mrf.mxu0
        %v967 = vpop.f32.mrf.mxu0
        %968 = vdwg.mxu0
        %v971 = vrot.slane %v963, 5
        %v972 = vrot.slane %v965, 5
        %v973 = vrot.slane %v963, 6
        %v974 = vrot.slane %v965, 6
        %v979 = vadd.f32 %v732, %v971
        %v980 = vadd.f32 %v733, %v972
        %v981 = vadd.f32 %v734, %v973
        %v982 = vadd.f32 %v735, %v974
        %v983 = vmul.f32 %v979, 0.5
        %v984 = vmul.f32 %v981, 0.5
        %v985 = vtanh.pop %v983
        %v986 = vtanh.pop %v984
        %v987 = vadd.f32 %v985, 1.0
        %v988 = vadd.f32 %v986, 1.0
        %v989 = vmul.f32 %v987, 0.5
        %v990 = vmul.f32 %v988, 0.5
        %v991 = vtanh.pop %v980
        %v992 = vtanh.pop %v982
        %v993 = vmul.f32 %v980, 0.5
        %v994 = vmul.f32 %v982, 0.5
        %v995 = vtanh.pop %v993
        %v996 = vtanh.pop %v994
        %v997 = vadd.f32 %v995, 1.0
        %v998 = vadd.f32 %v996, 1.0
        %v999 = vmul.f32 %v997, 0.5
        %v1000 = vmul.f32 %v998, 0.5
        %v1003 = vrot.slane %v827, 7
        %v1004 = vrot.slane %v828, 7
        %v1007 = vmul.f32 %v989, %v1003
        %v1008 = vmul.f32 %v990, %v1004
        %v1009 = vmul.f32 %v989, %v991
        %v1010 = vmul.f32 %v990, %v992
        %1013 = vrot.lane.b32.xlu0 %v1009, 64
        %v1014 = vpop.permute.xlu0 %1013
        %1015 = vrot.lane.b32.xlu0 %v1010, 64
        %v1016 = vpop.permute.xlu0 %1015
        %v1019 = vadd.f32 %v1007, %v1014
        %v1020 = vadd.f32 %v1008, %v1016
        %v1021 = vtanh.pop %v1019
        %v1022 = vtanh.pop %v1020
        %v1023 = vmul.f32 %v999, %v1021
        %v1024 = vmul.f32 %v1000, %v1022
        %v1025 = vpack.c.bf16 %v1023, %v1023
        %v1026 = vpack.c.bf16 %v1024, %v1024
        %s1027 = scalar_lea.vmem %s270, 96
        %v1028 = vld [vmem:[%s1027] sm:$0xf]
        %v1029 = vld [vmem:[%s1027 + $0x4] sm:$0xf]
        %v1030 = vld [vmem:[%s1027 + $0x8] sm:$0xf]
        %v1031 = vld [vmem:[%s1027 + $0xc] sm:$0xf]
        %v1032 = vld [vmem:[%s1027 + $0x10] sm:$0xf]
        %v1033 = vld [vmem:[%s1027 + $0x14] sm:$0xf]
        %v1034 = vld [vmem:[%s1027 + $0x18] sm:$0xf]
        %v1035 = vld [vmem:[%s1027 + $0x1c] sm:$0xf]
        %v1038 = vunpack.c.l.b16 %v1025
        %v1039 = vunpack.c.l.b16 %v1026
        %v1040 = vrot.slane %v1038, 3
        %v1041 = vrot.slane %v1039, 2
        %v1042 = vsel %vm463, %v1041, %v1040
        %v1043 = vpack.c.b16 %v1042, %v1042
        %1044 = vrot.lane.b32.xlu0 %v1043, 64
        %v1045 = vpop.permute.xlu0 %1044
        %v1054 = vunpack.c.l.b16 %v1028
        %v1055 = vunpack.c.l.b16 %v1029
        %v1056 = vunpack.c.l.b16 %v1030
        %v1057 = vunpack.c.l.b16 %v1031
        %v1058 = vunpack.c.l.b16 %v1032
        %v1059 = vunpack.c.l.b16 %v1033
        %v1060 = vunpack.c.l.b16 %v1034
        %v1061 = vunpack.c.l.b16 %v1035
        %v1062 = vpack.c.b16 %v1055, %v1054
        %v1063 = vpack.c.b16 %v1057, %v1056
        %v1064 = vpack.c.b16 %v1059, %v1058
        %v1065 = vpack.c.b16 %v1061, %v1060
        %v1071 = vsel %vm347, %v1045, 0
        %1073 = vmatprep.subr.bf16.mxu0 0
        %1074 = vmatpush1.bf16.msra.mxu0 0
        %1075 = vmatprep.subr.bf16.mxu0 0
        %1076 = vmatpush1.bf16.msra.mxu0 0
        %1077 = vmatprep.subr.bf16.mxu0 0
        %1078 = vmatpush1.bf16.msra.mxu0 0
        %1079 = vmatprep.subr.bf16.mxu0 0
        %1080 = vmatpush1.bf16.msra.mxu0 0
        %1081 = vmatprep.subr.bf16.mxu0 0
        %1082 = vmatpush1.bf16.msra.mxu0 %v1065
        %1083 = vmatprep.subr.bf16.mxu0 0
        %1084 = vmatpush1.bf16.msra.mxu0 %v1064
        %1085 = vmatprep.subr.bf16.mxu0 0
        %1086 = vmatpush1.bf16.msra.mxu0 %v1063
        %1087 = vmatprep.subr.bf16.mxu0 0
        %1088 = vmatpush1.bf16.msra.mxu0 %v1062
        %1089 = vmatprep.subr.bf16.mxu0 0
        %1090 = vmatpush2.bf16.msra.mxu0 0
        %1091 = vmatprep.subr.bf16.mxu0 0
        %1092 = vmatpush2.bf16.msra.mxu0 0
        %1093 = vmatprep.subr.bf16.mxu0 0
        %1094 = vmatpush2.bf16.msra.mxu0 0
        %1095 = vmatprep.subr.bf16.mxu0 0
        %1096 = vmatpush2.bf16.msra.mxu0 0
        %1097 = vmatprep.subr.bf16.mxu0 0
        %1098 = vmatpush2.bf16.msra.mxu0 0
        %1099 = vmatprep.subr.bf16.mxu0 0
        %1100 = vmatpush2.bf16.msra.mxu0 0
        %1101 = vmatprep.subr.bf16.mxu0 0
        %1102 = vmatpush2.bf16.msra.mxu0 0
        %1103 = vmatprep.subr.bf16.mxu0 0
        %1104 = vmatpush2.bf16.msra.mxu0 0
        %1105 = vmatprep.mubr.bf16.mxu0 0
        %1106 = vmatmul.mubr.bf16.gmra.mxu0 %v1071
        %v1107 = vpop.f32.mrf.mxu0
        %v1108 = vadd.f32 0.0, %v1107
        %v1109 = vpop.f32.mrf.mxu0
        %v1110 = vpop.f32.mrf.mxu0
        %v1111 = vpop.f32.mrf.mxu0
        %1112 = vdwg.mxu0
        %s1113 = sadd.s32 %s299, 3
        %p1114 = scmp.lt.s32.totalorder %s1113, 59
        %s1115 = scalar_select %p1114, 1, 0
        %v1116 = vstv %s1115
        %vm1117 = vcmp.eq.s32.totalorder %v1116, 1
        %v1118 = vsel %vm1117, %v1108, 0.0
        %v1119 = vadd.f32 %v927, %v1118
        %v1120 = vld [vmem:[%s240] sm:$0x44]
        %v1121 = vld [vmem:[%s240 + $0x8] sm:$0x44]
        %v1122 = vunpack.c.l.bf16 %v1120
        %v1123 = vunpack.c.h.bf16 %v1120
        %v1124 = vunpack.c.l.bf16 %v1121
        %v1125 = vunpack.c.h.bf16 %v1121
        %1126 = vmatprep.subr.bf16.mxu0 0
        %1127 = vmatpush1.bf16.msra.mxu0 0
        %1128 = vmatprep.subr.bf16.mxu0 0
        %1129 = vmatpush1.bf16.msra.mxu0 0
        %1130 = vmatprep.subr.bf16.mxu0 0
        %1131 = vmatpush1.bf16.msra.mxu0 0
        %1132 = vmatprep.subr.bf16.mxu0 0
        %1133 = vmatpush1.bf16.msra.mxu0 0
        %1134 = vmatprep.subr.bf16.mxu0 %v338
        %1135 = vmatpush1.bf16.msra.mxu0 %v337
        %1136 = vmatprep.subr.bf16.mxu0 %v336
        %1137 = vmatpush1.bf16.msra.mxu0 %v335
        %1138 = vmatprep.subr.bf16.mxu0 %v334
        %1139 = vmatpush1.bf16.msra.mxu0 %v333
        %1140 = vmatprep.subr.bf16.mxu0 %v332
        %1141 = vmatpush1.bf16.msra.mxu0 %v331
        %1142 = vmatprep.subr.bf16.mxu0 0
        %1143 = vmatpush2.bf16.msra.mxu0 0
        %1144 = vmatprep.subr.bf16.mxu0 0
        %1145 = vmatpush2.bf16.msra.mxu0 0
        %1146 = vmatprep.subr.bf16.mxu0 0
        %1147 = vmatpush2.bf16.msra.mxu0 0
        %1148 = vmatprep.subr.bf16.mxu0 0
        %1149 = vmatpush2.bf16.msra.mxu0 0
        %1150 = vmatprep.subr.bf16.mxu0 0
        %1151 = vmatpush2.bf16.msra.mxu0 0
        %1152 = vmatprep.subr.bf16.mxu0 0
        %1153 = vmatpush2.bf16.msra.mxu0 0
        %1154 = vmatprep.subr.bf16.mxu0 0
        %1155 = vmatpush2.bf16.msra.mxu0 0
        %1156 = vmatprep.subr.bf16.mxu0 0
        %1157 = vmatpush2.bf16.msra.mxu0 0
        %1158 = vmatprep.mubr.bf16.mxu0 0
        %1159 = vmatmul.mubr.bf16.gmra.mxu0 %v1071
        %v1160 = vpop.f32.mrf.mxu0
        %v1161 = vadd.f32 0.0, %v1160
        %v1162 = vpop.f32.mrf.mxu0
        %v1163 = vadd.f32 0.0, %v1162
        %v1164 = vpop.f32.mrf.mxu0
        %v1165 = vpop.f32.mrf.mxu0
        %1166 = vdwg.mxu0
        %v1169 = vrot.slane %v1161, 4
        %v1170 = vrot.slane %v1163, 4
        %v1171 = vrot.slane %v1161, 5
        %v1172 = vrot.slane %v1163, 5
        %v1177 = vadd.f32 %v1122, %v1169
        %v1178 = vadd.f32 %v1123, %v1170
        %v1179 = vadd.f32 %v1124, %v1171
        %v1180 = vadd.f32 %v1125, %v1172
        %v1181 = vmul.f32 %v1177, 0.5
        %v1182 = vmul.f32 %v1179, 0.5
        %v1183 = vtanh.pop %v1181
        %v1184 = vtanh.pop %v1182
        %v1185 = vadd.f32 %v1183, 1.0
        %v1186 = vadd.f32 %v1184, 1.0
        %v1187 = vmul.f32 %v1185, 0.5
        %v1188 = vmul.f32 %v1186, 0.5
        %v1189 = vtanh.pop %v1178
        %v1190 = vtanh.pop %v1180
        %v1191 = vmul.f32 %v1178, 0.5
        %v1192 = vmul.f32 %v1180, 0.5
        %v1193 = vtanh.pop %v1191
        %v1194 = vtanh.pop %v1192
        %v1195 = vadd.f32 %v1193, 1.0
        %v1196 = vadd.f32 %v1194, 1.0
        %v1197 = vmul.f32 %v1195, 0.5
        %v1198 = vmul.f32 %v1196, 0.5
        %v1201 = vrot.slane %v1019, 7
        %v1202 = vrot.slane %v1020, 7
        %v1205 = vmul.f32 %v1187, %v1201
        %v1206 = vmul.f32 %v1188, %v1202
        %v1207 = vmul.f32 %v1187, %v1189
        %v1208 = vmul.f32 %v1188, %v1190
        %1211 = vrot.lane.b32.xlu0 %v1207, 64
        %v1212 = vpop.permute.xlu0 %1211
        %1213 = vrot.lane.b32.xlu0 %v1208, 64
        %v1214 = vpop.permute.xlu0 %1213
        %v1217 = vadd.f32 %v1205, %v1212
        %v1218 = vadd.f32 %v1206, %v1214
        %v1219 = vtanh.pop %v1217
        %v1220 = vtanh.pop %v1218
        %v1221 = vmul.f32 %v1197, %v1219
        %v1222 = vmul.f32 %v1198, %v1220
        %v1223 = vpack.c.bf16 %v1221, %v1221
        %v1224 = vpack.c.bf16 %v1222, %v1222
        %s1225 = scalar_lea.vmem %s270, 128
        %v1226 = vld [vmem:[%s1225] sm:$0xf]
        %v1227 = vld [vmem:[%s1225 + $0x4] sm:$0xf]
        %v1228 = vld [vmem:[%s1225 + $0x8] sm:$0xf]
        %v1229 = vld [vmem:[%s1225 + $0xc] sm:$0xf]
        %v1230 = vld [vmem:[%s1225 + $0x10] sm:$0xf]
        %v1231 = vld [vmem:[%s1225 + $0x14] sm:$0xf]
        %v1232 = vld [vmem:[%s1225 + $0x18] sm:$0xf]
        %v1233 = vld [vmem:[%s1225 + $0x1c] sm:$0xf]
        %v1236 = vunpack.c.l.b16 %v1223
        %v1237 = vunpack.c.l.b16 %v1224
        %v1238 = vrot.slane %v1236, 4
        %v1239 = vrot.slane %v1237, 3
        %v1240 = vsel %vm463, %v1239, %v1238
        %v1241 = vpack.c.b16 %v1240, %v1240
        %1242 = vrot.lane.b32.xlu0 %v1241, 64
        %v1243 = vpop.permute.xlu0 %1242
        %v1252 = vunpack.c.l.b16 %v1226
        %v1253 = vunpack.c.l.b16 %v1227
        %v1254 = vunpack.c.l.b16 %v1228
        %v1255 = vunpack.c.l.b16 %v1229
        %v1256 = vunpack.c.l.b16 %v1230
        %v1257 = vunpack.c.l.b16 %v1231
        %v1258 = vunpack.c.l.b16 %v1232
        %v1259 = vunpack.c.l.b16 %v1233
        %v1260 = vpack.c.b16 %v1253, %v1252
        %v1261 = vpack.c.b16 %v1255, %v1254
        %v1262 = vpack.c.b16 %v1257, %v1256
        %v1263 = vpack.c.b16 %v1259, %v1258
        %v1269 = vsel %vm347, %v1243, 0
        %1271 = vmatprep.subr.bf16.mxu0 0
        %1272 = vmatpush1.bf16.msra.mxu0 0
        %1273 = vmatprep.subr.bf16.mxu0 0
        %1274 = vmatpush1.bf16.msra.mxu0 0
        %1275 = vmatprep.subr.bf16.mxu0 0
        %1276 = vmatpush1.bf16.msra.mxu0 0
        %1277 = vmatprep.subr.bf16.mxu0 0
        %1278 = vmatpush1.bf16.msra.mxu0 0
        %1279 = vmatprep.subr.bf16.mxu0 0
        %1280 = vmatpush1.bf16.msra.mxu0 %v1263
        %1281 = vmatprep.subr.bf16.mxu0 0
        %1282 = vmatpush1.bf16.msra.mxu0 %v1262
        %1283 = vmatprep.subr.bf16.mxu0 0
        %1284 = vmatpush1.bf16.msra.mxu0 %v1261
        %1285 = vmatprep.subr.bf16.mxu0 0
        %1286 = vmatpush1.bf16.msra.mxu0 %v1260
        %1287 = vmatprep.subr.bf16.mxu0 0
        %1288 = vmatpush2.bf16.msra.mxu0 0
        %1289 = vmatprep.subr.bf16.mxu0 0
        %1290 = vmatpush2.bf16.msra.mxu0 0
        %1291 = vmatprep.subr.bf16.mxu0 0
        %1292 = vmatpush2.bf16.msra.mxu0 0
        %1293 = vmatprep.subr.bf16.mxu0 0
        %1294 = vmatpush2.bf16.msra.mxu0 0
        %1295 = vmatprep.subr.bf16.mxu0 0
        %1296 = vmatpush2.bf16.msra.mxu0 0
        %1297 = vmatprep.subr.bf16.mxu0 0
        %1298 = vmatpush2.bf16.msra.mxu0 0
        %1299 = vmatprep.subr.bf16.mxu0 0
        %1300 = vmatpush2.bf16.msra.mxu0 0
        %1301 = vmatprep.subr.bf16.mxu0 0
        %1302 = vmatpush2.bf16.msra.mxu0 0
        %1303 = vmatprep.mubr.bf16.mxu0 0
        %1304 = vmatmul.mubr.bf16.gmra.mxu0 %v1269
        %v1305 = vpop.f32.mrf.mxu0
        %v1306 = vadd.f32 0.0, %v1305
        %v1307 = vpop.f32.mrf.mxu0
        %v1308 = vpop.f32.mrf.mxu0
        %v1309 = vpop.f32.mrf.mxu0
        %1310 = vdwg.mxu0
        %s1311 = sadd.s32 %s299, 4
        %p1312 = scmp.lt.s32.totalorder %s1311, 59
        %s1313 = scalar_select %p1312, 1, 0
        %v1314 = vstv %s1313
        %vm1315 = vcmp.eq.s32.totalorder %v1314, 1
        %v1316 = vsel %vm1315, %v1306, 0.0
        %v1317 = vadd.f32 %v1119, %v1316
        %1318 = vmatprep.subr.bf16.mxu0 0
        %1319 = vmatpush1.bf16.msra.mxu0 0
        %1320 = vmatprep.subr.bf16.mxu0 0
        %1321 = vmatpush1.bf16.msra.mxu0 0
        %1322 = vmatprep.subr.bf16.mxu0 0
        %1323 = vmatpush1.bf16.msra.mxu0 0
        %1324 = vmatprep.subr.bf16.mxu0 0
        %1325 = vmatpush1.bf16.msra.mxu0 0
        %1326 = vmatprep.subr.bf16.mxu0 %v338
        %1327 = vmatpush1.bf16.msra.mxu0 %v337
        %1328 = vmatprep.subr.bf16.mxu0 %v336
        %1329 = vmatpush1.bf16.msra.mxu0 %v335
        %1330 = vmatprep.subr.bf16.mxu0 %v334
        %1331 = vmatpush1.bf16.msra.mxu0 %v333
        %1332 = vmatprep.subr.bf16.mxu0 %v332
        %1333 = vmatpush1.bf16.msra.mxu0 %v331
        %1334 = vmatprep.subr.bf16.mxu0 0
        %1335 = vmatpush2.bf16.msra.mxu0 0
        %1336 = vmatprep.subr.bf16.mxu0 0
        %1337 = vmatpush2.bf16.msra.mxu0 0
        %1338 = vmatprep.subr.bf16.mxu0 0
        %1339 = vmatpush2.bf16.msra.mxu0 0
        %1340 = vmatprep.subr.bf16.mxu0 0
        %1341 = vmatpush2.bf16.msra.mxu0 0
        %1342 = vmatprep.subr.bf16.mxu0 0
        %1343 = vmatpush2.bf16.msra.mxu0 0
        %1344 = vmatprep.subr.bf16.mxu0 0
        %1345 = vmatpush2.bf16.msra.mxu0 0
        %1346 = vmatprep.subr.bf16.mxu0 0
        %1347 = vmatpush2.bf16.msra.mxu0 0
        %1348 = vmatprep.subr.bf16.mxu0 0
        %1349 = vmatpush2.bf16.msra.mxu0 0
        %1350 = vmatprep.mubr.bf16.mxu0 0
        %1351 = vmatmul.mubr.bf16.gmra.mxu0 %v1269
        %v1352 = vpop.f32.mrf.mxu0
        %v1353 = vadd.f32 0.0, %v1352
        %v1354 = vpop.f32.mrf.mxu0
        %v1355 = vadd.f32 0.0, %v1354
        %v1356 = vpop.f32.mrf.mxu0
        %v1357 = vpop.f32.mrf.mxu0
        %1358 = vdwg.mxu0
        %v1361 = vrot.slane %v1353, 3
        %v1362 = vrot.slane %v1355, 3
        %v1363 = vrot.slane %v1353, 4
        %v1364 = vrot.slane %v1355, 4
        %v1369 = vadd.f32 %v1122, %v1361
        %v1370 = vadd.f32 %v1123, %v1362
        %v1371 = vadd.f32 %v1124, %v1363
        %v1372 = vadd.f32 %v1125, %v1364
        %v1373 = vmul.f32 %v1369, 0.5
        %v1374 = vmul.f32 %v1371, 0.5
        %v1375 = vtanh.pop %v1373
        %v1376 = vtanh.pop %v1374
        %v1377 = vadd.f32 %v1375, 1.0
        %v1378 = vadd.f32 %v1376, 1.0
        %v1379 = vmul.f32 %v1377, 0.5
        %v1380 = vmul.f32 %v1378, 0.5
        %v1381 = vtanh.pop %v1370
        %v1382 = vtanh.pop %v1372
        %v1383 = vmul.f32 %v1370, 0.5
        %v1384 = vmul.f32 %v1372, 0.5
        %v1385 = vtanh.pop %v1383
        %v1386 = vtanh.pop %v1384
        %v1387 = vadd.f32 %v1385, 1.0
        %v1388 = vadd.f32 %v1386, 1.0
        %v1389 = vmul.f32 %v1387, 0.5
        %v1390 = vmul.f32 %v1388, 0.5
        %v1393 = vrot.slane %v1217, 7
        %v1394 = vrot.slane %v1218, 7
        %v1397 = vmul.f32 %v1379, %v1393
        %v1398 = vmul.f32 %v1380, %v1394
        %v1399 = vmul.f32 %v1379, %v1381
        %v1400 = vmul.f32 %v1380, %v1382
        %1403 = vrot.lane.b32.xlu0 %v1399, 64
        %v1404 = vpop.permute.xlu0 %1403
        %1405 = vrot.lane.b32.xlu0 %v1400, 64
        %v1406 = vpop.permute.xlu0 %1405
        %v1409 = vadd.f32 %v1397, %v1404
        %v1410 = vadd.f32 %v1398, %v1406
        %v1411 = vtanh.pop %v1409
        %v1412 = vtanh.pop %v1410
        %v1413 = vmul.f32 %v1389, %v1411
        %v1414 = vmul.f32 %v1390, %v1412
        %v1415 = vpack.c.bf16 %v1413, %v1413
        %v1416 = vpack.c.bf16 %v1414, %v1414
        %s1417 = scalar_lea.vmem %s270, 160
        %v1418 = vld [vmem:[%s1417] sm:$0xf]
        %v1419 = vld [vmem:[%s1417 + $0x4] sm:$0xf]
        %v1420 = vld [vmem:[%s1417 + $0x8] sm:$0xf]
        %v1421 = vld [vmem:[%s1417 + $0xc] sm:$0xf]
        %v1422 = vld [vmem:[%s1417 + $0x10] sm:$0xf]
        %v1423 = vld [vmem:[%s1417 + $0x14] sm:$0xf]
        %v1424 = vld [vmem:[%s1417 + $0x18] sm:$0xf]
        %v1425 = vld [vmem:[%s1417 + $0x1c] sm:$0xf]
        %v1428 = vunpack.c.l.b16 %v1415
        %v1429 = vunpack.c.l.b16 %v1416
        %v1430 = vrot.slane %v1428, 5
        %v1431 = vrot.slane %v1429, 4
        %v1432 = vsel %vm463, %v1431, %v1430
        %v1433 = vpack.c.b16 %v1432, %v1432
        %1434 = vrot.lane.b32.xlu0 %v1433, 64
        %v1435 = vpop.permute.xlu0 %1434
        %v1444 = vunpack.c.l.b16 %v1418
        %v1445 = vunpack.c.l.b16 %v1419
        %v1446 = vunpack.c.l.b16 %v1420
        %v1447 = vunpack.c.l.b16 %v1421
        %v1448 = vunpack.c.l.b16 %v1422
        %v1449 = vunpack.c.l.b16 %v1423
        %v1450 = vunpack.c.l.b16 %v1424
        %v1451 = vunpack.c.l.b16 %v1425
        %v1452 = vpack.c.b16 %v1445, %v1444
        %v1453 = vpack.c.b16 %v1447, %v1446
        %v1454 = vpack.c.b16 %v1449, %v1448
        %v1455 = vpack.c.b16 %v1451, %v1450
        %v1461 = vsel %vm347, %v1435, 0
        %1463 = vmatprep.subr.bf16.mxu0 0
        %1464 = vmatpush1.bf16.msra.mxu0 0
        %1465 = vmatprep.subr.bf16.mxu0 0
        %1466 = vmatpush1.bf16.msra.mxu0 0
        %1467 = vmatprep.subr.bf16.mxu0 0
        %1468 = vmatpush1.bf16.msra.mxu0 0
        %1469 = vmatprep.subr.bf16.mxu0 0
        %1470 = vmatpush1.bf16.msra.mxu0 0
        %1471 = vmatprep.subr.bf16.mxu0 0
        %1472 = vmatpush1.bf16.msra.mxu0 %v1455
        %1473 = vmatprep.subr.bf16.mxu0 0
        %1474 = vmatpush1.bf16.msra.mxu0 %v1454
        %1475 = vmatprep.subr.bf16.mxu0 0
        %1476 = vmatpush1.bf16.msra.mxu0 %v1453
        %1477 = vmatprep.subr.bf16.mxu0 0
        %1478 = vmatpush1.bf16.msra.mxu0 %v1452
        %1479 = vmatprep.subr.bf16.mxu0 0
        %1480 = vmatpush2.bf16.msra.mxu0 0
        %1481 = vmatprep.subr.bf16.mxu0 0
        %1482 = vmatpush2.bf16.msra.mxu0 0
        %1483 = vmatprep.subr.bf16.mxu0 0
        %1484 = vmatpush2.bf16.msra.mxu0 0
        %1485 = vmatprep.subr.bf16.mxu0 0
        %1486 = vmatpush2.bf16.msra.mxu0 0
        %1487 = vmatprep.subr.bf16.mxu0 0
        %1488 = vmatpush2.bf16.msra.mxu0 0
        %1489 = vmatprep.subr.bf16.mxu0 0
        %1490 = vmatpush2.bf16.msra.mxu0 0
        %1491 = vmatprep.subr.bf16.mxu0 0
        %1492 = vmatpush2.bf16.msra.mxu0 0
        %1493 = vmatprep.subr.bf16.mxu0 0
        %1494 = vmatpush2.bf16.msra.mxu0 0
        %1495 = vmatprep.mubr.bf16.mxu0 0
        %1496 = vmatmul.mubr.bf16.gmra.mxu0 %v1461
        %v1497 = vpop.f32.mrf.mxu0
        %v1498 = vadd.f32 0.0, %v1497
        %v1499 = vpop.f32.mrf.mxu0
        %v1500 = vpop.f32.mrf.mxu0
        %v1501 = vpop.f32.mrf.mxu0
        %1502 = vdwg.mxu0
        %s1503 = sadd.s32 %s299, 5
        %p1504 = scmp.lt.s32.totalorder %s1503, 59
        %s1505 = scalar_select %p1504, 1, 0
        %v1506 = vstv %s1505
        %vm1507 = vcmp.eq.s32.totalorder %v1506, 1
        %v1508 = vsel %vm1507, %v1498, 0.0
        %v1509 = vadd.f32 %v1317, %v1508
        %v1510 = vld [vmem:[%s240] sm:$0x88]
        %v1511 = vld [vmem:[%s240 + $0x8] sm:$0x88]
        %v1512 = vunpack.c.l.bf16 %v1510
        %v1513 = vunpack.c.h.bf16 %v1510
        %v1514 = vunpack.c.l.bf16 %v1511
        %v1515 = vunpack.c.h.bf16 %v1511
        %1516 = vmatprep.subr.bf16.mxu0 0
        %1517 = vmatpush1.bf16.msra.mxu0 0
        %1518 = vmatprep.subr.bf16.mxu0 0
        %1519 = vmatpush1.bf16.msra.mxu0 0
        %1520 = vmatprep.subr.bf16.mxu0 0
        %1521 = vmatpush1.bf16.msra.mxu0 0
        %1522 = vmatprep.subr.bf16.mxu0 0
        %1523 = vmatpush1.bf16.msra.mxu0 0
        %1524 = vmatprep.subr.bf16.mxu0 %v338
        %1525 = vmatpush1.bf16.msra.mxu0 %v337
        %1526 = vmatprep.subr.bf16.mxu0 %v336
        %1527 = vmatpush1.bf16.msra.mxu0 %v335
        %1528 = vmatprep.subr.bf16.mxu0 %v334
        %1529 = vmatpush1.bf16.msra.mxu0 %v333
        %1530 = vmatprep.subr.bf16.mxu0 %v332
        %1531 = vmatpush1.bf16.msra.mxu0 %v331
        %1532 = vmatprep.subr.bf16.mxu0 0
        %1533 = vmatpush2.bf16.msra.mxu0 0
        %1534 = vmatprep.subr.bf16.mxu0 0
        %1535 = vmatpush2.bf16.msra.mxu0 0
        %1536 = vmatprep.subr.bf16.mxu0 0
        %1537 = vmatpush2.bf16.msra.mxu0 0
        %1538 = vmatprep.subr.bf16.mxu0 0
        %1539 = vmatpush2.bf16.msra.mxu0 0
        %1540 = vmatprep.subr.bf16.mxu0 0
        %1541 = vmatpush2.bf16.msra.mxu0 0
        %1542 = vmatprep.subr.bf16.mxu0 0
        %1543 = vmatpush2.bf16.msra.mxu0 0
        %1544 = vmatprep.subr.bf16.mxu0 0
        %1545 = vmatpush2.bf16.msra.mxu0 0
        %1546 = vmatprep.subr.bf16.mxu0 0
        %1547 = vmatpush2.bf16.msra.mxu0 0
        %1548 = vmatprep.mubr.bf16.mxu0 0
        %1549 = vmatmul.mubr.bf16.gmra.mxu0 %v1461
        %v1550 = vpop.f32.mrf.mxu0
        %v1551 = vadd.f32 0.0, %v1550
        %v1552 = vpop.f32.mrf.mxu0
        %v1553 = vadd.f32 0.0, %v1552
        %v1554 = vpop.f32.mrf.mxu0
        %v1555 = vpop.f32.mrf.mxu0
        %1556 = vdwg.mxu0
        %v1559 = vrot.slane %v1551, 2
        %v1560 = vrot.slane %v1553, 2
        %v1561 = vrot.slane %v1551, 3
        %v1562 = vrot.slane %v1553, 3
        %v1567 = vadd.f32 %v1512, %v1559
        %v1568 = vadd.f32 %v1513, %v1560
        %v1569 = vadd.f32 %v1514, %v1561
        %v1570 = vadd.f32 %v1515, %v1562
        %v1571 = vmul.f32 %v1567, 0.5
        %v1572 = vmul.f32 %v1569, 0.5
        %v1573 = vtanh.pop %v1571
        %v1574 = vtanh.pop %v1572
        %v1575 = vadd.f32 %v1573, 1.0
        %v1576 = vadd.f32 %v1574, 1.0
        %v1577 = vmul.f32 %v1575, 0.5
        %v1578 = vmul.f32 %v1576, 0.5
        %v1579 = vtanh.pop %v1568
        %v1580 = vtanh.pop %v1570
        %v1581 = vmul.f32 %v1568, 0.5
        %v1582 = vmul.f32 %v1570, 0.5
        %v1583 = vtanh.pop %v1581
        %v1584 = vtanh.pop %v1582
        %v1585 = vadd.f32 %v1583, 1.0
        %v1586 = vadd.f32 %v1584, 1.0
        %v1587 = vmul.f32 %v1585, 0.5
        %v1588 = vmul.f32 %v1586, 0.5
        %v1591 = vrot.slane %v1409, 7
        %v1592 = vrot.slane %v1410, 7
        %v1595 = vmul.f32 %v1577, %v1591
        %v1596 = vmul.f32 %v1578, %v1592
        %v1597 = vmul.f32 %v1577, %v1579
        %v1598 = vmul.f32 %v1578, %v1580
        %1601 = vrot.lane.b32.xlu0 %v1597, 64
        %v1602 = vpop.permute.xlu0 %1601
        %1603 = vrot.lane.b32.xlu0 %v1598, 64
        %v1604 = vpop.permute.xlu0 %1603
        %v1607 = vadd.f32 %v1595, %v1602
        %v1608 = vadd.f32 %v1596, %v1604
        %v1609 = vtanh.pop %v1607
        %v1610 = vtanh.pop %v1608
        %v1611 = vmul.f32 %v1587, %v1609
        %v1612 = vmul.f32 %v1588, %v1610
        %v1613 = vpack.c.bf16 %v1611, %v1611
        %v1614 = vpack.c.bf16 %v1612, %v1612
        %s1615 = scalar_lea.vmem %s270, 192
        %v1616 = vld [vmem:[%s1615] sm:$0xf]
        %v1617 = vld [vmem:[%s1615 + $0x4] sm:$0xf]
        %v1618 = vld [vmem:[%s1615 + $0x8] sm:$0xf]
        %v1619 = vld [vmem:[%s1615 + $0xc] sm:$0xf]
        %v1620 = vld [vmem:[%s1615 + $0x10] sm:$0xf]
        %v1621 = vld [vmem:[%s1615 + $0x14] sm:$0xf]
        %v1622 = vld [vmem:[%s1615 + $0x18] sm:$0xf]
        %v1623 = vld [vmem:[%s1615 + $0x1c] sm:$0xf]
        %v1626 = vunpack.c.l.b16 %v1613
        %v1627 = vunpack.c.l.b16 %v1614
        %v1628 = vrot.slane %v1626, 6
        %v1629 = vrot.slane %v1627, 5
        %v1630 = vsel %vm463, %v1629, %v1628
        %v1631 = vpack.c.b16 %v1630, %v1630
        %1632 = vrot.lane.b32.xlu0 %v1631, 64
        %v1633 = vpop.permute.xlu0 %1632
        %v1642 = vunpack.c.l.b16 %v1616
        %v1643 = vunpack.c.l.b16 %v1617
        %v1644 = vunpack.c.l.b16 %v1618
        %v1645 = vunpack.c.l.b16 %v1619
        %v1646 = vunpack.c.l.b16 %v1620
        %v1647 = vunpack.c.l.b16 %v1621
        %v1648 = vunpack.c.l.b16 %v1622
        %v1649 = vunpack.c.l.b16 %v1623
        %v1650 = vpack.c.b16 %v1643, %v1642
        %v1651 = vpack.c.b16 %v1645, %v1644
        %v1652 = vpack.c.b16 %v1647, %v1646
        %v1653 = vpack.c.b16 %v1649, %v1648
        %v1659 = vsel %vm347, %v1633, 0
        %1661 = vmatprep.subr.bf16.mxu0 0
        %1662 = vmatpush1.bf16.msra.mxu0 0
        %1663 = vmatprep.subr.bf16.mxu0 0
        %1664 = vmatpush1.bf16.msra.mxu0 0
        %1665 = vmatprep.subr.bf16.mxu0 0
        %1666 = vmatpush1.bf16.msra.mxu0 0
        %1667 = vmatprep.subr.bf16.mxu0 0
        %1668 = vmatpush1.bf16.msra.mxu0 0
        %1669 = vmatprep.subr.bf16.mxu0 0
        %1670 = vmatpush1.bf16.msra.mxu0 %v1653
        %1671 = vmatprep.subr.bf16.mxu0 0
        %1672 = vmatpush1.bf16.msra.mxu0 %v1652
        %1673 = vmatprep.subr.bf16.mxu0 0
        %1674 = vmatpush1.bf16.msra.mxu0 %v1651
        %1675 = vmatprep.subr.bf16.mxu0 0
        %1676 = vmatpush1.bf16.msra.mxu0 %v1650
        %1677 = vmatprep.subr.bf16.mxu0 0
        %1678 = vmatpush2.bf16.msra.mxu0 0
        %1679 = vmatprep.subr.bf16.mxu0 0
        %1680 = vmatpush2.bf16.msra.mxu0 0
        %1681 = vmatprep.subr.bf16.mxu0 0
        %1682 = vmatpush2.bf16.msra.mxu0 0
        %1683 = vmatprep.subr.bf16.mxu0 0
        %1684 = vmatpush2.bf16.msra.mxu0 0
        %1685 = vmatprep.subr.bf16.mxu0 0
        %1686 = vmatpush2.bf16.msra.mxu0 0
        %1687 = vmatprep.subr.bf16.mxu0 0
        %1688 = vmatpush2.bf16.msra.mxu0 0
        %1689 = vmatprep.subr.bf16.mxu0 0
        %1690 = vmatpush2.bf16.msra.mxu0 0
        %1691 = vmatprep.subr.bf16.mxu0 0
        %1692 = vmatpush2.bf16.msra.mxu0 0
        %1693 = vmatprep.mubr.bf16.mxu0 0
        %1694 = vmatmul.mubr.bf16.gmra.mxu0 %v1659
        %v1695 = vpop.f32.mrf.mxu0
        %v1696 = vadd.f32 0.0, %v1695
        %v1697 = vpop.f32.mrf.mxu0
        %v1698 = vpop.f32.mrf.mxu0
        %v1699 = vpop.f32.mrf.mxu0
        %1700 = vdwg.mxu0
        %s1701 = sadd.s32 %s299, 6
        %p1702 = scmp.lt.s32.totalorder %s1701, 59
        %s1703 = scalar_select %p1702, 1, 0
        %v1704 = vstv %s1703
        %vm1705 = vcmp.eq.s32.totalorder %v1704, 1
        %v1706 = vsel %vm1705, %v1696, 0.0
        %v1707 = vadd.f32 %v1509, %v1706
        %1708 = vmatprep.subr.bf16.mxu0 0
        %1709 = vmatpush1.bf16.msra.mxu0 0
        %1710 = vmatprep.subr.bf16.mxu0 0
        %1711 = vmatpush1.bf16.msra.mxu0 0
        %1712 = vmatprep.subr.bf16.mxu0 0
        %1713 = vmatpush1.bf16.msra.mxu0 0
        %1714 = vmatprep.subr.bf16.mxu0 0
        %1715 = vmatpush1.bf16.msra.mxu0 0
        %1716 = vmatprep.subr.bf16.mxu0 %v338
        %1717 = vmatpush1.bf16.msra.mxu0 %v337
        %1718 = vmatprep.subr.bf16.mxu0 %v336
        %1719 = vmatpush1.bf16.msra.mxu0 %v335
        %1720 = vmatprep.subr.bf16.mxu0 %v334
        %1721 = vmatpush1.bf16.msra.mxu0 %v333
        %1722 = vmatprep.subr.bf16.mxu0 %v332
        %1723 = vmatpush1.bf16.msra.mxu0 %v331
        %1724 = vmatprep.subr.bf16.mxu0 0
        %1725 = vmatpush2.bf16.msra.mxu0 0
        %1726 = vmatprep.subr.bf16.mxu0 0
        %1727 = vmatpush2.bf16.msra.mxu0 0
        %1728 = vmatprep.subr.bf16.mxu0 0
        %1729 = vmatpush2.bf16.msra.mxu0 0
        %1730 = vmatprep.subr.bf16.mxu0 0
        %1731 = vmatpush2.bf16.msra.mxu0 0
        %1732 = vmatprep.subr.bf16.mxu0 0
        %1733 = vmatpush2.bf16.msra.mxu0 0
        %1734 = vmatprep.subr.bf16.mxu0 0
        %1735 = vmatpush2.bf16.msra.mxu0 0
        %1736 = vmatprep.subr.bf16.mxu0 0
        %1737 = vmatpush2.bf16.msra.mxu0 0
        %1738 = vmatprep.subr.bf16.mxu0 0
        %1739 = vmatpush2.bf16.msra.mxu0 0
        %1740 = vmatprep.mubr.bf16.mxu0 0
        %1741 = vmatmul.mubr.bf16.gmra.mxu0 %v1659
        %v1742 = vpop.f32.mrf.mxu0
        %v1743 = vadd.f32 0.0, %v1742
        %v1744 = vpop.f32.mrf.mxu0
        %v1745 = vadd.f32 0.0, %v1744
        %v1746 = vpop.f32.mrf.mxu0
        %v1747 = vpop.f32.mrf.mxu0
        %1748 = vdwg.mxu0
        %v1751 = vrot.slane %v1743, 1
        %v1752 = vrot.slane %v1745, 1
        %v1753 = vrot.slane %v1743, 2
        %v1754 = vrot.slane %v1745, 2
        %v1759 = vadd.f32 %v1512, %v1751
        %v1760 = vadd.f32 %v1513, %v1752
        %v1761 = vadd.f32 %v1514, %v1753
        %v1762 = vadd.f32 %v1515, %v1754
        %v1763 = vmul.f32 %v1759, 0.5
        %v1764 = vmul.f32 %v1761, 0.5
        %v1765 = vtanh.pop %v1763
        %v1766 = vtanh.pop %v1764
        %v1767 = vadd.f32 %v1765, 1.0
        %v1768 = vadd.f32 %v1766, 1.0
        %v1769 = vmul.f32 %v1767, 0.5
        %v1770 = vmul.f32 %v1768, 0.5
        %v1771 = vtanh.pop %v1760
        %v1772 = vtanh.pop %v1762
        %v1773 = vmul.f32 %v1760, 0.5
        %v1774 = vmul.f32 %v1762, 0.5
        %v1775 = vtanh.pop %v1773
        %v1776 = vtanh.pop %v1774
        %v1777 = vadd.f32 %v1775, 1.0
        %v1778 = vadd.f32 %v1776, 1.0
        %v1779 = vmul.f32 %v1777, 0.5
        %v1780 = vmul.f32 %v1778, 0.5
        %v1783 = vrot.slane %v1607, 7
        %v1784 = vrot.slane %v1608, 7
        %v1787 = vmul.f32 %v1769, %v1783
        %v1788 = vmul.f32 %v1770, %v1784
        %v1789 = vmul.f32 %v1769, %v1771
        %v1790 = vmul.f32 %v1770, %v1772
        %1793 = vrot.lane.b32.xlu0 %v1789, 64
        %v1794 = vpop.permute.xlu0 %1793
        %1795 = vrot.lane.b32.xlu0 %v1790, 64
        %v1796 = vpop.permute.xlu0 %1795
        %v1799 = vadd.f32 %v1787, %v1794
        %v1800 = vadd.f32 %v1788, %v1796
        %v1801 = vtanh.pop %v1799
        %v1802 = vtanh.pop %v1800
        %v1803 = vmul.f32 %v1779, %v1801
        %v1804 = vmul.f32 %v1780, %v1802
        %v1805 = vpack.c.bf16 %v1803, %v1803
        %v1806 = vpack.c.bf16 %v1804, %v1804
        %s1807 = scalar_lea.vmem %s270, 224
        %v1808 = vld [vmem:[%s1807] sm:$0xf]
        %v1809 = vld [vmem:[%s1807 + $0x4] sm:$0xf]
        %v1810 = vld [vmem:[%s1807 + $0x8] sm:$0xf]
        %v1811 = vld [vmem:[%s1807 + $0xc] sm:$0xf]
        %v1812 = vld [vmem:[%s1807 + $0x10] sm:$0xf]
        %v1813 = vld [vmem:[%s1807 + $0x14] sm:$0xf]
        %v1814 = vld [vmem:[%s1807 + $0x18] sm:$0xf]
        %v1815 = vld [vmem:[%s1807 + $0x1c] sm:$0xf]
        %v1818 = vunpack.c.l.b16 %v1805
        %v1819 = vunpack.c.l.b16 %v1806
        %v1820 = vrot.slane %v1818, 7
        %v1821 = vrot.slane %v1819, 6
        %v1822 = vsel %vm463, %v1821, %v1820
        %v1823 = vpack.c.b16 %v1822, %v1822
        %1824 = vrot.lane.b32.xlu0 %v1823, 64
        %v1825 = vpop.permute.xlu0 %1824
        %v1834 = vunpack.c.l.b16 %v1808
        %v1835 = vunpack.c.l.b16 %v1809
        %v1836 = vunpack.c.l.b16 %v1810
        %v1837 = vunpack.c.l.b16 %v1811
        %v1838 = vunpack.c.l.b16 %v1812
        %v1839 = vunpack.c.l.b16 %v1813
        %v1840 = vunpack.c.l.b16 %v1814
        %v1841 = vunpack.c.l.b16 %v1815
        %v1842 = vpack.c.b16 %v1835, %v1834
        %v1843 = vpack.c.b16 %v1837, %v1836
        %v1844 = vpack.c.b16 %v1839, %v1838
        %v1845 = vpack.c.b16 %v1841, %v1840
        %v1851 = vsel %vm347, %v1825, 0
        %1853 = vmatprep.subr.bf16.mxu0 0
        %1854 = vmatpush1.bf16.msra.mxu0 0
        %1855 = vmatprep.subr.bf16.mxu0 0
        %1856 = vmatpush1.bf16.msra.mxu0 0
        %1857 = vmatprep.subr.bf16.mxu0 0
        %1858 = vmatpush1.bf16.msra.mxu0 0
        %1859 = vmatprep.subr.bf16.mxu0 0
        %1860 = vmatpush1.bf16.msra.mxu0 0
        %1861 = vmatprep.subr.bf16.mxu0 0
        %1862 = vmatpush1.bf16.msra.mxu0 %v1845
        %1863 = vmatprep.subr.bf16.mxu0 0
        %1864 = vmatpush1.bf16.msra.mxu0 %v1844
        %1865 = vmatprep.subr.bf16.mxu0 0
        %1866 = vmatpush1.bf16.msra.mxu0 %v1843
        %1867 = vmatprep.subr.bf16.mxu0 0
        %1868 = vmatpush1.bf16.msra.mxu0 %v1842
        %1869 = vmatprep.subr.bf16.mxu0 0
        %1870 = vmatpush2.bf16.msra.mxu0 0
        %1871 = vmatprep.subr.bf16.mxu0 0
        %1872 = vmatpush2.bf16.msra.mxu0 0
        %1873 = vmatprep.subr.bf16.mxu0 0
        %1874 = vmatpush2.bf16.msra.mxu0 0
        %1875 = vmatprep.subr.bf16.mxu0 0
        %1876 = vmatpush2.bf16.msra.mxu0 0
        %1877 = vmatprep.subr.bf16.mxu0 0
        %1878 = vmatpush2.bf16.msra.mxu0 0
        %1879 = vmatprep.subr.bf16.mxu0 0
        %1880 = vmatpush2.bf16.msra.mxu0 0
        %1881 = vmatprep.subr.bf16.mxu0 0
        %1882 = vmatpush2.bf16.msra.mxu0 0
        %1883 = vmatprep.subr.bf16.mxu0 0
        %1884 = vmatpush2.bf16.msra.mxu0 0
        %1885 = vmatprep.mubr.bf16.mxu0 0
        %1886 = vmatmul.mubr.bf16.gmra.mxu0 %v1851
        %v1887 = vpop.f32.mrf.mxu0
        %v1888 = vadd.f32 0.0, %v1887
        %v1889 = vpop.f32.mrf.mxu0
        %v1890 = vpop.f32.mrf.mxu0
        %v1891 = vpop.f32.mrf.mxu0
        %1892 = vdwg.mxu0
        %s1893 = sadd.s32 %s299, 7
        %p1894 = scmp.lt.s32.totalorder %s1893, 59
        %s1895 = scalar_select %p1894, 1, 0
        %v1896 = vstv %s1895
        %vm1897 = vcmp.eq.s32.totalorder %v1896, 1
        %v1898 = vsel %vm1897, %v1888, 0.0
        %v1899 = vadd.f32 %v1707, %v1898
        %v1902 = vrot.slane %v1804, 7
        %1903 = vrot.lane.b32.xlu0 %v1803, 64
        %v1904 = vpop.permute.xlu0 %1903
        %1905 = vrot.lane.b32.xlu0 %v1902, 64
        %v1906 = vpop.permute.xlu0 %1905
        %vm1909 = vcmask 523271
        %1910 = vst.msk [vmem:[#allocation2 - $0x7] sm:$0x80] %vm1909, %v1904
        %vm1911 = vcmask 516096
        %1912 = vst.msk [vmem:[#allocation2 + $0x1] sm:$0x1] %vm1911, %v1906
        %v1915 = vrot.slane %v1800, 7
        %1916 = vrot.lane.b32.xlu0 %v1799, 64
        %v1917 = vpop.permute.xlu0 %1916
        %1918 = vrot.lane.b32.xlu0 %v1915, 64
        %v1919 = vpop.permute.xlu0 %1918
        %1922 = vst.msk [vmem:[#allocation3 - $0x7] sm:$0x80] %vm1909, %v1917
        %1923 = vst.msk [vmem:[#allocation3 + $0x1] sm:$0x1] %vm1911, %v1919
        %1924 = vst [vmem:[#allocation4] sm:$0x3] %v1899
        %p1925 = scmp.eq.s32.totalorder %s21, 7
        // Predicated region
        $region79: #{lstm_forward.3} parent=69 // pred_check
          %p1926 = pneg %p1925
        $region80: #{lstm_forward.3} parent=69 // pred_check_branch
          %1928 = sbr.rel (%p1926) target = $region82
        $region81: #{lstm_forward.3} parent=69 // pred_region
          %1929 = vst [vmem:[#allocation6] sm:$0x3] %v1899
        $region82: #{lstm_forward.3} parent=69 // pred_fallthru
          _
        // Predicated region
        $region83: #{lstm_forward.3} parent=69 // pred_check
          %p1930 = pneg %p142
        $region84: #{lstm_forward.3} parent=69 // pred_check_branch
          %1932 = sbr.rel (%p1930) target = $region86
        $region85: #{lstm_forward.3} parent=69 // pred_region
          %s1934 = ssub.s32 32, 32
          %1935 = vsyncadd [#allocation7], %s1934
          %s1936 = smul.addr %s20, 32
          %s1937 = scalar_lea.hbm %s4, %s1936
          %s1939 = sshll.u32 [#allocation6], 4
          %s1940 = int_to_ptr.vmem [resolvable:$true] %s1939
          %1942 = dma.vmem_to_hbm [thread:$0]  %s1940, 32, %s1937, [#allocation7]
        $region86: #{lstm_forward.3} parent=69 // pred_fallthru
          _
        // Predicated region
        $region87: #{lstm_forward.3} parent=69 // pred_check
          %p1943 = pneg %p142
        $region88: #{lstm_forward.3} parent=69 // pred_check_branch
          %1945 = sbr.rel (%p1943) target = $region90
        $region89: #{lstm_forward.3} parent=69 // pred_region
          %1946 = dma.done [#allocation7], 32
        $region90: #{lstm_forward.3} parent=69 // pred_fallthru
          _
      $region70: #{lstm_forward.3} parent=5 // pred_fallthru
        _
      %p1947 = scmp.le.s32.totalorder 2, %s11
      // Predicated region
      $region91: #{lstm_forward.3} parent=5 // pred_check
        %p1948 = pneg %p1947
      $region92: #{lstm_forward.3} parent=5 // pred_check_branch
        %1950 = sbr.rel (%p1948) target = $region94
      $region93: #{lstm_forward.3} parent=5 // pred_region
        %s1951 = ssub.s32 %s11, 2
      $region94: #{lstm_forward.3} parent=5 // pred_fallthru
        _
    $region6: #{lstm_forward.3} parent=1 // loop_footer
      %s15 = sadd.s32 1, %s11
    $region7: #{lstm_forward.3} parent=1 // loop_footer_branch
      %10 = sbr.rel target = $region3
    $region8: #{lstm_forward.3} parent=1 // loop_exit
      _
    %1952 = vsyncpa [#allocation7], 1
    %s1953 = scalar_lea.sflag [#allocation7], 1
    %1954 = vsyncpa %s1953, 1

</llo_original>
